<compile_context>
chip_gen: v5e
topology: v5e:2x2
jax: 0.10.0
libtpu: 0.0.40
codegen_flags: <defaults>
</compile_context>

<pallas_src>
import functools

import jax
import jax.numpy as jnp
from jax.experimental import pallas as pl
from jax.experimental.pallas import tpu as pltpu


def _round_up(v, m):
    return ((v + m - 1) // m) * m


# ----------------------------------------------------------------------------
# Pallas kernel: full decoder-classifier forward on one batch tile.
# ----------------------------------------------------------------------------
def _decoder_kernel(x_ref,
                    wc_ref, bc_ref,        # SMEM: (C, C) f32 conv weight, (1, C) f32 conv bias
                    we_ref, be_ref,        # encoder FC: (E, Lp) bf16, (1, Lp) f32
                    w1_ref, b1_ref,        # fused decodingLinearLayer1: (2*Lp, H3p) bf16
                    w2_ref, b2_ref, w3_ref, b3_ref,
                    w4_ref, b4_ref, w5_ref, b5_ref,
                    w6_ref, b6_ref, w7_ref, b7_ref,
                    w8_ref, b8_ref,
                    bns_ref, bnb_ref,      # eval-mode batchnorm folded scale/shift, f32
                    o_ref,
                    y_scr,                 # VMEM scratch (NB, E) f32
                    *, C, S):
    E = C * S

    def dot(a, w_ref):
        # bf16 MXU inputs, f32 accumulation; elementwise epilogue stays f32.
        return jnp.dot(a.astype(jnp.bfloat16), w_ref[...],
                       preferred_element_type=jnp.float32)

    def lin_relu(a, w_ref, b_ref):
        return jnp.maximum(dot(a, w_ref) + b_ref[...], 0.0)

    def latent(off):
        # --- synthetic encodingBodyStructureSeq: Conv3d(C, C, 1x1x1) + ReLU ---
        # Per OUTPUT channel slab, scalar-broadcast FMA on (NB, S) slabs sliced
        # straight from the input ref (128-lane-aligned static slices), written
        # into VMEM scratch so the encoder FC below is one K=E matmul.
        for d in range(C):
            acc = None
            for c in range(C):
                slab = x_ref[:, off + c * S: off + (c + 1) * S]   # (NB, S) f32
                term = wc_ref[d, c] * slab
                acc = term if acc is None else acc + term
            y_scr[:, d * S:(d + 1) * S] = jnp.maximum(acc + bc_ref[0, d], 0.0)
        # --- synthetic encodingFullyConnectedLayer + ReLU -> latent variables --
        return jnp.maximum(dot(y_scr[...], we_ref) + be_ref[...], 0.0)  # (NB, Lp)

    l0 = latent(0)        # position 0 (lane half 0)
    l1 = latent(E)        # position 1 (lane half 1)
    cat = jnp.concatenate([l0, l1], axis=1)            # (NB, 2*Lp), lane-aligned

    a = lin_relu(cat, w1_ref, b1_ref)                  # decodingLinearLayer1 (fused)
    a = lin_relu(a, w2_ref, b2_ref)
    a = lin_relu(a, w3_ref, b3_ref)
    # dropout (eval mode -> identity); BatchNorm1d (eval mode, running stats)
    a = a * bns_ref[...] + bnb_ref[...]
    a = lin_relu(a, w4_ref, b4_ref)
    a = lin_relu(a, w5_ref, b5_ref)
    a = lin_relu(a, w6_ref, b6_ref)
    a = a * bns_ref[...] + bnb_ref[...]
    a = lin_relu(a, w7_ref, b7_ref)

    logits = dot(a, w8_ref) + b8_ref[...]              # (NB, 128) lane-dense
    o_ref[...] = jax.nn.sigmoid(logits)


# ----------------------------------------------------------------------------
# Wrapper: batch tiling, BlockSpecs, pallas_call
# ----------------------------------------------------------------------------
def _choose_batch_tile(n):
    """Pick a large, MXU-friendly batch tile.

    Small N: one tile (grid=1) -- two starved tiles are slower than one fed tile.
    Large N: largest multiple-of-8 divisor in [256, 512], preferring an even
    step count so v7x's two TensorCores split the "parallel" axis evenly.
    """
    if n <= 512:
        return n
    cands = [t for t in range(8, 513, 8) if n % t == 0]
    if not cands:
        return n   # TODO(synk): pad the batch instead for huge prime N.
    pool = [t for t in cands if t >= 256] or cands
    even = [t for t in pool if (n // t) % 2 == 0]
    return max(even or pool)


def decoder_classifier_forward(x, kernel_params, *, C, batch_tile=None):
    """x: (N, 2*C, D, H, W) float32.  Returns (N, 2) float32 (sigmoid outputs)."""
    N = x.shape[0]
    assert x.shape[1] == 2 * C
    S = x.shape[2] * x.shape[3] * x.shape[4]
    E = C * S
    assert kernel_params[0].shape == (C, C)

    NB = _choose_batch_tile(N) if batch_tile is None else batch_tile
    assert N % NB == 0 and (NB % 8 == 0 or NB == N), (N, NB)

    # Single flattened view of the input: metadata-only reshape, no HBM copy.
    xf = x.reshape(N, 2 * E)

    vmem_params = kernel_params[2:]
    out_width = kernel_params[-4].shape[1]        # padded logit width (128, lane-dense)
    kernel = functools.partial(_decoder_kernel, C=C, S=S)

    smem_spec = pl.BlockSpec(memory_space=pltpu.MemorySpace.SMEM)

    def const_spec(w):
        return pl.BlockSpec(w.shape, lambda i: (0, 0))

    in_specs = ([pl.BlockSpec((NB, 2 * E), lambda i: (i, 0)),
                 smem_spec, smem_spec]
                + [const_spec(w) for w in vmem_params])
    out_spec = pl.BlockSpec((NB, out_width), lambda i: (i, 0))

    out = pl.pallas_call(
        kernel,
        out_shape=jax.ShapeDtypeStruct((N, out_width), jnp.float32),
        grid=(N // NB,),
        in_specs=in_specs,
        out_specs=out_spec,
        scratch_shapes=[pltpu.VMEM((NB, E), jnp.float32)],
        compiler_params=pltpu.CompilerParams(
            dimension_semantics=("parallel",),
            # ~1 MiB resident weights + double-buffered (NB, 2E) input tile +
            # activation temporaries; well under every generation's VMEM.
            vmem_limit_bytes=24 * 1024 * 1024),
    )(xf, *kernel_params)
    return out[:, :2]


# ----------------------------------------------------------------------------
# Deterministic parameter construction (PyTorch-style uniform init)
# ----------------------------------------------------------------------------
def _linear_init(key, fan_in, fan_out):
    kw, kb = jax.random.split(key)
    bound = 1.0 / (fan_in ** 0.5)
    w = jax.random.uniform(kw, (fan_out, fan_in), jnp.float32, -bound, bound)
    b = jax.random.uniform(kb, (fan_out,), jnp.float32, -bound, bound)
    return w, b


def make_torch_like_params(key, *, C, S, L):
    """Parameters in PyTorch layout: weights (out, in), biases (out,)."""
    E, H3 = C * S, 3 * L
    keys = jax.random.split(key, 14)
    wc, bc = _linear_init(keys[0], C, C)          # synthetic Conv3d(C, C, 1) weight/bias
    we, be = _linear_init(keys[1], E, L)          # synthetic encodingFullyConnectedLayer
    w1, b1 = _linear_init(keys[2], 2 * L, H3)     # decodingLinearLayer1
    mids = tuple(_linear_init(keys[3 + i], H3, H3) for i in range(6))   # layers 2..7
    w8, b8 = _linear_init(keys[9], H3, 2)         # decodingLinearLayer8
    # BatchNorm1d (eval mode); non-trivial "trained" running stats so the
    # batchnorm fold is actually exercised by the self-test.
    gamma = jax.random.uniform(keys[10], (H3,), jnp.float32, 0.5, 1.5)
    beta = 0.1 * jax.random.normal(keys[11], (H3,), jnp.float32)
    mean = 0.1 * jax.random.normal(keys[12], (H3,), jnp.float32)
    var = jax.random.uniform(keys[13], (H3,), jnp.float32, 0.5, 1.5)
    return dict(wc=wc, bc=bc, we=we, be=be, w1=w1, b1=b1, mids=mids,
                w8=w8, b8=b8, bn=(gamma, beta, mean, var, 1e-5))


def prepare_kernel_params(p, *, C, S, L):
    """Pad to 128-lane multiples, transpose to (in, out), cast matmul weights to bf16."""
    E, H3 = C * S, 3 * L
    Lp = _round_up(L, 128)
    H3p = _round_up(H3, 128)
    OUTP = 128                      # lane-dense padded logit width
    f32, bf16 = jnp.float32, jnp.bfloat16

    def pad2(w, rows, cols):
        out = jnp.zeros((rows, cols), f32)
        return out.at[:w.shape[0], :w.shape[1]].set(w.astype(f32))

    # 1x1x1 conv weights stay as raw scalars for SMEM (no kron / replication).
    wc = p['wc'].astype(f32)                      # (C, C)
    bc = p['bc'].reshape(1, C).astype(f32)        # (1, C)

    we_t = pad2(p['we'].T, E, Lp).astype(bf16)
    be = pad2(p['be'].reshape(1, L), 1, Lp)

    # decodingLinearLayer1 fused for the lane-concat([l0, l1]) input of width 2*Lp.
    w1 = p['w1']
    w1f = jnp.zeros((2 * Lp, H3p), f32)
    w1f = w1f.at[:L, :H3].set(w1[:, :L].T.astype(f32))
    w1f = w1f.at[Lp:Lp + L, :H3].set(w1[:, L:].T.astype(f32))
    w1f = w1f.astype(bf16)
    b1 = pad2(p['b1'].reshape(1, H3), 1, H3p)

    def mid(w, b):
        return pad2(w.T, H3p, H3p).astype(bf16), pad2(b.reshape(1, H3), 1, H3p)

    (w2, b2), (w3, b3), (w4, b4), (w5, b5), (w6, b6), (w7, b7) = [
        mid(w, b) for (w, b) in p['mids']]

    w8 = pad2(p['w8'].T, H3p, OUTP).astype(bf16)
    b8 = pad2(p['b8'].reshape(1, 2), 1, OUTP)

    gamma, beta, mean, var, eps = p['bn']
    scale = gamma / jnp.sqrt(var + eps)
    shift = beta - mean * scale
    bns = jnp.ones((1, H3p), f32).at[0, :H3].set(scale)   # padded lanes act on zeros
    bnb = jnp.zeros((1, H3p), f32).at[0, :H3].set(shift)

    return (wc, bc, we_t, be, w1f, b1,
            w2, b2, w3, b3, w4, b4, w5, b5, w6, b6, w7, b7,
            w8, b8, bns, bnb)


# ----------------------------------------------------------------------------
# Pure-JAX f32 reference (mirrors the PyTorch forward in eval mode)
# ----------------------------------------------------------------------------
def reference_forward(x, p, *, C):
    N = x.shape[0]
    S = x.shape[2] * x.shape[3] * x.shape[4]
    E = C * S

    def latent(pos):                                   # pos: (N, C, D, H, W)
        xr = pos.reshape(N, C, S)
        y = jnp.einsum('dc,ncs->nds', p['wc'], xr) + p['bc'][None, :, None]
        y = jnp.maximum(y, 0.0)                        # Conv3d(1x1x1) + ReLU
        y = y.reshape(N, E)                            # channel-major flatten (.view)
        return jnp.maximum(y @ p['we'].T + p['be'], 0.0)

    l0 = latent(x[:, :C])
    l1 = latent(x[:, C:])
    a = jnp.concatenate([l0, l1], axis=1)

    def lin_relu(a, w, b):
        return jnp.maximum(a @ w.T + b, 0.0)

    gamma, beta, mean, var, eps = p['bn']

    def bn(a):
        return (a - mean) / jnp.sqrt(var + eps) * gamma + beta

    a = lin_relu(a, p['w1'], p['b1'])
    a = lin_relu(a, *p['mids'][0])
    a = lin_relu(a, *p['mids'][1])
    a = bn(a)                                          # dropout = identity (eval)
    a = lin_relu(a, *p['mids'][2])
    a = lin_relu(a, *p['mids'][3])
    a = lin_relu(a, *p['mids'][4])
    a = bn(a)
    a = lin_relu(a, *p['mids'][5])
    return jax.nn.sigmoid(a @ p['w8'].T + p['b8'])


if __name__ == "__main__":
    # Small but lane-friendly shapes:
    #   inputTensorShape = (C, D, H, W) = (4, 2, 8, 8) -> S = 128, E = C*S = 512
    #   numberOfLatentVariables L = 64 -> hidden 3L = 192 (padded to 128 / 256)
    N, C, D, H, W = 16, 4, 2, 8, 8
    L = 64
    S = D * H * W

    key = jax.random.PRNGKey(0)
    kx, kp = jax.random.split(key)
    x = jax.random.normal(kx, (N, 2 * C, D, H, W), jnp.float32)

    params = make_torch_like_params(kp, C=C, S=S, L=L)
    kernel_params = prepare_kernel_params(params, C=C, S=S, L=L)

    out = decoder_classifier_forward(x, kernel_params, C=C)
    out = jax.block_until_ready(out)
    assert out.shape == (N, 2)

    ref = reference_forward(x, params, C=C)
    err = float(jnp.max(jnp.abs(out - ref)))
    if err > 2e-2:   # bf16 matmul weights/activation handoffs vs f32 reference
        raise AssertionError(
            f"Pallas kernel does not match reference (max abs err {err})")
    print("KERNEL_OK")
</pallas_src>

<mosaic_0001>
module attributes {stable_mosaic.version = 11 : i64} {
  func.func @_decoder_kernel(%arg0: i32, %arg1: memref<16x1024xf32, #tpu.memory_space<vmem>>, %arg2: memref<4x4xf32, #tpu.memory_space<smem>>, %arg3: memref<1x4xf32, #tpu.memory_space<smem>>, %arg4: memref<512x128xbf16, #tpu.memory_space<vmem>>, %arg5: memref<1x128xf32, #tpu.memory_space<vmem>>, %arg6: memref<256x256xbf16, #tpu.memory_space<vmem>>, %arg7: memref<1x256xf32, #tpu.memory_space<vmem>>, %arg8: memref<256x256xbf16, #tpu.memory_space<vmem>>, %arg9: memref<1x256xf32, #tpu.memory_space<vmem>>, %arg10: memref<256x256xbf16, #tpu.memory_space<vmem>>, %arg11: memref<1x256xf32, #tpu.memory_space<vmem>>, %arg12: memref<256x256xbf16, #tpu.memory_space<vmem>>, %arg13: memref<1x256xf32, #tpu.memory_space<vmem>>, %arg14: memref<256x256xbf16, #tpu.memory_space<vmem>>, %arg15: memref<1x256xf32, #tpu.memory_space<vmem>>, %arg16: memref<256x256xbf16, #tpu.memory_space<vmem>>, %arg17: memref<1x256xf32, #tpu.memory_space<vmem>>, %arg18: memref<256x256xbf16, #tpu.memory_space<vmem>>, %arg19: memref<1x256xf32, #tpu.memory_space<vmem>>, %arg20: memref<256x128xbf16, #tpu.memory_space<vmem>>, %arg21: memref<1x128xf32, #tpu.memory_space<vmem>>, %arg22: memref<1x256xf32, #tpu.memory_space<vmem>>, %arg23: memref<1x256xf32, #tpu.memory_space<vmem>>, %arg24: memref<16x128xf32, #tpu.memory_space<vmem>>, %arg25: memref<16x512xf32, #tpu.memory_space<vmem>>) attributes {dimension_semantics = [#tpu.dimension_semantics<parallel>], iteration_bounds = array<i64: 1>, scalar_prefetch = 0 : i64, scratch_operands = 1 : i64, tpu.core_type = #tpu.core_type<tc>, window_params = [{transform_indices = @transform_0, window_bounds = array<i64: 16, 1024>}, {transform_indices = @transform_1, window_bounds = array<i64: 4, 4>}, {transform_indices = @transform_2, window_bounds = array<i64: 1, 4>}, {pipeline_mode = #tpu.pipeline_mode<synchronous>, transform_indices = @transform_3, window_bounds = array<i64: 512, 128>}, {pipeline_mode = #tpu.pipeline_mode<synchronous>, transform_indices = @transform_4, window_bounds = array<i64: 1, 128>}, {pipeline_mode = #tpu.pipeline_mode<synchronous>, transform_indices = @transform_5, window_bounds = array<i64: 256, 256>}, {pipeline_mode = #tpu.pipeline_mode<synchronous>, transform_indices = @transform_6, window_bounds = array<i64: 1, 256>}, {pipeline_mode = #tpu.pipeline_mode<synchronous>, transform_indices = @transform_7, window_bounds = array<i64: 256, 256>}, {pipeline_mode = #tpu.pipeline_mode<synchronous>, transform_indices = @transform_8, window_bounds = array<i64: 1, 256>}, {pipeline_mode = #tpu.pipeline_mode<synchronous>, transform_indices = @transform_9, window_bounds = array<i64: 256, 256>}, {pipeline_mode = #tpu.pipeline_mode<synchronous>, transform_indices = @transform_10, window_bounds = array<i64: 1, 256>}, {pipeline_mode = #tpu.pipeline_mode<synchronous>, transform_indices = @transform_11, window_bounds = array<i64: 256, 256>}, {pipeline_mode = #tpu.pipeline_mode<synchronous>, transform_indices = @transform_12, window_bounds = array<i64: 1, 256>}, {pipeline_mode = #tpu.pipeline_mode<synchronous>, transform_indices = @transform_13, window_bounds = array<i64: 256, 256>}, {pipeline_mode = #tpu.pipeline_mode<synchronous>, transform_indices = @transform_14, window_bounds = array<i64: 1, 256>}, {pipeline_mode = #tpu.pipeline_mode<synchronous>, transform_indices = @transform_15, window_bounds = array<i64: 256, 256>}, {pipeline_mode = #tpu.pipeline_mode<synchronous>, transform_indices = @transform_16, window_bounds = array<i64: 1, 256>}, {pipeline_mode = #tpu.pipeline_mode<synchronous>, transform_indices = @transform_17, window_bounds = array<i64: 256, 256>}, {pipeline_mode = #tpu.pipeline_mode<synchronous>, transform_indices = @transform_18, window_bounds = array<i64: 1, 256>}, {pipeline_mode = #tpu.pipeline_mode<synchronous>, transform_indices = @transform_19, window_bounds = array<i64: 256, 128>}, {pipeline_mode = #tpu.pipeline_mode<synchronous>, transform_indices = @transform_20, window_bounds = array<i64: 1, 128>}, {pipeline_mode = #tpu.pipeline_mode<synchronous>, transform_indices = @transform_21, window_bounds = array<i64: 1, 256>}, {pipeline_mode = #tpu.pipeline_mode<synchronous>, transform_indices = @transform_22, window_bounds = array<i64: 1, 256>}, {transform_indices = @transform_23, window_bounds = array<i64: 16, 128>}]} {
    %c0 = arith.constant 0 : index
    %c0_0 = arith.constant 0 : index
    %0 = vector.load %arg1[%c0, %c0_0] : memref<16x1024xf32, #tpu.memory_space<vmem>>, vector<16x128xf32>
    %c0_1 = arith.constant 0 : index
    %c0_2 = arith.constant 0 : index
    %1 = memref.load %arg2[%c0_1, %c0_2] : memref<4x4xf32, #tpu.memory_space<smem>>
    %2 = vector.broadcast %1 : f32 to vector<16x128xf32>
    %3 = arith.mulf %2, %0 : vector<16x128xf32>
    %c0_3 = arith.constant 0 : index
    %c128 = arith.constant 128 : index
    %4 = vector.load %arg1[%c0_3, %c128] : memref<16x1024xf32, #tpu.memory_space<vmem>>, vector<16x128xf32>
    %c0_4 = arith.constant 0 : index
    %c1 = arith.constant 1 : index
    %5 = memref.load %arg2[%c0_4, %c1] : memref<4x4xf32, #tpu.memory_space<smem>>
    %6 = vector.broadcast %5 : f32 to vector<16x128xf32>
    %7 = arith.mulf %6, %4 : vector<16x128xf32>
    %8 = arith.addf %3, %7 : vector<16x128xf32>
    %c0_5 = arith.constant 0 : index
    %c256 = arith.constant 256 : index
    %9 = vector.load %arg1[%c0_5, %c256] : memref<16x1024xf32, #tpu.memory_space<vmem>>, vector<16x128xf32>
    %c0_6 = arith.constant 0 : index
    %c2 = arith.constant 2 : index
    %10 = memref.load %arg2[%c0_6, %c2] : memref<4x4xf32, #tpu.memory_space<smem>>
    %11 = vector.broadcast %10 : f32 to vector<16x128xf32>
    %12 = arith.mulf %11, %9 : vector<16x128xf32>
    %13 = arith.addf %8, %12 : vector<16x128xf32>
    %c0_7 = arith.constant 0 : index
    %c384 = arith.constant 384 : index
    %14 = vector.load %arg1[%c0_7, %c384] : memref<16x1024xf32, #tpu.memory_space<vmem>>, vector<16x128xf32>
    %c0_8 = arith.constant 0 : index
    %c3 = arith.constant 3 : index
    %15 = memref.load %arg2[%c0_8, %c3] : memref<4x4xf32, #tpu.memory_space<smem>>
    %16 = vector.broadcast %15 : f32 to vector<16x128xf32>
    %17 = arith.mulf %16, %14 : vector<16x128xf32>
    %18 = arith.addf %13, %17 : vector<16x128xf32>
    %c0_9 = arith.constant 0 : index
    %c0_10 = arith.constant 0 : index
    %19 = memref.load %arg3[%c0_9, %c0_10] : memref<1x4xf32, #tpu.memory_space<smem>>
    %20 = vector.broadcast %19 : f32 to vector<16x128xf32>
    %21 = arith.addf %18, %20 : vector<16x128xf32>
    %cst = arith.constant 0.000000e+00 : f32
    %22 = vector.broadcast %cst : f32 to vector<16x128xf32>
    %23 = arith.maximumf %21, %22 : vector<16x128xf32>
    %c0_11 = arith.constant 0 : index
    %c0_12 = arith.constant 0 : index
    %24 = vector.load %arg25[%c0_11, %c0_12] : memref<16x512xf32, #tpu.memory_space<vmem>>, vector<16x128xf32>
    tpu.vector_store %arg25[%c0_11, %c0_12], %23 {strides = array<i32>} : memref<16x512xf32, #tpu.memory_space<vmem>>, vector<16x128xf32>,
    %c0_13 = arith.constant 0 : index
    %c0_14 = arith.constant 0 : index
    %25 = vector.load %arg1[%c0_13, %c0_14] : memref<16x1024xf32, #tpu.memory_space<vmem>>, vector<16x128xf32>
    %c1_15 = arith.constant 1 : index
    %c0_16 = arith.constant 0 : index
    %26 = memref.load %arg2[%c1_15, %c0_16] : memref<4x4xf32, #tpu.memory_space<smem>>
    %27 = vector.broadcast %26 : f32 to vector<16x128xf32>
    %28 = arith.mulf %27, %25 : vector<16x128xf32>
    %c0_17 = arith.constant 0 : index
    %c128_18 = arith.constant 128 : index
    %29 = vector.load %arg1[%c0_17, %c128_18] : memref<16x1024xf32, #tpu.memory_space<vmem>>, vector<16x128xf32>
    %c1_19 = arith.constant 1 : index
    %c1_20 = arith.constant 1 : index
    %30 = memref.load %arg2[%c1_19, %c1_20] : memref<4x4xf32, #tpu.memory_space<smem>>
    %31 = vector.broadcast %30 : f32 to vector<16x128xf32>
    %32 = arith.mulf %31, %29 : vector<16x128xf32>
    %33 = arith.addf %28, %32 : vector<16x128xf32>
    %c0_21 = arith.constant 0 : index
    %c256_22 = arith.constant 256 : index
    %34 = vector.load %arg1[%c0_21, %c256_22] : memref<16x1024xf32, #tpu.memory_space<vmem>>, vector<16x128xf32>
    %c1_23 = arith.constant 1 : index
    %c2_24 = arith.constant 2 : index
    %35 = memref.load %arg2[%c1_23, %c2_24] : memref<4x4xf32, #tpu.memory_space<smem>>
    %36 = vector.broadcast %35 : f32 to vector<16x128xf32>
    %37 = arith.mulf %36, %34 : vector<16x128xf32>
    %38 = arith.addf %33, %37 : vector<16x128xf32>
    %c0_25 = arith.constant 0 : index
    %c384_26 = arith.constant 384 : index
    %39 = vector.load %arg1[%c0_25, %c384_26] : memref<16x1024xf32, #tpu.memory_space<vmem>>, vector<16x128xf32>
    %c1_27 = arith.constant 1 : index
    %c3_28 = arith.constant 3 : index
    %40 = memref.load %arg2[%c1_27, %c3_28] : memref<4x4xf32, #tpu.memory_space<smem>>
    %41 = vector.broadcast %40 : f32 to vector<16x128xf32>
    %42 = arith.mulf %41, %39 : vector<16x128xf32>
    %43 = arith.addf %38, %42 : vector<16x128xf32>
    %c0_29 = arith.constant 0 : index
    %c1_30 = arith.constant 1 : index
    %44 = memref.load %arg3[%c0_29, %c1_30] : memref<1x4xf32, #tpu.memory_space<smem>>
    %45 = vector.broadcast %44 : f32 to vector<16x128xf32>
    %46 = arith.addf %43, %45 : vector<16x128xf32>
    %cst_31 = arith.constant 0.000000e+00 : f32
    %47 = vector.broadcast %cst_31 : f32 to vector<16x128xf32>
    %48 = arith.maximumf %46, %47 : vector<16x128xf32>
    %c0_32 = arith.constant 0 : index
    %c128_33 = arith.constant 128 : index
    %49 = vector.load %arg25[%c0_32, %c128_33] : memref<16x512xf32, #tpu.memory_space<vmem>>, vector<16x128xf32>
    tpu.vector_store %arg25[%c0_32, %c128_33], %48 {strides = array<i32>} : memref<16x512xf32, #tpu.memory_space<vmem>>, vector<16x128xf32>,
    %c0_34 = arith.constant 0 : index
    %c0_35 = arith.constant 0 : index
    %50 = vector.load %arg1[%c0_34, %c0_35] : memref<16x1024xf32, #tpu.memory_space<vmem>>, vector<16x128xf32>
    %c2_36 = arith.constant 2 : index
    %c0_37 = arith.constant 0 : index
    %51 = memref.load %arg2[%c2_36, %c0_37] : memref<4x4xf32, #tpu.memory_space<smem>>
    %52 = vector.broadcast %51 : f32 to vector<16x128xf32>
    %53 = arith.mulf %52, %50 : vector<16x128xf32>
    %c0_38 = arith.constant 0 : index
    %c128_39 = arith.constant 128 : index
    %54 = vector.load %arg1[%c0_38, %c128_39] : memref<16x1024xf32, #tpu.memory_space<vmem>>, vector<16x128xf32>
    %c2_40 = arith.constant 2 : index
    %c1_41 = arith.constant 1 : index
    %55 = memref.load %arg2[%c2_40, %c1_41] : memref<4x4xf32, #tpu.memory_space<smem>>
    %56 = vector.broadcast %55 : f32 to vector<16x128xf32>
    %57 = arith.mulf %56, %54 : vector<16x128xf32>
    %58 = arith.addf %53, %57 : vector<16x128xf32>
    %c0_42 = arith.constant 0 : index
    %c256_43 = arith.constant 256 : index
    %59 = vector.load %arg1[%c0_42, %c256_43] : memref<16x1024xf32, #tpu.memory_space<vmem>>, vector<16x128xf32>
    %c2_44 = arith.constant 2 : index
    %c2_45 = arith.constant 2 : index
    %60 = memref.load %arg2[%c2_44, %c2_45] : memref<4x4xf32, #tpu.memory_space<smem>>
    %61 = vector.broadcast %60 : f32 to vector<16x128xf32>
    %62 = arith.mulf %61, %59 : vector<16x128xf32>
    %63 = arith.addf %58, %62 : vector<16x128xf32>
    %c0_46 = arith.constant 0 : index
    %c384_47 = arith.constant 384 : index
    %64 = vector.load %arg1[%c0_46, %c384_47] : memref<16x1024xf32, #tpu.memory_space<vmem>>, vector<16x128xf32>
    %c2_48 = arith.constant 2 : index
    %c3_49 = arith.constant 3 : index
    %65 = memref.load %arg2[%c2_48, %c3_49] : memref<4x4xf32, #tpu.memory_space<smem>>
    %66 = vector.broadcast %65 : f32 to vector<16x128xf32>
    %67 = arith.mulf %66, %64 : vector<16x128xf32>
    %68 = arith.addf %63, %67 : vector<16x128xf32>
    %c0_50 = arith.constant 0 : index
    %c2_51 = arith.constant 2 : index
    %69 = memref.load %arg3[%c0_50, %c2_51] : memref<1x4xf32, #tpu.memory_space<smem>>
    %70 = vector.broadcast %69 : f32 to vector<16x128xf32>
    %71 = arith.addf %68, %70 : vector<16x128xf32>
    %cst_52 = arith.constant 0.000000e+00 : f32
    %72 = vector.broadcast %cst_52 : f32 to vector<16x128xf32>
    %73 = arith.maximumf %71, %72 : vector<16x128xf32>
    %c0_53 = arith.constant 0 : index
    %c256_54 = arith.constant 256 : index
    %74 = vector.load %arg25[%c0_53, %c256_54] : memref<16x512xf32, #tpu.memory_space<vmem>>, vector<16x128xf32>
    tpu.vector_store %arg25[%c0_53, %c256_54], %73 {strides = array<i32>} : memref<16x512xf32, #tpu.memory_space<vmem>>, vector<16x128xf32>,
    %c0_55 = arith.constant 0 : index
    %c0_56 = arith.constant 0 : index
    %75 = vector.load %arg1[%c0_55, %c0_56] : memref<16x1024xf32, #tpu.memory_space<vmem>>, vector<16x128xf32>
    %c3_57 = arith.constant 3 : index
    %c0_58 = arith.constant 0 : index
    %76 = memref.load %arg2[%c3_57, %c0_58] : memref<4x4xf32, #tpu.memory_space<smem>>
    %77 = vector.broadcast %76 : f32 to vector<16x128xf32>
    %78 = arith.mulf %77, %75 : vector<16x128xf32>
    %c0_59 = arith.constant 0 : index
    %c128_60 = arith.constant 128 : index
    %79 = vector.load %arg1[%c0_59, %c128_60] : memref<16x1024xf32, #tpu.memory_space<vmem>>, vector<16x128xf32>
    %c3_61 = arith.constant 3 : index
    %c1_62 = arith.constant 1 : index
    %80 = memref.load %arg2[%c3_61, %c1_62] : memref<4x4xf32, #tpu.memory_space<smem>>
    %81 = vector.broadcast %80 : f32 to vector<16x128xf32>
    %82 = arith.mulf %81, %79 : vector<16x128xf32>
    %83 = arith.addf %78, %82 : vector<16x128xf32>
    %c0_63 = arith.constant 0 : index
    %c256_64 = arith.constant 256 : index
    %84 = vector.load %arg1[%c0_63, %c256_64] : memref<16x1024xf32, #tpu.memory_space<vmem>>, vector<16x128xf32>
    %c3_65 = arith.constant 3 : index
    %c2_66 = arith.constant 2 : index
    %85 = memref.load %arg2[%c3_65, %c2_66] : memref<4x4xf32, #tpu.memory_space<smem>>
    %86 = vector.broadcast %85 : f32 to vector<16x128xf32>
    %87 = arith.mulf %86, %84 : vector<16x128xf32>
    %88 = arith.addf %83, %87 : vector<16x128xf32>
    %c0_67 = arith.constant 0 : index
    %c384_68 = arith.constant 384 : index
    %89 = vector.load %arg1[%c0_67, %c384_68] : memref<16x1024xf32, #tpu.memory_space<vmem>>, vector<16x128xf32>
    %c3_69 = arith.constant 3 : index
    %c3_70 = arith.constant 3 : index
    %90 = memref.load %arg2[%c3_69, %c3_70] : memref<4x4xf32, #tpu.memory_space<smem>>
    %91 = vector.broadcast %90 : f32 to vector<16x128xf32>
    %92 = arith.mulf %91, %89 : vector<16x128xf32>
    %93 = arith.addf %88, %92 : vector<16x128xf32>
    %c0_71 = arith.constant 0 : index
    %c3_72 = arith.constant 3 : index
    %94 = memref.load %arg3[%c0_71, %c3_72] : memref<1x4xf32, #tpu.memory_space<smem>>
    %95 = vector.broadcast %94 : f32 to vector<16x128xf32>
    %96 = arith.addf %93, %95 : vector<16x128xf32>
    %cst_73 = arith.constant 0.000000e+00 : f32
    %97 = vector.broadcast %cst_73 : f32 to vector<16x128xf32>
    %98 = arith.maximumf %96, %97 : vector<16x128xf32>
    %c0_74 = arith.constant 0 : index
    %c384_75 = arith.constant 384 : index
    %99 = vector.load %arg25[%c0_74, %c384_75] : memref<16x512xf32, #tpu.memory_space<vmem>>, vector<16x128xf32>
    tpu.vector_store %arg25[%c0_74, %c384_75], %98 {strides = array<i32>} : memref<16x512xf32, #tpu.memory_space<vmem>>, vector<16x128xf32>,
    %c0_76 = arith.constant 0 : index
    %c0_77 = arith.constant 0 : index
    %100 = vector.load %arg25[%c0_76, %c0_77] : memref<16x512xf32, #tpu.memory_space<vmem>>, vector<16x512xf32>
    %101 = arith.truncf %100 : vector<16x512xf32> to vector<16x512xbf16>
    %c0_78 = arith.constant 0 : index
    %c0_79 = arith.constant 0 : index
    %102 = vector.load %arg4[%c0_78, %c0_79] : memref<512x128xbf16, #tpu.memory_space<vmem>>, vector<512x128xbf16>
    %cst_80 = arith.constant dense<0.000000e+00> : vector<16x128xf32>
    %103 = tpu.matmul %101, %102, %cst_80 {dimension_numbers = #tpu.dot_dimension_numbers<[1], [0], [0], [1], [0, 0, 1, 1], [], []>} : vector<16x512xbf16>, vector<512x128xbf16>, vector<16x128xf32> -> vector<16x128xf32>
    %c0_81 = arith.constant 0 : index
    %c0_82 = arith.constant 0 : index
    %104 = vector.load %arg5[%c0_81, %c0_82] : memref<1x128xf32, #tpu.memory_space<vmem>>, vector<1x128xf32>
    %105 = vector.broadcast %104 : vector<1x128xf32> to vector<16x128xf32>
    %106 = arith.addf %103, %105 : vector<16x128xf32>
    %cst_83 = arith.constant 0.000000e+00 : f32
    %107 = vector.broadcast %cst_83 : f32 to vector<16x128xf32>
    %108 = arith.maximumf %106, %107 : vector<16x128xf32>
    %c0_84 = arith.constant 0 : index
    %c512 = arith.constant 512 : index
    %109 = vector.load %arg1[%c0_84, %c512] : memref<16x1024xf32, #tpu.memory_space<vmem>>, vector<16x128xf32>
    %c0_85 = arith.constant 0 : index
    %c0_86 = arith.constant 0 : index
    %110 = memref.load %arg2[%c0_85, %c0_86] : memref<4x4xf32, #tpu.memory_space<smem>>
    %111 = vector.broadcast %110 : f32 to vector<16x128xf32>
    %112 = arith.mulf %111, %109 : vector<16x128xf32>
    %c0_87 = arith.constant 0 : index
    %c640 = arith.constant 640 : index
    %113 = vector.load %arg1[%c0_87, %c640] : memref<16x1024xf32, #tpu.memory_space<vmem>>, vector<16x128xf32>
    %c0_88 = arith.constant 0 : index
    %c1_89 = arith.constant 1 : index
    %114 = memref.load %arg2[%c0_88, %c1_89] : memref<4x4xf32, #tpu.memory_space<smem>>
    %115 = vector.broadcast %114 : f32 to vector<16x128xf32>
    %116 = arith.mulf %115, %113 : vector<16x128xf32>
    %117 = arith.addf %112, %116 : vector<16x128xf32>
    %c0_90 = arith.constant 0 : index
    %c768 = arith.constant 768 : index
    %118 = vector.load %arg1[%c0_90, %c768] : memref<16x1024xf32, #tpu.memory_space<vmem>>, vector<16x128xf32>
    %c0_91 = arith.constant 0 : index
    %c2_92 = arith.constant 2 : index
    %119 = memref.load %arg2[%c0_91, %c2_92] : memref<4x4xf32, #tpu.memory_space<smem>>
    %120 = vector.broadcast %119 : f32 to vector<16x128xf32>
    %121 = arith.mulf %120, %118 : vector<16x128xf32>
    %122 = arith.addf %117, %121 : vector<16x128xf32>
    %c0_93 = arith.constant 0 : index
    %c896 = arith.constant 896 : index
    %123 = vector.load %arg1[%c0_93, %c896] : memref<16x1024xf32, #tpu.memory_space<vmem>>, vector<16x128xf32>
    %c0_94 = arith.constant 0 : index
    %c3_95 = arith.constant 3 : index
    %124 = memref.load %arg2[%c0_94, %c3_95] : memref<4x4xf32, #tpu.memory_space<smem>>
    %125 = vector.broadcast %124 : f32 to vector<16x128xf32>
    %126 = arith.mulf %125, %123 : vector<16x128xf32>
    %127 = arith.addf %122, %126 : vector<16x128xf32>
    %c0_96 = arith.constant 0 : index
    %c0_97 = arith.constant 0 : index
    %128 = memref.load %arg3[%c0_96, %c0_97] : memref<1x4xf32, #tpu.memory_space<smem>>
    %129 = vector.broadcast %128 : f32 to vector<16x128xf32>
    %130 = arith.addf %127, %129 : vector<16x128xf32>
    %cst_98 = arith.constant 0.000000e+00 : f32
    %131 = vector.broadcast %cst_98 : f32 to vector<16x128xf32>
    %132 = arith.maximumf %130, %131 : vector<16x128xf32>
    %c0_99 = arith.constant 0 : index
    %c0_100 = arith.constant 0 : index
    %133 = vector.load %arg25[%c0_99, %c0_100] : memref<16x512xf32, #tpu.memory_space<vmem>>, vector<16x128xf32>
    tpu.vector_store %arg25[%c0_99, %c0_100], %132 {strides = array<i32>} : memref<16x512xf32, #tpu.memory_space<vmem>>, vector<16x128xf32>,
    %c0_101 = arith.constant 0 : index
    %c512_102 = arith.constant 512 : index
    %134 = vector.load %arg1[%c0_101, %c512_102] : memref<16x1024xf32, #tpu.memory_space<vmem>>, vector<16x128xf32>
    %c1_103 = arith.constant 1 : index
    %c0_104 = arith.constant 0 : index
    %135 = memref.load %arg2[%c1_103, %c0_104] : memref<4x4xf32, #tpu.memory_space<smem>>
    %136 = vector.broadcast %135 : f32 to vector<16x128xf32>
    %137 = arith.mulf %136, %134 : vector<16x128xf32>
    %c0_105 = arith.constant 0 : index
    %c640_106 = arith.constant 640 : index
    %138 = vector.load %arg1[%c0_105, %c640_106] : memref<16x1024xf32, #tpu.memory_space<vmem>>, vector<16x128xf32>
    %c1_107 = arith.constant 1 : index
    %c1_108 = arith.constant 1 : index
    %139 = memref.load %arg2[%c1_107, %c1_108] : memref<4x4xf32, #tpu.memory_space<smem>>
    %140 = vector.broadcast %139 : f32 to vector<16x128xf32>
    %141 = arith.mulf %140, %138 : vector<16x128xf32>
    %142 = arith.addf %137, %141 : vector<16x128xf32>
    %c0_109 = arith.constant 0 : index
    %c768_110 = arith.constant 768 : index
    %143 = vector.load %arg1[%c0_109, %c768_110] : memref<16x1024xf32, #tpu.memory_space<vmem>>, vector<16x128xf32>
    %c1_111 = arith.constant 1 : index
    %c2_112 = arith.constant 2 : index
    %144 = memref.load %arg2[%c1_111, %c2_112] : memref<4x4xf32, #tpu.memory_space<smem>>
    %145 = vector.broadcast %144 : f32 to vector<16x128xf32>
    %146 = arith.mulf %145, %143 : vector<16x128xf32>
    %147 = arith.addf %142, %146 : vector<16x128xf32>
    %c0_113 = arith.constant 0 : index
    %c896_114 = arith.constant 896 : index
    %148 = vector.load %arg1[%c0_113, %c896_114] : memref<16x1024xf32, #tpu.memory_space<vmem>>, vector<16x128xf32>
    %c1_115 = arith.constant 1 : index
    %c3_116 = arith.constant 3 : index
    %149 = memref.load %arg2[%c1_115, %c3_116] : memref<4x4xf32, #tpu.memory_space<smem>>
    %150 = vector.broadcast %149 : f32 to vector<16x128xf32>
    %151 = arith.mulf %150, %148 : vector<16x128xf32>
    %152 = arith.addf %147, %151 : vector<16x128xf32>
    %c0_117 = arith.constant 0 : index
    %c1_118 = arith.constant 1 : index
    %153 = memref.load %arg3[%c0_117, %c1_118] : memref<1x4xf32, #tpu.memory_space<smem>>
    %154 = vector.broadcast %153 : f32 to vector<16x128xf32>
    %155 = arith.addf %152, %154 : vector<16x128xf32>
    %cst_119 = arith.constant 0.000000e+00 : f32
    %156 = vector.broadcast %cst_119 : f32 to vector<16x128xf32>
    %157 = arith.maximumf %155, %156 : vector<16x128xf32>
    %c0_120 = arith.constant 0 : index
    %c128_121 = arith.constant 128 : index
    %158 = vector.load %arg25[%c0_120, %c128_121] : memref<16x512xf32, #tpu.memory_space<vmem>>, vector<16x128xf32>
    tpu.vector_store %arg25[%c0_120, %c128_121], %157 {strides = array<i32>} : memref<16x512xf32, #tpu.memory_space<vmem>>, vector<16x128xf32>,
    %c0_122 = arith.constant 0 : index
    %c512_123 = arith.constant 512 : index
    %159 = vector.load %arg1[%c0_122, %c512_123] : memref<16x1024xf32, #tpu.memory_space<vmem>>, vector<16x128xf32>
    %c2_124 = arith.constant 2 : index
    %c0_125 = arith.constant 0 : index
    %160 = memref.load %arg2[%c2_124, %c0_125] : memref<4x4xf32, #tpu.memory_space<smem>>
    %161 = vector.broadcast %160 : f32 to vector<16x128xf32>
    %162 = arith.mulf %161, %159 : vector<16x128xf32>
    %c0_126 = arith.constant 0 : index
    %c640_127 = arith.constant 640 : index
    %163 = vector.load %arg1[%c0_126, %c640_127] : memref<16x1024xf32, #tpu.memory_space<vmem>>, vector<16x128xf32>
    %c2_128 = arith.constant 2 : index
    %c1_129 = arith.constant 1 : index
    %164 = memref.load %arg2[%c2_128, %c1_129] : memref<4x4xf32, #tpu.memory_space<smem>>
    %165 = vector.broadcast %164 : f32 to vector<16x128xf32>
    %166 = arith.mulf %165, %163 : vector<16x128xf32>
    %167 = arith.addf %162, %166 : vector<16x128xf32>
    %c0_130 = arith.constant 0 : index
    %c768_131 = arith.constant 768 : index
    %168 = vector.load %arg1[%c0_130, %c768_131] : memref<16x1024xf32, #tpu.memory_space<vmem>>, vector<16x128xf32>
    %c2_132 = arith.constant 2 : index
    %c2_133 = arith.constant 2 : index
    %169 = memref.load %arg2[%c2_132, %c2_133] : memref<4x4xf32, #tpu.memory_space<smem>>
    %170 = vector.broadcast %169 : f32 to vector<16x128xf32>
    %171 = arith.mulf %170, %168 : vector<16x128xf32>
    %172 = arith.addf %167, %171 : vector<16x128xf32>
    %c0_134 = arith.constant 0 : index
    %c896_135 = arith.constant 896 : index
    %173 = vector.load %arg1[%c0_134, %c896_135] : memref<16x1024xf32, #tpu.memory_space<vmem>>, vector<16x128xf32>
    %c2_136 = arith.constant 2 : index
    %c3_137 = arith.constant 3 : index
    %174 = memref.load %arg2[%c2_136, %c3_137] : memref<4x4xf32, #tpu.memory_space<smem>>
    %175 = vector.broadcast %174 : f32 to vector<16x128xf32>
    %176 = arith.mulf %175, %173 : vector<16x128xf32>
    %177 = arith.addf %172, %176 : vector<16x128xf32>
    %c0_138 = arith.constant 0 : index
    %c2_139 = arith.constant 2 : index
    %178 = memref.load %arg3[%c0_138, %c2_139] : memref<1x4xf32, #tpu.memory_space<smem>>
    %179 = vector.broadcast %178 : f32 to vector<16x128xf32>
    %180 = arith.addf %177, %179 : vector<16x128xf32>
    %cst_140 = arith.constant 0.000000e+00 : f32
    %181 = vector.broadcast %cst_140 : f32 to vector<16x128xf32>
    %182 = arith.maximumf %180, %181 : vector<16x128xf32>
    %c0_141 = arith.constant 0 : index
    %c256_142 = arith.constant 256 : index
    %183 = vector.load %arg25[%c0_141, %c256_142] : memref<16x512xf32, #tpu.memory_space<vmem>>, vector<16x128xf32>
    tpu.vector_store %arg25[%c0_141, %c256_142], %182 {strides = array<i32>} : memref<16x512xf32, #tpu.memory_space<vmem>>, vector<16x128xf32>,
    %c0_143 = arith.constant 0 : index
    %c512_144 = arith.constant 512 : index
    %184 = vector.load %arg1[%c0_143, %c512_144] : memref<16x1024xf32, #tpu.memory_space<vmem>>, vector<16x128xf32>
    %c3_145 = arith.constant 3 : index
    %c0_146 = arith.constant 0 : index
    %185 = memref.load %arg2[%c3_145, %c0_146] : memref<4x4xf32, #tpu.memory_space<smem>>
    %186 = vector.broadcast %185 : f32 to vector<16x128xf32>
    %187 = arith.mulf %186, %184 : vector<16x128xf32>
    %c0_147 = arith.constant 0 : index
    %c640_148 = arith.constant 640 : index
    %188 = vector.load %arg1[%c0_147, %c640_148] : memref<16x1024xf32, #tpu.memory_space<vmem>>, vector<16x128xf32>
    %c3_149 = arith.constant 3 : index
    %c1_150 = arith.constant 1 : index
    %189 = memref.load %arg2[%c3_149, %c1_150] : memref<4x4xf32, #tpu.memory_space<smem>>
    %190 = vector.broadcast %189 : f32 to vector<16x128xf32>
    %191 = arith.mulf %190, %188 : vector<16x128xf32>
    %192 = arith.addf %187, %191 : vector<16x128xf32>
    %c0_151 = arith.constant 0 : index
    %c768_152 = arith.constant 768 : index
    %193 = vector.load %arg1[%c0_151, %c768_152] : memref<16x1024xf32, #tpu.memory_space<vmem>>, vector<16x128xf32>
    %c3_153 = arith.constant 3 : index
    %c2_154 = arith.constant 2 : index
    %194 = memref.load %arg2[%c3_153, %c2_154] : memref<4x4xf32, #tpu.memory_space<smem>>
    %195 = vector.broadcast %194 : f32 to vector<16x128xf32>
    %196 = arith.mulf %195, %193 : vector<16x128xf32>
    %197 = arith.addf %192, %196 : vector<16x128xf32>
    %c0_155 = arith.constant 0 : index
    %c896_156 = arith.constant 896 : index
    %198 = vector.load %arg1[%c0_155, %c896_156] : memref<16x1024xf32, #tpu.memory_space<vmem>>, vector<16x128xf32>
    %c3_157 = arith.constant 3 : index
    %c3_158 = arith.constant 3 : index
    %199 = memref.load %arg2[%c3_157, %c3_158] : memref<4x4xf32, #tpu.memory_space<smem>>
    %200 = vector.broadcast %199 : f32 to vector<16x128xf32>
    %201 = arith.mulf %200, %198 : vector<16x128xf32>
    %202 = arith.addf %197, %201 : vector<16x128xf32>
    %c0_159 = arith.constant 0 : index
    %c3_160 = arith.constant 3 : index
    %203 = memref.load %arg3[%c0_159, %c3_160] : memref<1x4xf32, #tpu.memory_space<smem>>
    %204 = vector.broadcast %203 : f32 to vector<16x128xf32>
    %205 = arith.addf %202, %204 : vector<16x128xf32>
    %cst_161 = arith.constant 0.000000e+00 : f32
    %206 = vector.broadcast %cst_161 : f32 to vector<16x128xf32>
    %207 = arith.maximumf %205, %206 : vector<16x128xf32>
    %c0_162 = arith.constant 0 : index
    %c384_163 = arith.constant 384 : index
    %208 = vector.load %arg25[%c0_162, %c384_163] : memref<16x512xf32, #tpu.memory_space<vmem>>, vector<16x128xf32>
    tpu.vector_store %arg25[%c0_162, %c384_163], %207 {strides = array<i32>} : memref<16x512xf32, #tpu.memory_space<vmem>>, vector<16x128xf32>,
    %c0_164 = arith.constant 0 : index
    %c0_165 = arith.constant 0 : index
    %209 = vector.load %arg25[%c0_164, %c0_165] : memref<16x512xf32, #tpu.memory_space<vmem>>, vector<16x512xf32>
    %210 = arith.truncf %209 : vector<16x512xf32> to vector<16x512xbf16>
    %c0_166 = arith.constant 0 : index
    %c0_167 = arith.constant 0 : index
    %211 = vector.load %arg4[%c0_166, %c0_167] : memref<512x128xbf16, #tpu.memory_space<vmem>>, vector<512x128xbf16>
    %cst_168 = arith.constant dense<0.000000e+00> : vector<16x128xf32>
    %212 = tpu.matmul %210, %211, %cst_168 {dimension_numbers = #tpu.dot_dimension_numbers<[1], [0], [0], [1], [0, 0, 1, 1], [], []>} : vector<16x512xbf16>, vector<512x128xbf16>, vector<16x128xf32> -> vector<16x128xf32>
    %c0_169 = arith.constant 0 : index
    %c0_170 = arith.constant 0 : index
    %213 = vector.load %arg5[%c0_169, %c0_170] : memref<1x128xf32, #tpu.memory_space<vmem>>, vector<1x128xf32>
    %214 = vector.broadcast %213 : vector<1x128xf32> to vector<16x128xf32>
    %215 = arith.addf %212, %214 : vector<16x128xf32>
    %cst_171 = arith.constant 0.000000e+00 : f32
    %216 = vector.broadcast %cst_171 : f32 to vector<16x128xf32>
    %217 = arith.maximumf %215, %216 : vector<16x128xf32>
    %218 = tpu.concatenate %108, %217 in 1 : vector<16x128xf32>, vector<16x128xf32> -> vector<16x256xf32>
    %219 = arith.truncf %218 : vector<16x256xf32> to vector<16x256xbf16>
    %c0_172 = arith.constant 0 : index
    %c0_173 = arith.constant 0 : index
    %220 = vector.load %arg6[%c0_172, %c0_173] : memref<256x256xbf16, #tpu.memory_space<vmem>>, vector<256x256xbf16>
    %cst_174 = arith.constant dense<0.000000e+00> : vector<16x256xf32>
    %221 = tpu.matmul %219, %220, %cst_174 {dimension_numbers = #tpu.dot_dimension_numbers<[1], [0], [0], [1], [0, 0, 1, 1], [], []>} : vector<16x256xbf16>, vector<256x256xbf16>, vector<16x256xf32> -> vector<16x256xf32>
    %c0_175 = arith.constant 0 : index
    %c0_176 = arith.constant 0 : index
    %222 = vector.load %arg7[%c0_175, %c0_176] : memref<1x256xf32, #tpu.memory_space<vmem>>, vector<1x256xf32>
    %223 = vector.broadcast %222 : vector<1x256xf32> to vector<16x256xf32>
    %224 = arith.addf %221, %223 : vector<16x256xf32>
    %cst_177 = arith.constant 0.000000e+00 : f32
    %225 = vector.broadcast %cst_177 : f32 to vector<16x256xf32>
    %226 = arith.maximumf %224, %225 : vector<16x256xf32>
    %227 = arith.truncf %226 : vector<16x256xf32> to vector<16x256xbf16>
    %c0_178 = arith.constant 0 : index
    %c0_179 = arith.constant 0 : index
    %228 = vector.load %arg8[%c0_178, %c0_179] : memref<256x256xbf16, #tpu.memory_space<vmem>>, vector<256x256xbf16>
    %cst_180 = arith.constant dense<0.000000e+00> : vector<16x256xf32>
    %229 = tpu.matmul %227, %228, %cst_180 {dimension_numbers = #tpu.dot_dimension_numbers<[1], [0], [0], [1], [0, 0, 1, 1], [], []>} : vector<16x256xbf16>, vector<256x256xbf16>, vector<16x256xf32> -> vector<16x256xf32>
    %c0_181 = arith.constant 0 : index
    %c0_182 = arith.constant 0 : index
    %230 = vector.load %arg9[%c0_181, %c0_182] : memref<1x256xf32, #tpu.memory_space<vmem>>, vector<1x256xf32>
    %231 = vector.broadcast %230 : vector<1x256xf32> to vector<16x256xf32>
    %232 = arith.addf %229, %231 : vector<16x256xf32>
    %cst_183 = arith.constant 0.000000e+00 : f32
    %233 = vector.broadcast %cst_183 : f32 to vector<16x256xf32>
    %234 = arith.maximumf %232, %233 : vector<16x256xf32>
    %235 = arith.truncf %234 : vector<16x256xf32> to vector<16x256xbf16>
    %c0_184 = arith.constant 0 : index
    %c0_185 = arith.constant 0 : index
    %236 = vector.load %arg10[%c0_184, %c0_185] : memref<256x256xbf16, #tpu.memory_space<vmem>>, vector<256x256xbf16>
    %cst_186 = arith.constant dense<0.000000e+00> : vector<16x256xf32>
    %237 = tpu.matmul %235, %236, %cst_186 {dimension_numbers = #tpu.dot_dimension_numbers<[1], [0], [0], [1], [0, 0, 1, 1], [], []>} : vector<16x256xbf16>, vector<256x256xbf16>, vector<16x256xf32> -> vector<16x256xf32>
    %c0_187 = arith.constant 0 : index
    %c0_188 = arith.constant 0 : index
    %238 = vector.load %arg11[%c0_187, %c0_188] : memref<1x256xf32, #tpu.memory_space<vmem>>, vector<1x256xf32>
    %239 = vector.broadcast %238 : vector<1x256xf32> to vector<16x256xf32>
    %240 = arith.addf %237, %239 : vector<16x256xf32>
    %cst_189 = arith.constant 0.000000e+00 : f32
    %241 = vector.broadcast %cst_189 : f32 to vector<16x256xf32>
    %242 = arith.maximumf %240, %241 : vector<16x256xf32>
    %c0_190 = arith.constant 0 : index
    %c0_191 = arith.constant 0 : index
    %243 = vector.load %arg22[%c0_190, %c0_191] : memref<1x256xf32, #tpu.memory_space<vmem>>, vector<1x256xf32>
    %244 = vector.broadcast %243 : vector<1x256xf32> to vector<16x256xf32>
    %245 = arith.mulf %242, %244 : vector<16x256xf32>
    %c0_192 = arith.constant 0 : index
    %c0_193 = arith.constant 0 : index
    %246 = vector.load %arg23[%c0_192, %c0_193] : memref<1x256xf32, #tpu.memory_space<vmem>>, vector<1x256xf32>
    %247 = vector.broadcast %246 : vector<1x256xf32> to vector<16x256xf32>
    %248 = arith.addf %245, %247 : vector<16x256xf32>
    %249 = arith.truncf %248 : vector<16x256xf32> to vector<16x256xbf16>
    %c0_194 = arith.constant 0 : index
    %c0_195 = arith.constant 0 : index
    %250 = vector.load %arg12[%c0_194, %c0_195] : memref<256x256xbf16, #tpu.memory_space<vmem>>, vector<256x256xbf16>
    %cst_196 = arith.constant dense<0.000000e+00> : vector<16x256xf32>
    %251 = tpu.matmul %249, %250, %cst_196 {dimension_numbers = #tpu.dot_dimension_numbers<[1], [0], [0], [1], [0, 0, 1, 1], [], []>} : vector<16x256xbf16>, vector<256x256xbf16>, vector<16x256xf32> -> vector<16x256xf32>
    %c0_197 = arith.constant 0 : index
    %c0_198 = arith.constant 0 : index
    %252 = vector.load %arg13[%c0_197, %c0_198] : memref<1x256xf32, #tpu.memory_space<vmem>>, vector<1x256xf32>
    %253 = vector.broadcast %252 : vector<1x256xf32> to vector<16x256xf32>
    %254 = arith.addf %251, %253 : vector<16x256xf32>
    %cst_199 = arith.constant 0.000000e+00 : f32
    %255 = vector.broadcast %cst_199 : f32 to vector<16x256xf32>
    %256 = arith.maximumf %254, %255 : vector<16x256xf32>
    %257 = arith.truncf %256 : vector<16x256xf32> to vector<16x256xbf16>
    %c0_200 = arith.constant 0 : index
    %c0_201 = arith.constant 0 : index
    %258 = vector.load %arg14[%c0_200, %c0_201] : memref<256x256xbf16, #tpu.memory_space<vmem>>, vector<256x256xbf16>
    %cst_202 = arith.constant dense<0.000000e+00> : vector<16x256xf32>
    %259 = tpu.matmul %257, %258, %cst_202 {dimension_numbers = #tpu.dot_dimension_numbers<[1], [0], [0], [1], [0, 0, 1, 1], [], []>} : vector<16x256xbf16>, vector<256x256xbf16>, vector<16x256xf32> -> vector<16x256xf32>
    %c0_203 = arith.constant 0 : index
    %c0_204 = arith.constant 0 : index
    %260 = vector.load %arg15[%c0_203, %c0_204] : memref<1x256xf32, #tpu.memory_space<vmem>>, vector<1x256xf32>
    %261 = vector.broadcast %260 : vector<1x256xf32> to vector<16x256xf32>
    %262 = arith.addf %259, %261 : vector<16x256xf32>
    %cst_205 = arith.constant 0.000000e+00 : f32
    %263 = vector.broadcast %cst_205 : f32 to vector<16x256xf32>
    %264 = arith.maximumf %262, %263 : vector<16x256xf32>
    %265 = arith.truncf %264 : vector<16x256xf32> to vector<16x256xbf16>
    %c0_206 = arith.constant 0 : index
    %c0_207 = arith.constant 0 : index
    %266 = vector.load %arg16[%c0_206, %c0_207] : memref<256x256xbf16, #tpu.memory_space<vmem>>, vector<256x256xbf16>
    %cst_208 = arith.constant dense<0.000000e+00> : vector<16x256xf32>
    %267 = tpu.matmul %265, %266, %cst_208 {dimension_numbers = #tpu.dot_dimension_numbers<[1], [0], [0], [1], [0, 0, 1, 1], [], []>} : vector<16x256xbf16>, vector<256x256xbf16>, vector<16x256xf32> -> vector<16x256xf32>
    %c0_209 = arith.constant 0 : index
    %c0_210 = arith.constant 0 : index
    %268 = vector.load %arg17[%c0_209, %c0_210] : memref<1x256xf32, #tpu.memory_space<vmem>>, vector<1x256xf32>
    %269 = vector.broadcast %268 : vector<1x256xf32> to vector<16x256xf32>
    %270 = arith.addf %267, %269 : vector<16x256xf32>
    %cst_211 = arith.constant 0.000000e+00 : f32
    %271 = vector.broadcast %cst_211 : f32 to vector<16x256xf32>
    %272 = arith.maximumf %270, %271 : vector<16x256xf32>
    %c0_212 = arith.constant 0 : index
    %c0_213 = arith.constant 0 : index
    %273 = vector.load %arg22[%c0_212, %c0_213] : memref<1x256xf32, #tpu.memory_space<vmem>>, vector<1x256xf32>
    %274 = vector.broadcast %273 : vector<1x256xf32> to vector<16x256xf32>
    %275 = arith.mulf %272, %274 : vector<16x256xf32>
    %c0_214 = arith.constant 0 : index
    %c0_215 = arith.constant 0 : index
    %276 = vector.load %arg23[%c0_214, %c0_215] : memref<1x256xf32, #tpu.memory_space<vmem>>, vector<1x256xf32>
    %277 = vector.broadcast %276 : vector<1x256xf32> to vector<16x256xf32>
    %278 = arith.addf %275, %277 : vector<16x256xf32>
    %279 = arith.truncf %278 : vector<16x256xf32> to vector<16x256xbf16>
    %c0_216 = arith.constant 0 : index
    %c0_217 = arith.constant 0 : index
    %280 = vector.load %arg18[%c0_216, %c0_217] : memref<256x256xbf16, #tpu.memory_space<vmem>>, vector<256x256xbf16>
    %cst_218 = arith.constant dense<0.000000e+00> : vector<16x256xf32>
    %281 = tpu.matmul %279, %280, %cst_218 {dimension_numbers = #tpu.dot_dimension_numbers<[1], [0], [0], [1], [0, 0, 1, 1], [], []>} : vector<16x256xbf16>, vector<256x256xbf16>, vector<16x256xf32> -> vector<16x256xf32>
    %c0_219 = arith.constant 0 : index
    %c0_220 = arith.constant 0 : index
    %282 = vector.load %arg19[%c0_219, %c0_220] : memref<1x256xf32, #tpu.memory_space<vmem>>, vector<1x256xf32>
    %283 = vector.broadcast %282 : vector<1x256xf32> to vector<16x256xf32>
    %284 = arith.addf %281, %283 : vector<16x256xf32>
    %cst_221 = arith.constant 0.000000e+00 : f32
    %285 = vector.broadcast %cst_221 : f32 to vector<16x256xf32>
    %286 = arith.maximumf %284, %285 : vector<16x256xf32>
    %287 = arith.truncf %286 : vector<16x256xf32> to vector<16x256xbf16>
    %c0_222 = arith.constant 0 : index
    %c0_223 = arith.constant 0 : index
    %288 = vector.load %arg20[%c0_222, %c0_223] : memref<256x128xbf16, #tpu.memory_space<vmem>>, vector<256x128xbf16>
    %cst_224 = arith.constant dense<0.000000e+00> : vector<16x128xf32>
    %289 = tpu.matmul %287, %288, %cst_224 {dimension_numbers = #tpu.dot_dimension_numbers<[1], [0], [0], [1], [0, 0, 1, 1], [], []>} : vector<16x256xbf16>, vector<256x128xbf16>, vector<16x128xf32> -> vector<16x128xf32>
    %c0_225 = arith.constant 0 : index
    %c0_226 = arith.constant 0 : index
    %290 = vector.load %arg21[%c0_225, %c0_226] : memref<1x128xf32, #tpu.memory_space<vmem>>, vector<1x128xf32>
    %291 = vector.broadcast %290 : vector<1x128xf32> to vector<16x128xf32>
    %292 = arith.addf %289, %291 : vector<16x128xf32>
    %293 = arith.negf %292 : vector<16x128xf32>
    %294 = math.exp %293 : vector<16x128xf32>
    %cst_227 = arith.constant 1.000000e+00 : f32
    %295 = vector.broadcast %cst_227 : f32 to vector<16x128xf32>
    %296 = arith.addf %295, %294 : vector<16x128xf32>
    %297 = arith.divf %295, %296 : vector<16x128xf32>
    %c0_228 = arith.constant 0 : index
    %c0_229 = arith.constant 0 : index
    %298 = vector.load %arg24[%c0_228, %c0_229] : memref<16x128xf32, #tpu.memory_space<vmem>>, vector<16x128xf32>
    tpu.vector_store %arg24[%c0_228, %c0_229], %297 {strides = array<i32>} : memref<16x128xf32, #tpu.memory_space<vmem>>, vector<16x128xf32>,
    return
  }
  func.func @transform_0(%arg0: i32) -> (i32, i32) {
    %c0_i32 = arith.constant 0 : i32
    %c0_i32_0 = arith.constant 0 : i32
    return %arg0, %c0_i32 : i32, i32
  }
  func.func @transform_1(%arg0: i32) -> (i32, i32) {
    %c0_i32 = arith.constant 0 : i32
    %c0_i32_0 = arith.constant 0 : i32
    %c0_i32_1 = arith.constant 0 : i32
    return %c0_i32, %c0_i32_0 : i32, i32
  }
  func.func @transform_2(%arg0: i32) -> (i32, i32) {
    %c0_i32 = arith.constant 0 : i32
    %c0_i32_0 = arith.constant 0 : i32
    %c0_i32_1 = arith.constant 0 : i32
    return %c0_i32, %c0_i32_0 : i32, i32
  }
  func.func @transform_3(%arg0: i32) -> (i32, i32) {
    %c0_i32 = arith.constant 0 : i32
    %c0_i32_0 = arith.constant 0 : i32
    %c0_i32_1 = arith.constant 0 : i32
    return %c0_i32, %c0_i32_0 : i32, i32
  }
  func.func @transform_4(%arg0: i32) -> (i32, i32) {
    %c0_i32 = arith.constant 0 : i32
    %c0_i32_0 = arith.constant 0 : i32
    %c0_i32_1 = arith.constant 0 : i32
    return %c0_i32, %c0_i32_0 : i32, i32
  }
  func.func @transform_5(%arg0: i32) -> (i32, i32) {
    %c0_i32 = arith.constant 0 : i32
    %c0_i32_0 = arith.constant 0 : i32
    %c0_i32_1 = arith.constant 0 : i32
    return %c0_i32, %c0_i32_0 : i32, i32
  }
  func.func @transform_6(%arg0: i32) -> (i32, i32) {
    %c0_i32 = arith.constant 0 : i32
    %c0_i32_0 = arith.constant 0 : i32
    %c0_i32_1 = arith.constant 0 : i32
    return %c0_i32, %c0_i32_0 : i32, i32
  }
  func.func @transform_7(%arg0: i32) -> (i32, i32) {
    %c0_i32 = arith.constant 0 : i32
    %c0_i32_0 = arith.constant 0 : i32
    %c0_i32_1 = arith.constant 0 : i32
    return %c0_i32, %c0_i32_0 : i32, i32
  }
  func.func @transform_8(%arg0: i32) -> (i32, i32) {
    %c0_i32 = arith.constant 0 : i32
    %c0_i32_0 = arith.constant 0 : i32
    %c0_i32_1 = arith.constant 0 : i32
    return %c0_i32, %c0_i32_0 : i32, i32
  }
  func.func @transform_9(%arg0: i32) -> (i32, i32) {
    %c0_i32 = arith.constant 0 : i32
    %c0_i32_0 = arith.constant 0 : i32
    %c0_i32_1 = arith.constant 0 : i32
    return %c0_i32, %c0_i32_0 : i32, i32
  }
  func.func @transform_10(%arg0: i32) -> (i32, i32) {
    %c0_i32 = arith.constant 0 : i32
    %c0_i32_0 = arith.constant 0 : i32
    %c0_i32_1 = arith.constant 0 : i32
    return %c0_i32, %c0_i32_0 : i32, i32
  }
  func.func @transform_11(%arg0: i32) -> (i32, i32) {
    %c0_i32 = arith.constant 0 : i32
    %c0_i32_0 = arith.constant 0 : i32
    %c0_i32_1 = arith.constant 0 : i32
    return %c0_i32, %c0_i32_0 : i32, i32
  }
  func.func @transform_12(%arg0: i32) -> (i32, i32) {
    %c0_i32 = arith.constant 0 : i32
    %c0_i32_0 = arith.constant 0 : i32
    %c0_i32_1 = arith.constant 0 : i32
    return %c0_i32, %c0_i32_0 : i32, i32
  }
  func.func @transform_13(%arg0: i32) -> (i32, i32) {
    %c0_i32 = arith.constant 0 : i32
    %c0_i32_0 = arith.constant 0 : i32
    %c0_i32_1 = arith.constant 0 : i32
    return %c0_i32, %c0_i32_0 : i32, i32
  }
  func.func @transform_14(%arg0: i32) -> (i32, i32) {
    %c0_i32 = arith.constant 0 : i32
    %c0_i32_0 = arith.constant 0 : i32
    %c0_i32_1 = arith.constant 0 : i32
    return %c0_i32, %c0_i32_0 : i32, i32
  }
  func.func @transform_15(%arg0: i32) -> (i32, i32) {
    %c0_i32 = arith.constant 0 : i32
    %c0_i32_0 = arith.constant 0 : i32
    %c0_i32_1 = arith.constant 0 : i32
    return %c0_i32, %c0_i32_0 : i32, i32
  }
  func.func @transform_16(%arg0: i32) -> (i32, i32) {
    %c0_i32 = arith.constant 0 : i32
    %c0_i32_0 = arith.constant 0 : i32
    %c0_i32_1 = arith.constant 0 : i32
    return %c0_i32, %c0_i32_0 : i32, i32
  }
  func.func @transform_17(%arg0: i32) -> (i32, i32) {
    %c0_i32 = arith.constant 0 : i32
    %c0_i32_0 = arith.constant 0 : i32
    %c0_i32_1 = arith.constant 0 : i32
    return %c0_i32, %c0_i32_0 : i32, i32
  }
  func.func @transform_18(%arg0: i32) -> (i32, i32) {
    %c0_i32 = arith.constant 0 : i32
    %c0_i32_0 = arith.constant 0 : i32
    %c0_i32_1 = arith.constant 0 : i32
    return %c0_i32, %c0_i32_0 : i32, i32
  }
  func.func @transform_19(%arg0: i32) -> (i32, i32) {
    %c0_i32 = arith.constant 0 : i32
    %c0_i32_0 = arith.constant 0 : i32
    %c0_i32_1 = arith.constant 0 : i32
    return %c0_i32, %c0_i32_0 : i32, i32
  }
  func.func @transform_20(%arg0: i32) -> (i32, i32) {
    %c0_i32 = arith.constant 0 : i32
    %c0_i32_0 = arith.constant 0 : i32
    %c0_i32_1 = arith.constant 0 : i32
    return %c0_i32, %c0_i32_0 : i32, i32
  }
  func.func @transform_21(%arg0: i32) -> (i32, i32) {
    %c0_i32 = arith.constant 0 : i32
    %c0_i32_0 = arith.constant 0 : i32
    %c0_i32_1 = arith.constant 0 : i32
    return %c0_i32, %c0_i32_0 : i32, i32
  }
  func.func @transform_22(%arg0: i32) -> (i32, i32) {
    %c0_i32 = arith.constant 0 : i32
    %c0_i32_0 = arith.constant 0 : i32
    %c0_i32_1 = arith.constant 0 : i32
    return %c0_i32, %c0_i32_0 : i32, i32
  }
  func.func @transform_23(%arg0: i32) -> (i32, i32) {
    %c0_i32 = arith.constant 0 : i32
    %c0_i32_0 = arith.constant 0 : i32
    return %arg0, %c0_i32 : i32, i32
  }
}

</mosaic_0001>

<llo_original>
// kernel: tpu_custom_call.1
$region0: #{tpu_custom_call.1}
  #allocation0 [shape = 'u32[]', space=smem, size = 0x4, offset = 0x4, fixed_abs, tag = 'smem constant byte address 0x4 - core index']
  #allocation1 [shape = 'u32[72,128]{1,0:T(1,128)}', space=vmem, size = 0x9000, scoped, tag = 'internal scratch']
  #allocation2 [shape = 'f32[16,512]{1,0:T(8,128)}', space=vmem, size = 0x8000, scoped, tag = 'scratch operand']
  %s0 = inlined_call_operand.hbm [shape: f32[16,1024], index: 0, kind: input, shape index: {}]
  %s1 = inlined_call_operand.hbm [shape: f32[4,4], index: 1, kind: input, shape index: {}]
  %s2 = inlined_call_operand.hbm [shape: f32[1,4], index: 2, kind: input, shape index: {}]
  %s3 = inlined_call_operand.hbm [shape: bf16[512,128], index: 3, kind: input, shape index: {}]
  %s4 = inlined_call_operand.hbm [shape: f32[1,128], index: 4, kind: input, shape index: {}]
  %s5 = inlined_call_operand.hbm [shape: bf16[256,256], index: 5, kind: input, shape index: {}]
  %s6 = inlined_call_operand.vmem [shape: f32[1,256], index: 6, kind: input, shape index: {}]
  %s7 = inlined_call_operand.hbm [shape: bf16[256,256], index: 7, kind: input, shape index: {}]
  %s8 = inlined_call_operand.vmem [shape: f32[1,256], index: 8, kind: input, shape index: {}]
  %s9 = inlined_call_operand.hbm [shape: bf16[256,256], index: 9, kind: input, shape index: {}]
  %s10 = inlined_call_operand.vmem [shape: f32[1,256], index: 10, kind: input, shape index: {}]
  %s11 = inlined_call_operand.hbm [shape: bf16[256,256], index: 11, kind: input, shape index: {}]
  %s12 = inlined_call_operand.vmem [shape: f32[1,256], index: 12, kind: input, shape index: {}]
  %s13 = inlined_call_operand.hbm [shape: bf16[256,256], index: 13, kind: input, shape index: {}]
  %s14 = inlined_call_operand.vmem [shape: f32[1,256], index: 14, kind: input, shape index: {}]
  %s15 = inlined_call_operand.hbm [shape: bf16[256,256], index: 15, kind: input, shape index: {}]
  %s16 = inlined_call_operand.vmem [shape: f32[1,256], index: 16, kind: input, shape index: {}]
  %s17 = inlined_call_operand.hbm [shape: bf16[256,256], index: 17, kind: input, shape index: {}]
  %s18 = inlined_call_operand.vmem [shape: f32[1,256], index: 18, kind: input, shape index: {}]
  %s19 = inlined_call_operand.hbm [shape: bf16[256,128], index: 19, kind: input, shape index: {}]
  %s20 = inlined_call_operand.vmem [shape: f32[1,128], index: 20, kind: input, shape index: {}]
  %s21 = inlined_call_operand.vmem [shape: f32[1,256], index: 21, kind: input, shape index: {}]
  %s22 = inlined_call_operand.vmem [shape: f32[1,256], index: 22, kind: input, shape index: {}]
  %s23 = inlined_call_operand.hbm [shape: f32[16,128], index: 23, kind: output, shape index: {}]
  %s24 = sld [smem:[#allocation0]]
  $region154: #{tpu_custom_call.1} parent=0
    _
  %s26 = ssub.s32 1, %s24
  %s27 = scalar_select 0, %s26, %s24
  $region1: #{tpu_custom_call.1} parent=0
    #allocation3 [shape = 'u8[65536]{0}', space=vmem, size = 0x10000, scoped, tag = 'input window, operand 0, single buffered']
    #allocation4 [shape = 's32[1]{0}', space=sflag, size = 0x4, scoped, tag = 'scoped memory for tpu_custom_call.1']
    #allocation5 [shape = 's32[1]{0}', space=sflag, size = 0x4, scoped, tag = 'scoped memory for tpu_custom_call.1']
    #allocation6 [shape = 's32[1]{0}', space=sflag, size = 0x4, scoped, tag = 'scoped memory for tpu_custom_call.1']
    #allocation7 [shape = 'u8[2048]{0}', space=smem, size = 0x800, scoped, tag = 'input window, operand 1, single buffered']
    #allocation8 [shape = 'u8[512]{0}', space=smem, size = 0x200, scoped, tag = 'input window, operand 2, single buffered']
    #allocation9 [shape = 's32[1]{0}', space=sflag, size = 0x4, scoped, tag = 'scoped memory for tpu_custom_call.1']
    #allocation10 [shape = 'u8[131072]{0}', space=vmem, size = 0x20000, scoped, tag = 'input window, operand 3, single buffered']
    #allocation11 [shape = 's32[1]{0}', space=sflag, size = 0x4, scoped, tag = 'scoped memory for tpu_custom_call.1']
    #allocation12 [shape = 'u8[512]{0}', space=vmem, size = 0x400, scoped, tag = 'input window, operand 4, single buffered']
    #allocation13 [shape = 'u8[131072]{0}', space=vmem, size = 0x20000, scoped, tag = 'input window, operand 5, single buffered']
    #allocation14 [shape = 's32[1]{0}', space=sflag, size = 0x4, scoped, tag = 'scoped memory for tpu_custom_call.1']
    #allocation15 [shape = 'u8[131072]{0}', space=vmem, size = 0x20000, scoped, tag = 'input window, operand 7, single buffered']
    #allocation16 [shape = 'u8[131072]{0}', space=vmem, size = 0x20000, scoped, tag = 'input window, operand 9, single buffered']
    #allocation17 [shape = 's32[1]{0}', space=sflag, size = 0x4, scoped, tag = 'scoped memory for tpu_custom_call.1']
    #allocation18 [shape = 'u8[131072]{0}', space=vmem, size = 0x20000, scoped, tag = 'input window, operand 11, single buffered']
    #allocation19 [shape = 'u8[131072]{0}', space=vmem, size = 0x20000, scoped, tag = 'input window, operand 13, single buffered']
    #allocation20 [shape = 's32[1]{0}', space=sflag, size = 0x4, scoped, tag = 'scoped memory for tpu_custom_call.1']
    #allocation21 [shape = 'u8[131072]{0}', space=vmem, size = 0x20000, scoped, tag = 'input window, operand 15, single buffered']
    #allocation22 [shape = 'u8[131072]{0}', space=vmem, size = 0x20000, scoped, tag = 'input window, operand 17, single buffered']
    #allocation23 [shape = 's32[1]{0}', space=sflag, size = 0x4, scoped, tag = 'scoped memory for tpu_custom_call.1']
    #allocation24 [shape = 'u8[65536]{0}', space=vmem, size = 0x10000, scoped, tag = 'input window, operand 19, single buffered']
    #allocation25 [shape = 'u8[8192]{0}', space=vmem, size = 0x2000, scoped, tag = 'output window, operand 0, single buffered']
    %28 = vsyncpa [#allocation4], 0
    %29 = vsyncpa [#allocation6], 0
    %30 = vsyncpa [#allocation9], 0
    %31 = vsyncpa [#allocation11], 0
    %32 = vsyncpa [#allocation14], 0
    %33 = vsyncpa [#allocation17], 0
    %34 = vsyncpa [#allocation20], 0
    %35 = vsyncpa [#allocation23], 0
    %36 = vsyncpa [#allocation5], 0
    // Predicated region
    $region2: #{tpu_custom_call.1} parent=1 // pred_check
      _
    $region3: #{tpu_custom_call.1} parent=1 // pred_check_branch
      %38 = sbr.rel (0) target = $region5
    $region4: #{tpu_custom_call.1} parent=1 // pred_region
      %40 = vsyncadd [#allocation4], 0
      %s41 = sshll.u32 %s0, 4
      %s42 = int_to_ptr.hbm [resolvable:$true] %s41
      %s43 = sshll.u32 [#allocation3], 4
      %s44 = int_to_ptr.vmem [resolvable:$true] %s43
      %49 = dma.hbm_to_vmem [thread:$0]  %s42, 2048, %s44, [#allocation4], 1024, 1024, 64
    $region5: #{tpu_custom_call.1} parent=1 // pred_fallthru
      _
    // Predicated region
    $region6: #{tpu_custom_call.1} parent=1 // pred_check
      _
    $region7: #{tpu_custom_call.1} parent=1 // pred_check_branch
      %51 = sbr.rel (0) target = $region9
    $region8: #{tpu_custom_call.1} parent=1 // pred_region
      %53 = vsyncadd [#allocation6], 0
      %s55 = sshll.u32 %s1, 4
      %s56 = int_to_ptr.hbm [resolvable:$true] %s55
      %58 = dma.hbm_to_smem %s56, 64, [#allocation7], [#allocation6]
    $region9: #{tpu_custom_call.1} parent=1 // pred_fallthru
      _
    // Predicated region
    $region10: #{tpu_custom_call.1} parent=1 // pred_check
      _
    $region11: #{tpu_custom_call.1} parent=1 // pred_check_branch
      %60 = sbr.rel (0) target = $region13
    $region12: #{tpu_custom_call.1} parent=1 // pred_region
      %62 = vsyncadd [#allocation9], 0
      %s64 = sshll.u32 %s2, 4
      %s65 = int_to_ptr.hbm [resolvable:$true] %s64
      %67 = dma.hbm_to_smem %s65, 16, [#allocation8], [#allocation9]
    $region13: #{tpu_custom_call.1} parent=1 // pred_fallthru
      _
    // Predicated region
    $region14: #{tpu_custom_call.1} parent=1 // pred_check
      _
    $region15: #{tpu_custom_call.1} parent=1 // pred_check_branch
      %69 = sbr.rel (0) target = $region17
    $region16: #{tpu_custom_call.1} parent=1 // pred_region
      %71 = vsyncadd [#allocation11], 0
      %s72 = sshll.u32 %s3, 4
      %s73 = int_to_ptr.hbm [resolvable:$true] %s72
      %s74 = sshll.u32 [#allocation10], 4
      %s75 = int_to_ptr.vmem [resolvable:$true] %s74
      %80 = dma.hbm_to_vmem [thread:$0]  %s73, 4096, %s75, [#allocation11], 64, 64, 4
    $region17: #{tpu_custom_call.1} parent=1 // pred_fallthru
      _
    // Predicated region
    $region18: #{tpu_custom_call.1} parent=1 // pred_check
      _
    $region19: #{tpu_custom_call.1} parent=1 // pred_check_branch
      %82 = sbr.rel (0) target = $region21
    $region20: #{tpu_custom_call.1} parent=1 // pred_region
      %84 = vsyncadd [#allocation11], 0
      %s86 = sshll.u32 %s4, 4
      %s87 = int_to_ptr.hbm [resolvable:$true] %s86
      %s88 = sshll.u32 [#allocation12], 4
      %s89 = int_to_ptr.vmem [resolvable:$true] %s88
      %91 = dma.hbm_to_vmem [thread:$0]  %s87, 16, %s89, [#allocation11]
    $region21: #{tpu_custom_call.1} parent=1 // pred_fallthru
      _
    // Predicated region
    $region22: #{tpu_custom_call.1} parent=1 // pred_check
      _
    $region23: #{tpu_custom_call.1} parent=1 // pred_check_branch
      %93 = sbr.rel (0) target = $region25
    $region24: #{tpu_custom_call.1} parent=1 // pred_region
      %95 = vsyncadd [#allocation14], 0
      %s96 = sshll.u32 %s5, 4
      %s97 = int_to_ptr.hbm [resolvable:$true] %s96
      %s98 = sshll.u32 [#allocation13], 4
      %s99 = int_to_ptr.vmem [resolvable:$true] %s98
      %104 = dma.hbm_to_vmem [thread:$0]  %s97, 4096, %s99, [#allocation14], 128, 128, 8
    $region25: #{tpu_custom_call.1} parent=1 // pred_fallthru
      _
    // Predicated region
    $region26: #{tpu_custom_call.1} parent=1 // pred_check
      _
    $region27: #{tpu_custom_call.1} parent=1 // pred_check_branch
      %106 = sbr.rel (0) target = $region29
    $region28: #{tpu_custom_call.1} parent=1 // pred_region
      _
    $region29: #{tpu_custom_call.1} parent=1 // pred_fallthru
      _
    // Predicated region
    $region30: #{tpu_custom_call.1} parent=1 // pred_check
      _
    $region31: #{tpu_custom_call.1} parent=1 // pred_check_branch
      %108 = sbr.rel (0) target = $region33
    $region32: #{tpu_custom_call.1} parent=1 // pred_region
      %110 = vsyncadd [#allocation14], 0
      %s111 = sshll.u32 %s7, 4
      %s112 = int_to_ptr.hbm [resolvable:$true] %s111
      %s113 = sshll.u32 [#allocation15], 4
      %s114 = int_to_ptr.vmem [resolvable:$true] %s113
      %119 = dma.hbm_to_vmem [thread:$0]  %s112, 4096, %s114, [#allocation14], 128, 128, 8
    $region33: #{tpu_custom_call.1} parent=1 // pred_fallthru
      _
    // Predicated region
    $region34: #{tpu_custom_call.1} parent=1 // pred_check
      _
    $region35: #{tpu_custom_call.1} parent=1 // pred_check_branch
      %121 = sbr.rel (0) target = $region37
    $region36: #{tpu_custom_call.1} parent=1 // pred_region
      _
    $region37: #{tpu_custom_call.1} parent=1 // pred_fallthru
      _
    // Predicated region
    $region38: #{tpu_custom_call.1} parent=1 // pred_check
      _
    $region39: #{tpu_custom_call.1} parent=1 // pred_check_branch
      %123 = sbr.rel (0) target = $region41
    $region40: #{tpu_custom_call.1} parent=1 // pred_region
      %125 = vsyncadd [#allocation17], 0
      %s126 = sshll.u32 %s9, 4
      %s127 = int_to_ptr.hbm [resolvable:$true] %s126
      %s128 = sshll.u32 [#allocation16], 4
      %s129 = int_to_ptr.vmem [resolvable:$true] %s128
      %134 = dma.hbm_to_vmem [thread:$0]  %s127, 4096, %s129, [#allocation17], 128, 128, 8
    $region41: #{tpu_custom_call.1} parent=1 // pred_fallthru
      _
    // Predicated region
    $region42: #{tpu_custom_call.1} parent=1 // pred_check
      _
    $region43: #{tpu_custom_call.1} parent=1 // pred_check_branch
      %136 = sbr.rel (0) target = $region45
    $region44: #{tpu_custom_call.1} parent=1 // pred_region
      _
    $region45: #{tpu_custom_call.1} parent=1 // pred_fallthru
      _
    // Predicated region
    $region46: #{tpu_custom_call.1} parent=1 // pred_check
      _
    $region47: #{tpu_custom_call.1} parent=1 // pred_check_branch
      %138 = sbr.rel (0) target = $region49
    $region48: #{tpu_custom_call.1} parent=1 // pred_region
      %140 = vsyncadd [#allocation17], 0
      %s141 = sshll.u32 %s11, 4
      %s142 = int_to_ptr.hbm [resolvable:$true] %s141
      %s143 = sshll.u32 [#allocation18], 4
      %s144 = int_to_ptr.vmem [resolvable:$true] %s143
      %149 = dma.hbm_to_vmem [thread:$0]  %s142, 4096, %s144, [#allocation17], 128, 128, 8
    $region49: #{tpu_custom_call.1} parent=1 // pred_fallthru
      _
    // Predicated region
    $region50: #{tpu_custom_call.1} parent=1 // pred_check
      _
    $region51: #{tpu_custom_call.1} parent=1 // pred_check_branch
      %151 = sbr.rel (0) target = $region53
    $region52: #{tpu_custom_call.1} parent=1 // pred_region
      _
    $region53: #{tpu_custom_call.1} parent=1 // pred_fallthru
      _
    // Predicated region
    $region54: #{tpu_custom_call.1} parent=1 // pred_check
      _
    $region55: #{tpu_custom_call.1} parent=1 // pred_check_branch
      %153 = sbr.rel (0) target = $region57
    $region56: #{tpu_custom_call.1} parent=1 // pred_region
      %155 = vsyncadd [#allocation20], 0
      %s156 = sshll.u32 %s13, 4
      %s157 = int_to_ptr.hbm [resolvable:$true] %s156
      %s158 = sshll.u32 [#allocation19], 4
      %s159 = int_to_ptr.vmem [resolvable:$true] %s158
      %164 = dma.hbm_to_vmem [thread:$0]  %s157, 4096, %s159, [#allocation20], 128, 128, 8
    $region57: #{tpu_custom_call.1} parent=1 // pred_fallthru
      _
    // Predicated region
    $region58: #{tpu_custom_call.1} parent=1 // pred_check
      _
    $region59: #{tpu_custom_call.1} parent=1 // pred_check_branch
      %166 = sbr.rel (0) target = $region61
    $region60: #{tpu_custom_call.1} parent=1 // pred_region
      _
    $region61: #{tpu_custom_call.1} parent=1 // pred_fallthru
      _
    // Predicated region
    $region62: #{tpu_custom_call.1} parent=1 // pred_check
      _
    $region63: #{tpu_custom_call.1} parent=1 // pred_check_branch
      %168 = sbr.rel (0) target = $region65
    $region64: #{tpu_custom_call.1} parent=1 // pred_region
      %170 = vsyncadd [#allocation20], 0
      %s171 = sshll.u32 %s15, 4
      %s172 = int_to_ptr.hbm [resolvable:$true] %s171
      %s173 = sshll.u32 [#allocation21], 4
      %s174 = int_to_ptr.vmem [resolvable:$true] %s173
      %179 = dma.hbm_to_vmem [thread:$0]  %s172, 4096, %s174, [#allocation20], 128, 128, 8
    $region65: #{tpu_custom_call.1} parent=1 // pred_fallthru
      _
    // Predicated region
    $region66: #{tpu_custom_call.1} parent=1 // pred_check
      _
    $region67: #{tpu_custom_call.1} parent=1 // pred_check_branch
      %181 = sbr.rel (0) target = $region69
    $region68: #{tpu_custom_call.1} parent=1 // pred_region
      _
    $region69: #{tpu_custom_call.1} parent=1 // pred_fallthru
      _
    // Predicated region
    $region70: #{tpu_custom_call.1} parent=1 // pred_check
      _
    $region71: #{tpu_custom_call.1} parent=1 // pred_check_branch
      %183 = sbr.rel (0) target = $region73
    $region72: #{tpu_custom_call.1} parent=1 // pred_region
      %185 = vsyncadd [#allocation23], 0
      %s186 = sshll.u32 %s17, 4
      %s187 = int_to_ptr.hbm [resolvable:$true] %s186
      %s188 = sshll.u32 [#allocation22], 4
      %s189 = int_to_ptr.vmem [resolvable:$true] %s188
      %194 = dma.hbm_to_vmem [thread:$0]  %s187, 4096, %s189, [#allocation23], 128, 128, 8
    $region73: #{tpu_custom_call.1} parent=1 // pred_fallthru
      _
    // Predicated region
    $region74: #{tpu_custom_call.1} parent=1 // pred_check
      _
    $region75: #{tpu_custom_call.1} parent=1 // pred_check_branch
      %196 = sbr.rel (0) target = $region77
    $region76: #{tpu_custom_call.1} parent=1 // pred_region
      _
    $region77: #{tpu_custom_call.1} parent=1 // pred_fallthru
      _
    // Predicated region
    $region78: #{tpu_custom_call.1} parent=1 // pred_check
      _
    $region79: #{tpu_custom_call.1} parent=1 // pred_check_branch
      %198 = sbr.rel (0) target = $region81
    $region80: #{tpu_custom_call.1} parent=1 // pred_region
      %200 = vsyncadd [#allocation23], 0
      %s201 = sshll.u32 %s19, 4
      %s202 = int_to_ptr.hbm [resolvable:$true] %s201
      %s203 = sshll.u32 [#allocation24], 4
      %s204 = int_to_ptr.vmem [resolvable:$true] %s203
      %209 = dma.hbm_to_vmem [thread:$0]  %s202, 2048, %s204, [#allocation23], 64, 64, 4
    $region81: #{tpu_custom_call.1} parent=1 // pred_fallthru
      _
    // Predicated region
    $region82: #{tpu_custom_call.1} parent=1 // pred_check
      _
    $region83: #{tpu_custom_call.1} parent=1 // pred_check_branch
      %211 = sbr.rel (0) target = $region85
    $region84: #{tpu_custom_call.1} parent=1 // pred_region
      _
    $region85: #{tpu_custom_call.1} parent=1 // pred_fallthru
      _
    // Predicated region
    $region86: #{tpu_custom_call.1} parent=1 // pred_check
      _
    $region87: #{tpu_custom_call.1} parent=1 // pred_check_branch
      %213 = sbr.rel (0) target = $region89
    $region88: #{tpu_custom_call.1} parent=1 // pred_region
      _
    $region89: #{tpu_custom_call.1} parent=1 // pred_fallthru
      _
    // Predicated region
    $region90: #{tpu_custom_call.1} parent=1 // pred_check
      _
    $region91: #{tpu_custom_call.1} parent=1 // pred_check_branch
      %215 = sbr.rel (0) target = $region93
    $region92: #{tpu_custom_call.1} parent=1 // pred_region
      _
    $region93: #{tpu_custom_call.1} parent=1 // pred_fallthru
      _
    // Predicated region
    $region94: #{tpu_custom_call.1} parent=1 // pred_check
      _
    $region95: #{tpu_custom_call.1} parent=1 // pred_check_branch
      %217 = sbr.rel (0) target = $region97
    $region96: #{tpu_custom_call.1} parent=1 // pred_region
      %219 = dma.done [#allocation4], 2048
    $region97: #{tpu_custom_call.1} parent=1 // pred_fallthru
      _
    // Predicated region
    $region98: #{tpu_custom_call.1} parent=1 // pred_check
      _
    $region99: #{tpu_custom_call.1} parent=1 // pred_check_branch
      %221 = sbr.rel (0) target = $region101
    $region100: #{tpu_custom_call.1} parent=1 // pred_region
      %223 = dma.done [#allocation6], 64
    $region101: #{tpu_custom_call.1} parent=1 // pred_fallthru
      _
    // Predicated region
    $region102: #{tpu_custom_call.1} parent=1 // pred_check
      _
    $region103: #{tpu_custom_call.1} parent=1 // pred_check_branch
      %225 = sbr.rel (0) target = $region105
    $region104: #{tpu_custom_call.1} parent=1 // pred_region
      %227 = dma.done [#allocation9], 16
    $region105: #{tpu_custom_call.1} parent=1 // pred_fallthru
      _
    // Predicated region
    $region106: #{tpu_custom_call.1} parent=1 // pred_check
      _
    $region107: #{tpu_custom_call.1} parent=1 // pred_check_branch
      %229 = sbr.rel (0) target = $region109
    $region108: #{tpu_custom_call.1} parent=1 // pred_region
      %231 = dma.done [#allocation11], 4096
    $region109: #{tpu_custom_call.1} parent=1 // pred_fallthru
      _
    // Predicated region
    $region110: #{tpu_custom_call.1} parent=1 // pred_check
      _
    $region111: #{tpu_custom_call.1} parent=1 // pred_check_branch
      %233 = sbr.rel (0) target = $region113
    $region112: #{tpu_custom_call.1} parent=1 // pred_region
      %235 = dma.done [#allocation11], 16
    $region113: #{tpu_custom_call.1} parent=1 // pred_fallthru
      _
    // Predicated region
    $region114: #{tpu_custom_call.1} parent=1 // pred_check
      _
    $region115: #{tpu_custom_call.1} parent=1 // pred_check_branch
      %237 = sbr.rel (0) target = $region117
    $region116: #{tpu_custom_call.1} parent=1 // pred_region
      %239 = dma.done [#allocation14], 4096
    $region117: #{tpu_custom_call.1} parent=1 // pred_fallthru
      _
    // Predicated region
    $region118: #{tpu_custom_call.1} parent=1 // pred_check
      _
    $region119: #{tpu_custom_call.1} parent=1 // pred_check_branch
      %241 = sbr.rel (0) target = $region121
    $region120: #{tpu_custom_call.1} parent=1 // pred_region
      %243 = dma.done [#allocation14], 4096
    $region121: #{tpu_custom_call.1} parent=1 // pred_fallthru
      _
    // Predicated region
    $region122: #{tpu_custom_call.1} parent=1 // pred_check
      _
    $region123: #{tpu_custom_call.1} parent=1 // pred_check_branch
      %245 = sbr.rel (0) target = $region125
    $region124: #{tpu_custom_call.1} parent=1 // pred_region
      %247 = dma.done [#allocation17], 4096
    $region125: #{tpu_custom_call.1} parent=1 // pred_fallthru
      _
    // Predicated region
    $region126: #{tpu_custom_call.1} parent=1 // pred_check
      _
    $region127: #{tpu_custom_call.1} parent=1 // pred_check_branch
      %249 = sbr.rel (0) target = $region129
    $region128: #{tpu_custom_call.1} parent=1 // pred_region
      %251 = dma.done [#allocation17], 4096
    $region129: #{tpu_custom_call.1} parent=1 // pred_fallthru
      _
    // Predicated region
    $region130: #{tpu_custom_call.1} parent=1 // pred_check
      _
    $region131: #{tpu_custom_call.1} parent=1 // pred_check_branch
      %253 = sbr.rel (0) target = $region133
    $region132: #{tpu_custom_call.1} parent=1 // pred_region
      %255 = dma.done [#allocation20], 4096
    $region133: #{tpu_custom_call.1} parent=1 // pred_fallthru
      _
    // Predicated region
    $region134: #{tpu_custom_call.1} parent=1 // pred_check
      _
    $region135: #{tpu_custom_call.1} parent=1 // pred_check_branch
      %257 = sbr.rel (0) target = $region137
    $region136: #{tpu_custom_call.1} parent=1 // pred_region
      %259 = dma.done [#allocation20], 4096
    $region137: #{tpu_custom_call.1} parent=1 // pred_fallthru
      _
    // Predicated region
    $region138: #{tpu_custom_call.1} parent=1 // pred_check
      _
    $region139: #{tpu_custom_call.1} parent=1 // pred_check_branch
      %261 = sbr.rel (0) target = $region141
    $region140: #{tpu_custom_call.1} parent=1 // pred_region
      %263 = dma.done [#allocation23], 4096
    $region141: #{tpu_custom_call.1} parent=1 // pred_fallthru
      _
    // Predicated region
    $region142: #{tpu_custom_call.1} parent=1 // pred_check
      _
    $region143: #{tpu_custom_call.1} parent=1 // pred_check_branch
      %265 = sbr.rel (0) target = $region145
    $region144: #{tpu_custom_call.1} parent=1 // pred_region
      %267 = dma.done [#allocation23], 2048
    $region145: #{tpu_custom_call.1} parent=1 // pred_fallthru
      _
    %268 = sfence
    %v269 = vld [vmem:[#allocation3] sm:$0xff]
    %v270 = vld [vmem:[#allocation3 + $0x40] sm:$0xff]
    %s271 = sld [smem:[#allocation7]]
    %v272 = vstv %s271
    %v273 = vmul.f32 %v272, %v269
    %v274 = vmul.f32 %v272, %v270
    %v275 = vld [vmem:[#allocation3 + $0x8] sm:$0xff]
    %v276 = vld [vmem:[#allocation3 + $0x48] sm:$0xff]
    %s277 = sld [smem:[#allocation7 + $0x1]]
    %v278 = vstv %s277
    %v279 = vmul.f32 %v278, %v275
    %v280 = vmul.f32 %v278, %v276
    %v281 = vadd.f32 %v273, %v279
    %v282 = vadd.f32 %v274, %v280
    %v283 = vld [vmem:[#allocation3 + $0x10] sm:$0xff]
    %v284 = vld [vmem:[#allocation3 + $0x50] sm:$0xff]
    %s285 = sld [smem:[#allocation7 + $0x2]]
    %v286 = vstv %s285
    %v287 = vmul.f32 %v286, %v283
    %v288 = vmul.f32 %v286, %v284
    %v289 = vadd.f32 %v281, %v287
    %v290 = vadd.f32 %v282, %v288
    %v291 = vld [vmem:[#allocation3 + $0x18] sm:$0xff]
    %v292 = vld [vmem:[#allocation3 + $0x58] sm:$0xff]
    %s293 = sld [smem:[#allocation7 + $0x3]]
    %v294 = vstv %s293
    %v295 = vmul.f32 %v294, %v291
    %v296 = vmul.f32 %v294, %v292
    %v297 = vadd.f32 %v289, %v295
    %v298 = vadd.f32 %v290, %v296
    %s299 = sld [smem:[#allocation8]]
    %v300 = vstv %s299
    %v301 = vadd.f32 %v297, %v300
    %v302 = vadd.f32 %v298, %v300
    %v303 = vmax.f32 %v301, 0.0
    %v304 = vmax.f32 %v302, 0.0
    %305 = vst [vmem:[#allocation2] sm:$0xff] %v303
    %306 = vst [vmem:[#allocation2 + $0x20] sm:$0xff] %v304
    %v307 = vld [vmem:[#allocation3] sm:$0xff]
    %v308 = vld [vmem:[#allocation3 + $0x40] sm:$0xff]
    %s309 = sld [smem:[#allocation7 + $0x80]]
    %v310 = vstv %s309
    %v311 = vmul.f32 %v310, %v307
    %v312 = vmul.f32 %v310, %v308
    %v313 = vld [vmem:[#allocation3 + $0x8] sm:$0xff]
    %v314 = vld [vmem:[#allocation3 + $0x48] sm:$0xff]
    %s315 = sld [smem:[#allocation7 + $0x81]]
    %v316 = vstv %s315
    %v317 = vmul.f32 %v316, %v313
    %v318 = vmul.f32 %v316, %v314
    %v319 = vadd.f32 %v311, %v317
    %v320 = vadd.f32 %v312, %v318
    %v321 = vld [vmem:[#allocation3 + $0x10] sm:$0xff]
    %v322 = vld [vmem:[#allocation3 + $0x50] sm:$0xff]
    %s323 = sld [smem:[#allocation7 + $0x82]]
    %v324 = vstv %s323
    %v325 = vmul.f32 %v324, %v321
    %v326 = vmul.f32 %v324, %v322
    %v327 = vadd.f32 %v319, %v325
    %v328 = vadd.f32 %v320, %v326
    %v329 = vld [vmem:[#allocation3 + $0x18] sm:$0xff]
    %v330 = vld [vmem:[#allocation3 + $0x58] sm:$0xff]
    %s331 = sld [smem:[#allocation7 + $0x83]]
    %v332 = vstv %s331
    %v333 = vmul.f32 %v332, %v329
    %v334 = vmul.f32 %v332, %v330
    %v335 = vadd.f32 %v327, %v333
    %v336 = vadd.f32 %v328, %v334
    %s337 = sld [smem:[#allocation8 + $0x1]]
    %v338 = vstv %s337
    %v339 = vadd.f32 %v335, %v338
    %v340 = vadd.f32 %v336, %v338
    %v341 = vmax.f32 %v339, 0.0
    %v342 = vmax.f32 %v340, 0.0
    %343 = vst [vmem:[#allocation2 + $0x8] sm:$0xff] %v341
    %344 = vst [vmem:[#allocation2 + $0x28] sm:$0xff] %v342
    %v345 = vld [vmem:[#allocation3] sm:$0xff]
    %v346 = vld [vmem:[#allocation3 + $0x40] sm:$0xff]
    %s347 = sld [smem:[#allocation7 + $0x100]]
    %v348 = vstv %s347
    %v349 = vmul.f32 %v348, %v345
    %v350 = vmul.f32 %v348, %v346
    %v351 = vld [vmem:[#allocation3 + $0x8] sm:$0xff]
    %v352 = vld [vmem:[#allocation3 + $0x48] sm:$0xff]
    %s353 = sld [smem:[#allocation7 + $0x101]]
    %v354 = vstv %s353
    %v355 = vmul.f32 %v354, %v351
    %v356 = vmul.f32 %v354, %v352
    %v357 = vadd.f32 %v349, %v355
    %v358 = vadd.f32 %v350, %v356
    %v359 = vld [vmem:[#allocation3 + $0x10] sm:$0xff]
    %v360 = vld [vmem:[#allocation3 + $0x50] sm:$0xff]
    %s361 = sld [smem:[#allocation7 + $0x102]]
    %v362 = vstv %s361
    %v363 = vmul.f32 %v362, %v359
    %v364 = vmul.f32 %v362, %v360
    %v365 = vadd.f32 %v357, %v363
    %v366 = vadd.f32 %v358, %v364
    %v367 = vld [vmem:[#allocation3 + $0x18] sm:$0xff]
    %v368 = vld [vmem:[#allocation3 + $0x58] sm:$0xff]
    %s369 = sld [smem:[#allocation7 + $0x103]]
    %v370 = vstv %s369
    %v371 = vmul.f32 %v370, %v367
    %v372 = vmul.f32 %v370, %v368
    %v373 = vadd.f32 %v365, %v371
    %v374 = vadd.f32 %v366, %v372
    %s375 = sld [smem:[#allocation8 + $0x2]]
    %v376 = vstv %s375
    %v377 = vadd.f32 %v373, %v376
    %v378 = vadd.f32 %v374, %v376
    %v379 = vmax.f32 %v377, 0.0
    %v380 = vmax.f32 %v378, 0.0
    %381 = vst [vmem:[#allocation2 + $0x10] sm:$0xff] %v379
    %382 = vst [vmem:[#allocation2 + $0x30] sm:$0xff] %v380
    %v383 = vld [vmem:[#allocation3] sm:$0xff]
    %v384 = vld [vmem:[#allocation3 + $0x40] sm:$0xff]
    %s385 = sld [smem:[#allocation7 + $0x180]]
    %v386 = vstv %s385
    %v387 = vmul.f32 %v386, %v383
    %v388 = vmul.f32 %v386, %v384
    %v389 = vld [vmem:[#allocation3 + $0x8] sm:$0xff]
    %v390 = vld [vmem:[#allocation3 + $0x48] sm:$0xff]
    %s391 = sld [smem:[#allocation7 + $0x181]]
    %v392 = vstv %s391
    %v393 = vmul.f32 %v392, %v389
    %v394 = vmul.f32 %v392, %v390
    %v395 = vadd.f32 %v387, %v393
    %v396 = vadd.f32 %v388, %v394
    %v397 = vld [vmem:[#allocation3 + $0x10] sm:$0xff]
    %v398 = vld [vmem:[#allocation3 + $0x50] sm:$0xff]
    %s399 = sld [smem:[#allocation7 + $0x182]]
    %v400 = vstv %s399
    %v401 = vmul.f32 %v400, %v397
    %v402 = vmul.f32 %v400, %v398
    %v403 = vadd.f32 %v395, %v401
    %v404 = vadd.f32 %v396, %v402
    %v405 = vld [vmem:[#allocation3 + $0x18] sm:$0xff]
    %v406 = vld [vmem:[#allocation3 + $0x58] sm:$0xff]
    %s407 = sld [smem:[#allocation7 + $0x183]]
    %v408 = vstv %s407
    %v409 = vmul.f32 %v408, %v405
    %v410 = vmul.f32 %v408, %v406
    %v411 = vadd.f32 %v403, %v409
    %v412 = vadd.f32 %v404, %v410
    %s413 = sld [smem:[#allocation8 + $0x3]]
    %v414 = vstv %s413
    %v415 = vadd.f32 %v411, %v414
    %v416 = vadd.f32 %v412, %v414
    %v417 = vmax.f32 %v415, 0.0
    %v418 = vmax.f32 %v416, 0.0
    %419 = vst [vmem:[#allocation2 + $0x18] sm:$0xff] %v417
    %420 = vst [vmem:[#allocation2 + $0x38] sm:$0xff] %v418
    %v421 = vld [vmem:[#allocation2] sm:$0xff]
    %v422 = vld [vmem:[#allocation2 + $0x8] sm:$0xff]
    %v423 = vld [vmem:[#allocation2 + $0x10] sm:$0xff]
    %v424 = vld [vmem:[#allocation2 + $0x18] sm:$0xff]
    %v425 = vld [vmem:[#allocation2 + $0x20] sm:$0xff]
    %v426 = vld [vmem:[#allocation2 + $0x28] sm:$0xff]
    %v427 = vld [vmem:[#allocation2 + $0x30] sm:$0xff]
    %v428 = vld [vmem:[#allocation2 + $0x38] sm:$0xff]
    %v429 = vpack.c.bf16 %v425, %v421
    %v430 = vpack.c.bf16 %v426, %v422
    %v431 = vpack.c.bf16 %v427, %v423
    %v432 = vpack.c.bf16 %v428, %v424
    %v433 = vld [vmem:[#allocation10] sm:$0xf]
    %v434 = vld [vmem:[#allocation10 + $0x4] sm:$0xf]
    %v435 = vld [vmem:[#allocation10 + $0x8] sm:$0xf]
    %v436 = vld [vmem:[#allocation10 + $0xc] sm:$0xf]
    %v437 = vld [vmem:[#allocation10 + $0x10] sm:$0xf]
    %v438 = vld [vmem:[#allocation10 + $0x14] sm:$0xf]
    %v439 = vld [vmem:[#allocation10 + $0x18] sm:$0xf]
    %v440 = vld [vmem:[#allocation10 + $0x1c] sm:$0xf]
    %v441 = vld [vmem:[#allocation10 + $0x20] sm:$0xf]
    %v442 = vld [vmem:[#allocation10 + $0x24] sm:$0xf]
    %v443 = vld [vmem:[#allocation10 + $0x28] sm:$0xf]
    %v444 = vld [vmem:[#allocation10 + $0x2c] sm:$0xf]
    %v445 = vld [vmem:[#allocation10 + $0x30] sm:$0xf]
    %v446 = vld [vmem:[#allocation10 + $0x34] sm:$0xf]
    %v447 = vld [vmem:[#allocation10 + $0x38] sm:$0xf]
    %v448 = vld [vmem:[#allocation10 + $0x3c] sm:$0xf]
    %v449 = vld [vmem:[#allocation10 + $0x40] sm:$0xf]
    %v450 = vld [vmem:[#allocation10 + $0x44] sm:$0xf]
    %v451 = vld [vmem:[#allocation10 + $0x48] sm:$0xf]
    %v452 = vld [vmem:[#allocation10 + $0x4c] sm:$0xf]
    %v453 = vld [vmem:[#allocation10 + $0x50] sm:$0xf]
    %v454 = vld [vmem:[#allocation10 + $0x54] sm:$0xf]
    %v455 = vld [vmem:[#allocation10 + $0x58] sm:$0xf]
    %v456 = vld [vmem:[#allocation10 + $0x5c] sm:$0xf]
    %v457 = vld [vmem:[#allocation10 + $0x60] sm:$0xf]
    %v458 = vld [vmem:[#allocation10 + $0x64] sm:$0xf]
    %v459 = vld [vmem:[#allocation10 + $0x68] sm:$0xf]
    %v460 = vld [vmem:[#allocation10 + $0x6c] sm:$0xf]
    %v461 = vld [vmem:[#allocation10 + $0x70] sm:$0xf]
    %v462 = vld [vmem:[#allocation10 + $0x74] sm:$0xf]
    %v463 = vld [vmem:[#allocation10 + $0x78] sm:$0xf]
    %v464 = vld [vmem:[#allocation10 + $0x7c] sm:$0xf]
    %v465 = vld [vmem:[#allocation10 + $0x80] sm:$0xf]
    %v466 = vld [vmem:[#allocation10 + $0x84] sm:$0xf]
    %v467 = vld [vmem:[#allocation10 + $0x88] sm:$0xf]
    %v468 = vld [vmem:[#allocation10 + $0x8c] sm:$0xf]
    %v469 = vld [vmem:[#allocation10 + $0x90] sm:$0xf]
    %v470 = vld [vmem:[#allocation10 + $0x94] sm:$0xf]
    %v471 = vld [vmem:[#allocation10 + $0x98] sm:$0xf]
    %v472 = vld [vmem:[#allocation10 + $0x9c] sm:$0xf]
    %v473 = vld [vmem:[#allocation10 + $0xa0] sm:$0xf]
    %v474 = vld [vmem:[#allocation10 + $0xa4] sm:$0xf]
    %v475 = vld [vmem:[#allocation10 + $0xa8] sm:$0xf]
    %v476 = vld [vmem:[#allocation10 + $0xac] sm:$0xf]
    %v477 = vld [vmem:[#allocation10 + $0xb0] sm:$0xf]
    %v478 = vld [vmem:[#allocation10 + $0xb4] sm:$0xf]
    %v479 = vld [vmem:[#allocation10 + $0xb8] sm:$0xf]
    %v480 = vld [vmem:[#allocation10 + $0xbc] sm:$0xf]
    %v481 = vld [vmem:[#allocation10 + $0xc0] sm:$0xf]
    %v482 = vld [vmem:[#allocation10 + $0xc4] sm:$0xf]
    %v483 = vld [vmem:[#allocation10 + $0xc8] sm:$0xf]
    %v484 = vld [vmem:[#allocation10 + $0xcc] sm:$0xf]
    %v485 = vld [vmem:[#allocation10 + $0xd0] sm:$0xf]
    %v486 = vld [vmem:[#allocation10 + $0xd4] sm:$0xf]
    %v487 = vld [vmem:[#allocation10 + $0xd8] sm:$0xf]
    %v488 = vld [vmem:[#allocation10 + $0xdc] sm:$0xf]
    %v489 = vld [vmem:[#allocation10 + $0xe0] sm:$0xf]
    %v490 = vld [vmem:[#allocation10 + $0xe4] sm:$0xf]
    %v491 = vld [vmem:[#allocation10 + $0xe8] sm:$0xf]
    %v492 = vld [vmem:[#allocation10 + $0xec] sm:$0xf]
    %v493 = vld [vmem:[#allocation10 + $0xf0] sm:$0xf]
    %v494 = vld [vmem:[#allocation10 + $0xf4] sm:$0xf]
    %v495 = vld [vmem:[#allocation10 + $0xf8] sm:$0xf]
    %v496 = vld [vmem:[#allocation10 + $0xfc] sm:$0xf]
    %v497 = vld [vmem:[#allocation12] sm:$0x1]
    %v499 = vperm.slane %v497, 0
    %v565 = vunpack.c.l.b16 %v433
    %v566 = vunpack.c.l.b16 %v434
    %v567 = vunpack.c.l.b16 %v435
    %v568 = vunpack.c.l.b16 %v436
    %v569 = vunpack.c.l.b16 %v437
    %v570 = vunpack.c.l.b16 %v438
    %v571 = vunpack.c.l.b16 %v439
    %v572 = vunpack.c.l.b16 %v440
    %v573 = vunpack.c.l.b16 %v441
    %v574 = vunpack.c.l.b16 %v442
    %v575 = vunpack.c.l.b16 %v443
    %v576 = vunpack.c.l.b16 %v444
    %v577 = vunpack.c.l.b16 %v445
    %v578 = vunpack.c.l.b16 %v446
    %v579 = vunpack.c.l.b16 %v447
    %v580 = vunpack.c.l.b16 %v448
    %v581 = vunpack.c.l.b16 %v449
    %v582 = vunpack.c.l.b16 %v450
    %v583 = vunpack.c.l.b16 %v451
    %v584 = vunpack.c.l.b16 %v452
    %v585 = vunpack.c.l.b16 %v453
    %v586 = vunpack.c.l.b16 %v454
    %v587 = vunpack.c.l.b16 %v455
    %v588 = vunpack.c.l.b16 %v456
    %v589 = vunpack.c.l.b16 %v457
    %v590 = vunpack.c.l.b16 %v458
    %v591 = vunpack.c.l.b16 %v459
    %v592 = vunpack.c.l.b16 %v460
    %v593 = vunpack.c.l.b16 %v461
    %v594 = vunpack.c.l.b16 %v462
    %v595 = vunpack.c.l.b16 %v463
    %v596 = vunpack.c.l.b16 %v464
    %v597 = vunpack.c.l.b16 %v465
    %v598 = vunpack.c.l.b16 %v466
    %v599 = vunpack.c.l.b16 %v467
    %v600 = vunpack.c.l.b16 %v468
    %v601 = vunpack.c.l.b16 %v469
    %v602 = vunpack.c.l.b16 %v470
    %v603 = vunpack.c.l.b16 %v471
    %v604 = vunpack.c.l.b16 %v472
    %v605 = vunpack.c.l.b16 %v473
    %v606 = vunpack.c.l.b16 %v474
    %v607 = vunpack.c.l.b16 %v475
    %v608 = vunpack.c.l.b16 %v476
    %v609 = vunpack.c.l.b16 %v477
    %v610 = vunpack.c.l.b16 %v478
    %v611 = vunpack.c.l.b16 %v479
    %v612 = vunpack.c.l.b16 %v480
    %v613 = vunpack.c.l.b16 %v481
    %v614 = vunpack.c.l.b16 %v482
    %v615 = vunpack.c.l.b16 %v483
    %v616 = vunpack.c.l.b16 %v484
    %v617 = vunpack.c.l.b16 %v485
    %v618 = vunpack.c.l.b16 %v486
    %v619 = vunpack.c.l.b16 %v487
    %v620 = vunpack.c.l.b16 %v488
    %v621 = vunpack.c.l.b16 %v489
    %v622 = vunpack.c.l.b16 %v490
    %v623 = vunpack.c.l.b16 %v491
    %v624 = vunpack.c.l.b16 %v492
    %v625 = vunpack.c.l.b16 %v493
    %v626 = vunpack.c.l.b16 %v494
    %v627 = vunpack.c.l.b16 %v495
    %v628 = vunpack.c.l.b16 %v496
    %v629 = vpack.c.b16 %v566, %v565
    %v630 = vpack.c.b16 %v568, %v567
    %v631 = vpack.c.b16 %v570, %v569
    %v632 = vpack.c.b16 %v572, %v571
    %v633 = vpack.c.b16 %v574, %v573
    %v634 = vpack.c.b16 %v576, %v575
    %v635 = vpack.c.b16 %v578, %v577
    %v636 = vpack.c.b16 %v580, %v579
    %v637 = vpack.c.b16 %v582, %v581
    %v638 = vpack.c.b16 %v584, %v583
    %v639 = vpack.c.b16 %v586, %v585
    %v640 = vpack.c.b16 %v588, %v587
    %v641 = vpack.c.b16 %v590, %v589
    %v642 = vpack.c.b16 %v592, %v591
    %v643 = vpack.c.b16 %v594, %v593
    %v644 = vpack.c.b16 %v596, %v595
    %v645 = vpack.c.b16 %v598, %v597
    %v646 = vpack.c.b16 %v600, %v599
    %v647 = vpack.c.b16 %v602, %v601
    %v648 = vpack.c.b16 %v604, %v603
    %v649 = vpack.c.b16 %v606, %v605
    %v650 = vpack.c.b16 %v608, %v607
    %v651 = vpack.c.b16 %v610, %v609
    %v652 = vpack.c.b16 %v612, %v611
    %v653 = vpack.c.b16 %v614, %v613
    %v654 = vpack.c.b16 %v616, %v615
    %v655 = vpack.c.b16 %v618, %v617
    %v656 = vpack.c.b16 %v620, %v619
    %v657 = vpack.c.b16 %v622, %v621
    %v658 = vpack.c.b16 %v624, %v623
    %v659 = vpack.c.b16 %v626, %v625
    %v660 = vpack.c.b16 %v628, %v627
    %693 = vmatpush.bf16.msra.mxu0 %v636
    %694 = vmatpush.bf16.msra.mxu0 %v635
    %695 = vmatpush.bf16.msra.mxu0 %v634
    %696 = vmatpush.bf16.msra.mxu0 %v633
    %697 = vmatpush.bf16.msra.mxu0 %v632
    %698 = vmatpush.bf16.msra.mxu0 %v631
    %699 = vmatpush.bf16.msra.mxu0 %v630
    %700 = vmatpush.bf16.msra.mxu0 %v629
    %701 = vmatmul.bf16.gmra.mxu0 %v429
    %v702 = vpop.f32.mrf.mxu0
    %v703 = vadd.f32 %v499, %v702
    %v704 = vpop.f32.mrf.mxu0
    %v705 = vadd.f32 %v499, %v704
    %706 = vdwg.mxu0
    %707 = vmatpush.bf16.msra.mxu0 %v644
    %708 = vmatpush.bf16.msra.mxu0 %v643
    %709 = vmatpush.bf16.msra.mxu0 %v642
    %710 = vmatpush.bf16.msra.mxu0 %v641
    %711 = vmatpush.bf16.msra.mxu0 %v640
    %712 = vmatpush.bf16.msra.mxu0 %v639
    %713 = vmatpush.bf16.msra.mxu0 %v638
    %714 = vmatpush.bf16.msra.mxu0 %v637
    %715 = vmatmul.bf16.gmra.mxu0 %v430
    %v716 = vpop.f32.mrf.mxu0
    %v717 = vadd.f32 %v703, %v716
    %v718 = vpop.f32.mrf.mxu0
    %v719 = vadd.f32 %v705, %v718
    %720 = vdwg.mxu0
    %721 = vmatpush.bf16.msra.mxu0 %v652
    %722 = vmatpush.bf16.msra.mxu0 %v651
    %723 = vmatpush.bf16.msra.mxu0 %v650
    %724 = vmatpush.bf16.msra.mxu0 %v649
    %725 = vmatpush.bf16.msra.mxu0 %v648
    %726 = vmatpush.bf16.msra.mxu0 %v647
    %727 = vmatpush.bf16.msra.mxu0 %v646
    %728 = vmatpush.bf16.msra.mxu0 %v645
    %729 = vmatmul.bf16.gmra.mxu0 %v431
    %v730 = vpop.f32.mrf.mxu0
    %v731 = vadd.f32 %v717, %v730
    %v732 = vpop.f32.mrf.mxu0
    %v733 = vadd.f32 %v719, %v732
    %734 = vdwg.mxu0
    %735 = vmatpush.bf16.msra.mxu0 %v660
    %736 = vmatpush.bf16.msra.mxu0 %v659
    %737 = vmatpush.bf16.msra.mxu0 %v658
    %738 = vmatpush.bf16.msra.mxu0 %v657
    %739 = vmatpush.bf16.msra.mxu0 %v656
    %740 = vmatpush.bf16.msra.mxu0 %v655
    %741 = vmatpush.bf16.msra.mxu0 %v654
    %742 = vmatpush.bf16.msra.mxu0 %v653
    %743 = vmatmul.bf16.gmra.mxu0 %v432
    %v744 = vpop.f32.mrf.mxu0
    %v745 = vadd.f32 %v731, %v744
    %v746 = vpop.f32.mrf.mxu0
    %v747 = vadd.f32 %v733, %v746
    %748 = vdwg.mxu0
    %v749 = vmax.f32 %v745, 0.0
    %v750 = vmax.f32 %v747, 0.0
    %v751 = vld [vmem:[#allocation3 + $0x20] sm:$0xff]
    %v752 = vld [vmem:[#allocation3 + $0x60] sm:$0xff]
    %s753 = sld [smem:[#allocation7]]
    %v754 = vstv %s753
    %v755 = vmul.f32 %v754, %v751
    %v756 = vmul.f32 %v754, %v752
    %v757 = vld [vmem:[#allocation3 + $0x28] sm:$0xff]
    %v758 = vld [vmem:[#allocation3 + $0x68] sm:$0xff]
    %s759 = sld [smem:[#allocation7 + $0x1]]
    %v760 = vstv %s759
    %v761 = vmul.f32 %v760, %v757
    %v762 = vmul.f32 %v760, %v758
    %v763 = vadd.f32 %v755, %v761
    %v764 = vadd.f32 %v756, %v762
    %v765 = vld [vmem:[#allocation3 + $0x30] sm:$0xff]
    %v766 = vld [vmem:[#allocation3 + $0x70] sm:$0xff]
    %s767 = sld [smem:[#allocation7 + $0x2]]
    %v768 = vstv %s767
    %v769 = vmul.f32 %v768, %v765
    %v770 = vmul.f32 %v768, %v766
    %v771 = vadd.f32 %v763, %v769
    %v772 = vadd.f32 %v764, %v770
    %v773 = vld [vmem:[#allocation3 + $0x38] sm:$0xff]
    %v774 = vld [vmem:[#allocation3 + $0x78] sm:$0xff]
    %s775 = sld [smem:[#allocation7 + $0x3]]
    %v776 = vstv %s775
    %v777 = vmul.f32 %v776, %v773
    %v778 = vmul.f32 %v776, %v774
    %v779 = vadd.f32 %v771, %v777
    %v780 = vadd.f32 %v772, %v778
    %s781 = sld [smem:[#allocation8]]
    %v782 = vstv %s781
    %v783 = vadd.f32 %v779, %v782
    %v784 = vadd.f32 %v780, %v782
    %v785 = vmax.f32 %v783, 0.0
    %v786 = vmax.f32 %v784, 0.0
    %787 = vst [vmem:[#allocation2] sm:$0xff] %v785
    %788 = vst [vmem:[#allocation2 + $0x20] sm:$0xff] %v786
    %v789 = vld [vmem:[#allocation3 + $0x20] sm:$0xff]
    %v790 = vld [vmem:[#allocation3 + $0x60] sm:$0xff]
    %s791 = sld [smem:[#allocation7 + $0x80]]
    %v792 = vstv %s791
    %v793 = vmul.f32 %v792, %v789
    %v794 = vmul.f32 %v792, %v790
    %v795 = vld [vmem:[#allocation3 + $0x28] sm:$0xff]
    %v796 = vld [vmem:[#allocation3 + $0x68] sm:$0xff]
    %s797 = sld [smem:[#allocation7 + $0x81]]
    %v798 = vstv %s797
    %v799 = vmul.f32 %v798, %v795
    %v800 = vmul.f32 %v798, %v796
    %v801 = vadd.f32 %v793, %v799
    %v802 = vadd.f32 %v794, %v800
    %v803 = vld [vmem:[#allocation3 + $0x30] sm:$0xff]
    %v804 = vld [vmem:[#allocation3 + $0x70] sm:$0xff]
    %s805 = sld [smem:[#allocation7 + $0x82]]
    %v806 = vstv %s805
    %v807 = vmul.f32 %v806, %v803
    %v808 = vmul.f32 %v806, %v804
    %v809 = vadd.f32 %v801, %v807
    %v810 = vadd.f32 %v802, %v808
    %v811 = vld [vmem:[#allocation3 + $0x38] sm:$0xff]
    %v812 = vld [vmem:[#allocation3 + $0x78] sm:$0xff]
    %s813 = sld [smem:[#allocation7 + $0x83]]
    %v814 = vstv %s813
    %v815 = vmul.f32 %v814, %v811
    %v816 = vmul.f32 %v814, %v812
    %v817 = vadd.f32 %v809, %v815
    %v818 = vadd.f32 %v810, %v816
    %s819 = sld [smem:[#allocation8 + $0x1]]
    %v820 = vstv %s819
    %v821 = vadd.f32 %v817, %v820
    %v822 = vadd.f32 %v818, %v820
    %v823 = vmax.f32 %v821, 0.0
    %v824 = vmax.f32 %v822, 0.0
    %825 = vst [vmem:[#allocation2 + $0x8] sm:$0xff] %v823
    %826 = vst [vmem:[#allocation2 + $0x28] sm:$0xff] %v824
    %v827 = vld [vmem:[#allocation3 + $0x20] sm:$0xff]
    %v828 = vld [vmem:[#allocation3 + $0x60] sm:$0xff]
    %s829 = sld [smem:[#allocation7 + $0x100]]
    %v830 = vstv %s829
    %v831 = vmul.f32 %v830, %v827
    %v832 = vmul.f32 %v830, %v828
    %v833 = vld [vmem:[#allocation3 + $0x28] sm:$0xff]
    %v834 = vld [vmem:[#allocation3 + $0x68] sm:$0xff]
    %s835 = sld [smem:[#allocation7 + $0x101]]
    %v836 = vstv %s835
    %v837 = vmul.f32 %v836, %v833
    %v838 = vmul.f32 %v836, %v834
    %v839 = vadd.f32 %v831, %v837
    %v840 = vadd.f32 %v832, %v838
    %v841 = vld [vmem:[#allocation3 + $0x30] sm:$0xff]
    %v842 = vld [vmem:[#allocation3 + $0x70] sm:$0xff]
    %s843 = sld [smem:[#allocation7 + $0x102]]
    %v844 = vstv %s843
    %v845 = vmul.f32 %v844, %v841
    %v846 = vmul.f32 %v844, %v842
    %v847 = vadd.f32 %v839, %v845
    %v848 = vadd.f32 %v840, %v846
    %v849 = vld [vmem:[#allocation3 + $0x38] sm:$0xff]
    %v850 = vld [vmem:[#allocation3 + $0x78] sm:$0xff]
    %s851 = sld [smem:[#allocation7 + $0x103]]
    %v852 = vstv %s851
    %v853 = vmul.f32 %v852, %v849
    %v854 = vmul.f32 %v852, %v850
    %v855 = vadd.f32 %v847, %v853
    %v856 = vadd.f32 %v848, %v854
    %s857 = sld [smem:[#allocation8 + $0x2]]
    %v858 = vstv %s857
    %v859 = vadd.f32 %v855, %v858
    %v860 = vadd.f32 %v856, %v858
    %v861 = vmax.f32 %v859, 0.0
    %v862 = vmax.f32 %v860, 0.0
    %863 = vst [vmem:[#allocation2 + $0x10] sm:$0xff] %v861
    %864 = vst [vmem:[#allocation2 + $0x30] sm:$0xff] %v862
    %v865 = vld [vmem:[#allocation3 + $0x20] sm:$0xff]
    %v866 = vld [vmem:[#allocation3 + $0x60] sm:$0xff]
    %s867 = sld [smem:[#allocation7 + $0x180]]
    %v868 = vstv %s867
    %v869 = vmul.f32 %v868, %v865
    %v870 = vmul.f32 %v868, %v866
    %v871 = vld [vmem:[#allocation3 + $0x28] sm:$0xff]
    %v872 = vld [vmem:[#allocation3 + $0x68] sm:$0xff]
    %s873 = sld [smem:[#allocation7 + $0x181]]
    %v874 = vstv %s873
    %v875 = vmul.f32 %v874, %v871
    %v876 = vmul.f32 %v874, %v872
    %v877 = vadd.f32 %v869, %v875
    %v878 = vadd.f32 %v870, %v876
    %v879 = vld [vmem:[#allocation3 + $0x30] sm:$0xff]
    %v880 = vld [vmem:[#allocation3 + $0x70] sm:$0xff]
    %s881 = sld [smem:[#allocation7 + $0x182]]
    %v882 = vstv %s881
    %v883 = vmul.f32 %v882, %v879
    %v884 = vmul.f32 %v882, %v880
    %v885 = vadd.f32 %v877, %v883
    %v886 = vadd.f32 %v878, %v884
    %v887 = vld [vmem:[#allocation3 + $0x38] sm:$0xff]
    %v888 = vld [vmem:[#allocation3 + $0x78] sm:$0xff]
    %s889 = sld [smem:[#allocation7 + $0x183]]
    %v890 = vstv %s889
    %v891 = vmul.f32 %v890, %v887
    %v892 = vmul.f32 %v890, %v888
    %v893 = vadd.f32 %v885, %v891
    %v894 = vadd.f32 %v886, %v892
    %s895 = sld [smem:[#allocation8 + $0x3]]
    %v896 = vstv %s895
    %v897 = vadd.f32 %v893, %v896
    %v898 = vadd.f32 %v894, %v896
    %v899 = vmax.f32 %v897, 0.0
    %v900 = vmax.f32 %v898, 0.0
    %901 = vst [vmem:[#allocation2 + $0x18] sm:$0xff] %v899
    %902 = vst [vmem:[#allocation2 + $0x38] sm:$0xff] %v900
    %v903 = vld [vmem:[#allocation2] sm:$0xff]
    %v904 = vld [vmem:[#allocation2 + $0x8] sm:$0xff]
    %v905 = vld [vmem:[#allocation2 + $0x10] sm:$0xff]
    %v906 = vld [vmem:[#allocation2 + $0x18] sm:$0xff]
    %v907 = vld [vmem:[#allocation2 + $0x20] sm:$0xff]
    %v908 = vld [vmem:[#allocation2 + $0x28] sm:$0xff]
    %v909 = vld [vmem:[#allocation2 + $0x30] sm:$0xff]
    %v910 = vld [vmem:[#allocation2 + $0x38] sm:$0xff]
    %v911 = vpack.c.bf16 %v907, %v903
    %v912 = vpack.c.bf16 %v908, %v904
    %v913 = vpack.c.bf16 %v909, %v905
    %v914 = vpack.c.bf16 %v910, %v906
    %v915 = vld [vmem:[#allocation10] sm:$0xf]
    %v916 = vld [vmem:[#allocation10 + $0x4] sm:$0xf]
    %v917 = vld [vmem:[#allocation10 + $0x8] sm:$0xf]
    %v918 = vld [vmem:[#allocation10 + $0xc] sm:$0xf]
    %v919 = vld [vmem:[#allocation10 + $0x10] sm:$0xf]
    %v920 = vld [vmem:[#allocation10 + $0x14] sm:$0xf]
    %v921 = vld [vmem:[#allocation10 + $0x18] sm:$0xf]
    %v922 = vld [vmem:[#allocation10 + $0x1c] sm:$0xf]
    %v923 = vld [vmem:[#allocation10 + $0x20] sm:$0xf]
    %v924 = vld [vmem:[#allocation10 + $0x24] sm:$0xf]
    %v925 = vld [vmem:[#allocation10 + $0x28] sm:$0xf]
    %v926 = vld [vmem:[#allocation10 + $0x2c] sm:$0xf]
    %v927 = vld [vmem:[#allocation10 + $0x30] sm:$0xf]
    %v928 = vld [vmem:[#allocation10 + $0x34] sm:$0xf]
    %v929 = vld [vmem:[#allocation10 + $0x38] sm:$0xf]
    %v930 = vld [vmem:[#allocation10 + $0x3c] sm:$0xf]
    %v931 = vld [vmem:[#allocation10 + $0x40] sm:$0xf]
    %v932 = vld [vmem:[#allocation10 + $0x44] sm:$0xf]
    %v933 = vld [vmem:[#allocation10 + $0x48] sm:$0xf]
    %v934 = vld [vmem:[#allocation10 + $0x4c] sm:$0xf]
    %v935 = vld [vmem:[#allocation10 + $0x50] sm:$0xf]
    %v936 = vld [vmem:[#allocation10 + $0x54] sm:$0xf]
    %v937 = vld [vmem:[#allocation10 + $0x58] sm:$0xf]
    %v938 = vld [vmem:[#allocation10 + $0x5c] sm:$0xf]
    %v939 = vld [vmem:[#allocation10 + $0x60] sm:$0xf]
    %v940 = vld [vmem:[#allocation10 + $0x64] sm:$0xf]
    %v941 = vld [vmem:[#allocation10 + $0x68] sm:$0xf]
    %v942 = vld [vmem:[#allocation10 + $0x6c] sm:$0xf]
    %v943 = vld [vmem:[#allocation10 + $0x70] sm:$0xf]
    %v944 = vld [vmem:[#allocation10 + $0x74] sm:$0xf]
    %v945 = vld [vmem:[#allocation10 + $0x78] sm:$0xf]
    %v946 = vld [vmem:[#allocation10 + $0x7c] sm:$0xf]
    %v947 = vld [vmem:[#allocation10 + $0x80] sm:$0xf]
    %v948 = vld [vmem:[#allocation10 + $0x84] sm:$0xf]
    %v949 = vld [vmem:[#allocation10 + $0x88] sm:$0xf]
    %v950 = vld [vmem:[#allocation10 + $0x8c] sm:$0xf]
    %v951 = vld [vmem:[#allocation10 + $0x90] sm:$0xf]
    %v952 = vld [vmem:[#allocation10 + $0x94] sm:$0xf]
    %v953 = vld [vmem:[#allocation10 + $0x98] sm:$0xf]
    %v954 = vld [vmem:[#allocation10 + $0x9c] sm:$0xf]
    %v955 = vld [vmem:[#allocation10 + $0xa0] sm:$0xf]
    %v956 = vld [vmem:[#allocation10 + $0xa4] sm:$0xf]
    %v957 = vld [vmem:[#allocation10 + $0xa8] sm:$0xf]
    %v958 = vld [vmem:[#allocation10 + $0xac] sm:$0xf]
    %v959 = vld [vmem:[#allocation10 + $0xb0] sm:$0xf]
    %v960 = vld [vmem:[#allocation10 + $0xb4] sm:$0xf]
    %v961 = vld [vmem:[#allocation10 + $0xb8] sm:$0xf]
    %v962 = vld [vmem:[#allocation10 + $0xbc] sm:$0xf]
    %v963 = vld [vmem:[#allocation10 + $0xc0] sm:$0xf]
    %v964 = vld [vmem:[#allocation10 + $0xc4] sm:$0xf]
    %v965 = vld [vmem:[#allocation10 + $0xc8] sm:$0xf]
    %v966 = vld [vmem:[#allocation10 + $0xcc] sm:$0xf]
    %v967 = vld [vmem:[#allocation10 + $0xd0] sm:$0xf]
    %v968 = vld [vmem:[#allocation10 + $0xd4] sm:$0xf]
    %v969 = vld [vmem:[#allocation10 + $0xd8] sm:$0xf]
    %v970 = vld [vmem:[#allocation10 + $0xdc] sm:$0xf]
    %v971 = vld [vmem:[#allocation10 + $0xe0] sm:$0xf]
    %v972 = vld [vmem:[#allocation10 + $0xe4] sm:$0xf]
    %v973 = vld [vmem:[#allocation10 + $0xe8] sm:$0xf]
    %v974 = vld [vmem:[#allocation10 + $0xec] sm:$0xf]
    %v975 = vld [vmem:[#allocation10 + $0xf0] sm:$0xf]
    %v976 = vld [vmem:[#allocation10 + $0xf4] sm:$0xf]
    %v977 = vld [vmem:[#allocation10 + $0xf8] sm:$0xf]
    %v978 = vld [vmem:[#allocation10 + $0xfc] sm:$0xf]
    %v979 = vld [vmem:[#allocation12] sm:$0x1]
    %v981 = vperm.slane %v979, 0
    %v1047 = vunpack.c.l.b16 %v915
    %v1048 = vunpack.c.l.b16 %v916
    %v1049 = vunpack.c.l.b16 %v917
    %v1050 = vunpack.c.l.b16 %v918
    %v1051 = vunpack.c.l.b16 %v919
    %v1052 = vunpack.c.l.b16 %v920
    %v1053 = vunpack.c.l.b16 %v921
    %v1054 = vunpack.c.l.b16 %v922
    %v1055 = vunpack.c.l.b16 %v923
    %v1056 = vunpack.c.l.b16 %v924
    %v1057 = vunpack.c.l.b16 %v925
    %v1058 = vunpack.c.l.b16 %v926
    %v1059 = vunpack.c.l.b16 %v927
    %v1060 = vunpack.c.l.b16 %v928
    %v1061 = vunpack.c.l.b16 %v929
    %v1062 = vunpack.c.l.b16 %v930
    %v1063 = vunpack.c.l.b16 %v931
    %v1064 = vunpack.c.l.b16 %v932
    %v1065 = vunpack.c.l.b16 %v933
    %v1066 = vunpack.c.l.b16 %v934
    %v1067 = vunpack.c.l.b16 %v935
    %v1068 = vunpack.c.l.b16 %v936
    %v1069 = vunpack.c.l.b16 %v937
    %v1070 = vunpack.c.l.b16 %v938
    %v1071 = vunpack.c.l.b16 %v939
    %v1072 = vunpack.c.l.b16 %v940
    %v1073 = vunpack.c.l.b16 %v941
    %v1074 = vunpack.c.l.b16 %v942
    %v1075 = vunpack.c.l.b16 %v943
    %v1076 = vunpack.c.l.b16 %v944
    %v1077 = vunpack.c.l.b16 %v945
    %v1078 = vunpack.c.l.b16 %v946
    %v1079 = vunpack.c.l.b16 %v947
    %v1080 = vunpack.c.l.b16 %v948
    %v1081 = vunpack.c.l.b16 %v949
    %v1082 = vunpack.c.l.b16 %v950
    %v1083 = vunpack.c.l.b16 %v951
    %v1084 = vunpack.c.l.b16 %v952
    %v1085 = vunpack.c.l.b16 %v953
    %v1086 = vunpack.c.l.b16 %v954
    %v1087 = vunpack.c.l.b16 %v955
    %v1088 = vunpack.c.l.b16 %v956
    %v1089 = vunpack.c.l.b16 %v957
    %v1090 = vunpack.c.l.b16 %v958
    %v1091 = vunpack.c.l.b16 %v959
    %v1092 = vunpack.c.l.b16 %v960
    %v1093 = vunpack.c.l.b16 %v961
    %v1094 = vunpack.c.l.b16 %v962
    %v1095 = vunpack.c.l.b16 %v963
    %v1096 = vunpack.c.l.b16 %v964
    %v1097 = vunpack.c.l.b16 %v965
    %v1098 = vunpack.c.l.b16 %v966
    %v1099 = vunpack.c.l.b16 %v967
    %v1100 = vunpack.c.l.b16 %v968
    %v1101 = vunpack.c.l.b16 %v969
    %v1102 = vunpack.c.l.b16 %v970
    %v1103 = vunpack.c.l.b16 %v971
    %v1104 = vunpack.c.l.b16 %v972
    %v1105 = vunpack.c.l.b16 %v973
    %v1106 = vunpack.c.l.b16 %v974
    %v1107 = vunpack.c.l.b16 %v975
    %v1108 = vunpack.c.l.b16 %v976
    %v1109 = vunpack.c.l.b16 %v977
    %v1110 = vunpack.c.l.b16 %v978
    %v1111 = vpack.c.b16 %v1048, %v1047
    %v1112 = vpack.c.b16 %v1050, %v1049
    %v1113 = vpack.c.b16 %v1052, %v1051
    %v1114 = vpack.c.b16 %v1054, %v1053
    %v1115 = vpack.c.b16 %v1056, %v1055
    %v1116 = vpack.c.b16 %v1058, %v1057
    %v1117 = vpack.c.b16 %v1060, %v1059
    %v1118 = vpack.c.b16 %v1062, %v1061
    %v1119 = vpack.c.b16 %v1064, %v1063
    %v1120 = vpack.c.b16 %v1066, %v1065
    %v1121 = vpack.c.b16 %v1068, %v1067
    %v1122 = vpack.c.b16 %v1070, %v1069
    %v1123 = vpack.c.b16 %v1072, %v1071
    %v1124 = vpack.c.b16 %v1074, %v1073
    %v1125 = vpack.c.b16 %v1076, %v1075
    %v1126 = vpack.c.b16 %v1078, %v1077
    %v1127 = vpack.c.b16 %v1080, %v1079
    %v1128 = vpack.c.b16 %v1082, %v1081
    %v1129 = vpack.c.b16 %v1084, %v1083
    %v1130 = vpack.c.b16 %v1086, %v1085
    %v1131 = vpack.c.b16 %v1088, %v1087
    %v1132 = vpack.c.b16 %v1090, %v1089
    %v1133 = vpack.c.b16 %v1092, %v1091
    %v1134 = vpack.c.b16 %v1094, %v1093
    %v1135 = vpack.c.b16 %v1096, %v1095
    %v1136 = vpack.c.b16 %v1098, %v1097
    %v1137 = vpack.c.b16 %v1100, %v1099
    %v1138 = vpack.c.b16 %v1102, %v1101
    %v1139 = vpack.c.b16 %v1104, %v1103
    %v1140 = vpack.c.b16 %v1106, %v1105
    %v1141 = vpack.c.b16 %v1108, %v1107
    %v1142 = vpack.c.b16 %v1110, %v1109
    %1175 = vmatpush.bf16.msra.mxu0 %v1118
    %1176 = vmatpush.bf16.msra.mxu0 %v1117
    %1177 = vmatpush.bf16.msra.mxu0 %v1116
    %1178 = vmatpush.bf16.msra.mxu0 %v1115
    %1179 = vmatpush.bf16.msra.mxu0 %v1114
    %1180 = vmatpush.bf16.msra.mxu0 %v1113
    %1181 = vmatpush.bf16.msra.mxu0 %v1112
    %1182 = vmatpush.bf16.msra.mxu0 %v1111
    %1183 = vmatmul.bf16.gmra.mxu0 %v911
    %v1184 = vpop.f32.mrf.mxu0
    %v1185 = vadd.f32 %v981, %v1184
    %v1186 = vpop.f32.mrf.mxu0
    %v1187 = vadd.f32 %v981, %v1186
    %1188 = vdwg.mxu0
    %1189 = vmatpush.bf16.msra.mxu0 %v1126
    %1190 = vmatpush.bf16.msra.mxu0 %v1125
    %1191 = vmatpush.bf16.msra.mxu0 %v1124
    %1192 = vmatpush.bf16.msra.mxu0 %v1123
    %1193 = vmatpush.bf16.msra.mxu0 %v1122
    %1194 = vmatpush.bf16.msra.mxu0 %v1121
    %1195 = vmatpush.bf16.msra.mxu0 %v1120
    %1196 = vmatpush.bf16.msra.mxu0 %v1119
    %1197 = vmatmul.bf16.gmra.mxu0 %v912
    %v1198 = vpop.f32.mrf.mxu0
    %v1199 = vadd.f32 %v1185, %v1198
    %v1200 = vpop.f32.mrf.mxu0
    %v1201 = vadd.f32 %v1187, %v1200
    %1202 = vdwg.mxu0
    %1203 = vmatpush.bf16.msra.mxu0 %v1134
    %1204 = vmatpush.bf16.msra.mxu0 %v1133
    %1205 = vmatpush.bf16.msra.mxu0 %v1132
    %1206 = vmatpush.bf16.msra.mxu0 %v1131
    %1207 = vmatpush.bf16.msra.mxu0 %v1130
    %1208 = vmatpush.bf16.msra.mxu0 %v1129
    %1209 = vmatpush.bf16.msra.mxu0 %v1128
    %1210 = vmatpush.bf16.msra.mxu0 %v1127
    %1211 = vmatmul.bf16.gmra.mxu0 %v913
    %v1212 = vpop.f32.mrf.mxu0
    %v1213 = vadd.f32 %v1199, %v1212
    %v1214 = vpop.f32.mrf.mxu0
    %v1215 = vadd.f32 %v1201, %v1214
    %1216 = vdwg.mxu0
    %1217 = vmatpush.bf16.msra.mxu0 %v1142
    %1218 = vmatpush.bf16.msra.mxu0 %v1141
    %1219 = vmatpush.bf16.msra.mxu0 %v1140
    %1220 = vmatpush.bf16.msra.mxu0 %v1139
    %1221 = vmatpush.bf16.msra.mxu0 %v1138
    %1222 = vmatpush.bf16.msra.mxu0 %v1137
    %1223 = vmatpush.bf16.msra.mxu0 %v1136
    %1224 = vmatpush.bf16.msra.mxu0 %v1135
    %1225 = vmatmul.bf16.gmra.mxu0 %v914
    %v1226 = vpop.f32.mrf.mxu0
    %v1227 = vadd.f32 %v1213, %v1226
    %v1228 = vpop.f32.mrf.mxu0
    %v1229 = vadd.f32 %v1215, %v1228
    %1230 = vdwg.mxu0
    %v1231 = vmax.f32 %v1227, 0.0
    %v1232 = vmax.f32 %v1229, 0.0
    %v1233 = vpack.c.bf16 %v750, %v749
    %v1234 = vpack.c.bf16 %v1232, %v1231
    %v1235 = vld [vmem:[#allocation13] sm:$0xff]
    %v1236 = vld [vmem:[#allocation13 + $0x8] sm:$0xff]
    %v1237 = vld [vmem:[#allocation13 + $0x10] sm:$0xff]
    %v1238 = vld [vmem:[#allocation13 + $0x18] sm:$0xff]
    %v1239 = vld [vmem:[#allocation13 + $0x20] sm:$0xff]
    %v1240 = vld [vmem:[#allocation13 + $0x28] sm:$0xff]
    %v1241 = vld [vmem:[#allocation13 + $0x30] sm:$0xff]
    %v1242 = vld [vmem:[#allocation13 + $0x38] sm:$0xff]
    %v1243 = vld [vmem:[#allocation13 + $0x40] sm:$0xff]
    %v1244 = vld [vmem:[#allocation13 + $0x48] sm:$0xff]
    %v1245 = vld [vmem:[#allocation13 + $0x50] sm:$0xff]
    %v1246 = vld [vmem:[#allocation13 + $0x58] sm:$0xff]
    %v1247 = vld [vmem:[#allocation13 + $0x60] sm:$0xff]
    %v1248 = vld [vmem:[#allocation13 + $0x68] sm:$0xff]
    %v1249 = vld [vmem:[#allocation13 + $0x70] sm:$0xff]
    %v1250 = vld [vmem:[#allocation13 + $0x78] sm:$0xff]
    %v1251 = vld [vmem:[#allocation13 + $0x80] sm:$0xff]
    %v1252 = vld [vmem:[#allocation13 + $0x88] sm:$0xff]
    %v1253 = vld [vmem:[#allocation13 + $0x90] sm:$0xff]
    %v1254 = vld [vmem:[#allocation13 + $0x98] sm:$0xff]
    %v1255 = vld [vmem:[#allocation13 + $0xa0] sm:$0xff]
    %v1256 = vld [vmem:[#allocation13 + $0xa8] sm:$0xff]
    %v1257 = vld [vmem:[#allocation13 + $0xb0] sm:$0xff]
    %v1258 = vld [vmem:[#allocation13 + $0xb8] sm:$0xff]
    %v1259 = vld [vmem:[#allocation13 + $0xc0] sm:$0xff]
    %v1260 = vld [vmem:[#allocation13 + $0xc8] sm:$0xff]
    %v1261 = vld [vmem:[#allocation13 + $0xd0] sm:$0xff]
    %v1262 = vld [vmem:[#allocation13 + $0xd8] sm:$0xff]
    %v1263 = vld [vmem:[#allocation13 + $0xe0] sm:$0xff]
    %v1264 = vld [vmem:[#allocation13 + $0xe8] sm:$0xff]
    %v1265 = vld [vmem:[#allocation13 + $0xf0] sm:$0xff]
    %v1266 = vld [vmem:[#allocation13 + $0xf8] sm:$0xff]
    %v1267 = vld [vmem:[%s6] sm:$0x3]
    %v1269 = vperm.slane %v1267, 0
    %v1270 = vperm.slane %v1267, 1
    %v1305 = vunpack.c.l.b16 %v1235
    %v1306 = vunpack.c.h.b16 %v1235
    %v1307 = vunpack.c.l.b16 %v1236
    %v1308 = vunpack.c.h.b16 %v1236
    %v1309 = vunpack.c.l.b16 %v1237
    %v1310 = vunpack.c.h.b16 %v1237
    %v1311 = vunpack.c.l.b16 %v1238
    %v1312 = vunpack.c.h.b16 %v1238
    %v1313 = vunpack.c.l.b16 %v1239
    %v1314 = vunpack.c.h.b16 %v1239
    %v1315 = vunpack.c.l.b16 %v1240
    %v1316 = vunpack.c.h.b16 %v1240
    %v1317 = vunpack.c.l.b16 %v1241
    %v1318 = vunpack.c.h.b16 %v1241
    %v1319 = vunpack.c.l.b16 %v1242
    %v1320 = vunpack.c.h.b16 %v1242
    %v1321 = vunpack.c.l.b16 %v1243
    %v1322 = vunpack.c.h.b16 %v1243
    %v1323 = vunpack.c.l.b16 %v1244
    %v1324 = vunpack.c.h.b16 %v1244
    %v1325 = vunpack.c.l.b16 %v1245
    %v1326 = vunpack.c.h.b16 %v1245
    %v1327 = vunpack.c.l.b16 %v1246
    %v1328 = vunpack.c.h.b16 %v1246
    %v1329 = vunpack.c.l.b16 %v1247
    %v1330 = vunpack.c.h.b16 %v1247
    %v1331 = vunpack.c.l.b16 %v1248
    %v1332 = vunpack.c.h.b16 %v1248
    %v1333 = vunpack.c.l.b16 %v1249
    %v1334 = vunpack.c.h.b16 %v1249
    %v1335 = vunpack.c.l.b16 %v1250
    %v1336 = vunpack.c.h.b16 %v1250
    %v1337 = vunpack.c.l.b16 %v1251
    %v1338 = vunpack.c.h.b16 %v1251
    %v1339 = vunpack.c.l.b16 %v1252
    %v1340 = vunpack.c.h.b16 %v1252
    %v1341 = vunpack.c.l.b16 %v1253
    %v1342 = vunpack.c.h.b16 %v1253
    %v1343 = vunpack.c.l.b16 %v1254
    %v1344 = vunpack.c.h.b16 %v1254
    %v1345 = vunpack.c.l.b16 %v1255
    %v1346 = vunpack.c.h.b16 %v1255
    %v1347 = vunpack.c.l.b16 %v1256
    %v1348 = vunpack.c.h.b16 %v1256
    %v1349 = vunpack.c.l.b16 %v1257
    %v1350 = vunpack.c.h.b16 %v1257
    %v1351 = vunpack.c.l.b16 %v1258
    %v1352 = vunpack.c.h.b16 %v1258
    %v1353 = vunpack.c.l.b16 %v1259
    %v1354 = vunpack.c.h.b16 %v1259
    %v1355 = vunpack.c.l.b16 %v1260
    %v1356 = vunpack.c.h.b16 %v1260
    %v1357 = vunpack.c.l.b16 %v1261
    %v1358 = vunpack.c.h.b16 %v1261
    %v1359 = vunpack.c.l.b16 %v1262
    %v1360 = vunpack.c.h.b16 %v1262
    %v1361 = vunpack.c.l.b16 %v1263
    %v1362 = vunpack.c.h.b16 %v1263
    %v1363 = vunpack.c.l.b16 %v1264
    %v1364 = vunpack.c.h.b16 %v1264
    %v1365 = vunpack.c.l.b16 %v1265
    %v1366 = vunpack.c.h.b16 %v1265
    %v1367 = vunpack.c.l.b16 %v1266
    %v1368 = vunpack.c.h.b16 %v1266
    %v1369 = vpack.c.b16 %v1307, %v1305
    %v1370 = vpack.c.b16 %v1308, %v1306
    %v1371 = vpack.c.b16 %v1311, %v1309
    %v1372 = vpack.c.b16 %v1312, %v1310
    %v1373 = vpack.c.b16 %v1315, %v1313
    %v1374 = vpack.c.b16 %v1316, %v1314
    %v1375 = vpack.c.b16 %v1319, %v1317
    %v1376 = vpack.c.b16 %v1320, %v1318
    %v1377 = vpack.c.b16 %v1323, %v1321
    %v1378 = vpack.c.b16 %v1324, %v1322
    %v1379 = vpack.c.b16 %v1327, %v1325
    %v1380 = vpack.c.b16 %v1328, %v1326
    %v1381 = vpack.c.b16 %v1331, %v1329
    %v1382 = vpack.c.b16 %v1332, %v1330
    %v1383 = vpack.c.b16 %v1335, %v1333
    %v1384 = vpack.c.b16 %v1336, %v1334
    %v1385 = vpack.c.b16 %v1339, %v1337
    %v1386 = vpack.c.b16 %v1340, %v1338
    %v1387 = vpack.c.b16 %v1343, %v1341
    %v1388 = vpack.c.b16 %v1344, %v1342
    %v1389 = vpack.c.b16 %v1347, %v1345
    %v1390 = vpack.c.b16 %v1348, %v1346
    %v1391 = vpack.c.b16 %v1351, %v1349
    %v1392 = vpack.c.b16 %v1352, %v1350
    %v1393 = vpack.c.b16 %v1355, %v1353
    %v1394 = vpack.c.b16 %v1356, %v1354
    %v1395 = vpack.c.b16 %v1359, %v1357
    %v1396 = vpack.c.b16 %v1360, %v1358
    %v1397 = vpack.c.b16 %v1363, %v1361
    %v1398 = vpack.c.b16 %v1364, %v1362
    %v1399 = vpack.c.b16 %v1367, %v1365
    %v1400 = vpack.c.b16 %v1368, %v1366
    %1433 = vmatpush.bf16.msra.mxu0 %v1383
    %1434 = vmatpush.bf16.msra.mxu0 %v1381
    %1435 = vmatpush.bf16.msra.mxu0 %v1379
    %1436 = vmatpush.bf16.msra.mxu0 %v1377
    %1437 = vmatpush.bf16.msra.mxu0 %v1375
    %1438 = vmatpush.bf16.msra.mxu0 %v1373
    %1439 = vmatpush.bf16.msra.mxu0 %v1371
    %1440 = vmatpush.bf16.msra.mxu0 %v1369
    %1441 = vmatmul.bf16.gmra.mxu0 %v1233
    %v1442 = vpop.f32.mrf.mxu0
    %v1443 = vadd.f32 %v1269, %v1442
    %v1444 = vpop.f32.mrf.mxu0
    %v1445 = vadd.f32 %v1269, %v1444
    %1446 = vdwg.mxu0
    %1447 = vmatpush.bf16.msra.mxu0 %v1399
    %1448 = vmatpush.bf16.msra.mxu0 %v1397
    %1449 = vmatpush.bf16.msra.mxu0 %v1395
    %1450 = vmatpush.bf16.msra.mxu0 %v1393
    %1451 = vmatpush.bf16.msra.mxu0 %v1391
    %1452 = vmatpush.bf16.msra.mxu0 %v1389
    %1453 = vmatpush.bf16.msra.mxu0 %v1387
    %1454 = vmatpush.bf16.msra.mxu0 %v1385
    %1455 = vmatmul.bf16.gmra.mxu0 %v1234
    %v1456 = vpop.f32.mrf.mxu0
    %v1457 = vadd.f32 %v1443, %v1456
    %v1458 = vpop.f32.mrf.mxu0
    %v1459 = vadd.f32 %v1445, %v1458
    %1460 = vdwg.mxu0
    %1461 = vmatpush.bf16.msra.mxu0 %v1384
    %1462 = vmatpush.bf16.msra.mxu0 %v1382
    %1463 = vmatpush.bf16.msra.mxu0 %v1380
    %1464 = vmatpush.bf16.msra.mxu0 %v1378
    %1465 = vmatpush.bf16.msra.mxu0 %v1376
    %1466 = vmatpush.bf16.msra.mxu0 %v1374
    %1467 = vmatpush.bf16.msra.mxu0 %v1372
    %1468 = vmatpush.bf16.msra.mxu0 %v1370
    %1469 = vmatmul.bf16.gmra.mxu0 %v1233
    %v1470 = vpop.f32.mrf.mxu0
    %v1471 = vadd.f32 %v1270, %v1470
    %v1472 = vpop.f32.mrf.mxu0
    %v1473 = vadd.f32 %v1270, %v1472
    %1474 = vdwg.mxu0
    %1475 = vmatpush.bf16.msra.mxu0 %v1400
    %1476 = vmatpush.bf16.msra.mxu0 %v1398
    %1477 = vmatpush.bf16.msra.mxu0 %v1396
    %1478 = vmatpush.bf16.msra.mxu0 %v1394
    %1479 = vmatpush.bf16.msra.mxu0 %v1392
    %1480 = vmatpush.bf16.msra.mxu0 %v1390
    %1481 = vmatpush.bf16.msra.mxu0 %v1388
    %1482 = vmatpush.bf16.msra.mxu0 %v1386
    %1483 = vmatmul.bf16.gmra.mxu0 %v1234
    %v1484 = vpop.f32.mrf.mxu0
    %v1485 = vadd.f32 %v1471, %v1484
    %v1486 = vpop.f32.mrf.mxu0
    %v1487 = vadd.f32 %v1473, %v1486
    %1488 = vdwg.mxu0
    %v1489 = vmax.f32 %v1457, 0.0
    %v1490 = vmax.f32 %v1485, 0.0
    %v1491 = vmax.f32 %v1459, 0.0
    %v1492 = vmax.f32 %v1487, 0.0
    %v1493 = vpack.c.bf16 %v1491, %v1489
    %v1494 = vpack.c.bf16 %v1492, %v1490
    %v1495 = vld [vmem:[#allocation15] sm:$0xff]
    %v1496 = vld [vmem:[#allocation15 + $0x8] sm:$0xff]
    %v1497 = vld [vmem:[#allocation15 + $0x10] sm:$0xff]
    %v1498 = vld [vmem:[#allocation15 + $0x18] sm:$0xff]
    %v1499 = vld [vmem:[#allocation15 + $0x20] sm:$0xff]
    %v1500 = vld [vmem:[#allocation15 + $0x28] sm:$0xff]
    %v1501 = vld [vmem:[#allocation15 + $0x30] sm:$0xff]
    %v1502 = vld [vmem:[#allocation15 + $0x38] sm:$0xff]
    %v1503 = vld [vmem:[#allocation15 + $0x40] sm:$0xff]
    %v1504 = vld [vmem:[#allocation15 + $0x48] sm:$0xff]
    %v1505 = vld [vmem:[#allocation15 + $0x50] sm:$0xff]
    %v1506 = vld [vmem:[#allocation15 + $0x58] sm:$0xff]
    %v1507 = vld [vmem:[#allocation15 + $0x60] sm:$0xff]
    %v1508 = vld [vmem:[#allocation15 + $0x68] sm:$0xff]
    %v1509 = vld [vmem:[#allocation15 + $0x70] sm:$0xff]
    %v1510 = vld [vmem:[#allocation15 + $0x78] sm:$0xff]
    %v1511 = vld [vmem:[#allocation15 + $0x80] sm:$0xff]
    %v1512 = vld [vmem:[#allocation15 + $0x88] sm:$0xff]
    %v1513 = vld [vmem:[#allocation15 + $0x90] sm:$0xff]
    %v1514 = vld [vmem:[#allocation15 + $0x98] sm:$0xff]
    %v1515 = vld [vmem:[#allocation15 + $0xa0] sm:$0xff]
    %v1516 = vld [vmem:[#allocation15 + $0xa8] sm:$0xff]
    %v1517 = vld [vmem:[#allocation15 + $0xb0] sm:$0xff]
    %v1518 = vld [vmem:[#allocation15 + $0xb8] sm:$0xff]
    %v1519 = vld [vmem:[#allocation15 + $0xc0] sm:$0xff]
    %v1520 = vld [vmem:[#allocation15 + $0xc8] sm:$0xff]
    %v1521 = vld [vmem:[#allocation15 + $0xd0] sm:$0xff]
    %v1522 = vld [vmem:[#allocation15 + $0xd8] sm:$0xff]
    %v1523 = vld [vmem:[#allocation15 + $0xe0] sm:$0xff]
    %v1524 = vld [vmem:[#allocation15 + $0xe8] sm:$0xff]
    %v1525 = vld [vmem:[#allocation15 + $0xf0] sm:$0xff]
    %v1526 = vld [vmem:[#allocation15 + $0xf8] sm:$0xff]
    %v1527 = vld [vmem:[%s8] sm:$0x3]
    %v1529 = vperm.slane %v1527, 0
    %v1530 = vperm.slane %v1527, 1
    %v1565 = vunpack.c.l.b16 %v1495
    %v1566 = vunpack.c.h.b16 %v1495
    %v1567 = vunpack.c.l.b16 %v1496
    %v1568 = vunpack.c.h.b16 %v1496
    %v1569 = vunpack.c.l.b16 %v1497
    %v1570 = vunpack.c.h.b16 %v1497
    %v1571 = vunpack.c.l.b16 %v1498
    %v1572 = vunpack.c.h.b16 %v1498
    %v1573 = vunpack.c.l.b16 %v1499
    %v1574 = vunpack.c.h.b16 %v1499
    %v1575 = vunpack.c.l.b16 %v1500
    %v1576 = vunpack.c.h.b16 %v1500
    %v1577 = vunpack.c.l.b16 %v1501
    %v1578 = vunpack.c.h.b16 %v1501
    %v1579 = vunpack.c.l.b16 %v1502
    %v1580 = vunpack.c.h.b16 %v1502
    %v1581 = vunpack.c.l.b16 %v1503
    %v1582 = vunpack.c.h.b16 %v1503
    %v1583 = vunpack.c.l.b16 %v1504
    %v1584 = vunpack.c.h.b16 %v1504
    %v1585 = vunpack.c.l.b16 %v1505
    %v1586 = vunpack.c.h.b16 %v1505
    %v1587 = vunpack.c.l.b16 %v1506
    %v1588 = vunpack.c.h.b16 %v1506
    %v1589 = vunpack.c.l.b16 %v1507
    %v1590 = vunpack.c.h.b16 %v1507
    %v1591 = vunpack.c.l.b16 %v1508
    %v1592 = vunpack.c.h.b16 %v1508
    %v1593 = vunpack.c.l.b16 %v1509
    %v1594 = vunpack.c.h.b16 %v1509
    %v1595 = vunpack.c.l.b16 %v1510
    %v1596 = vunpack.c.h.b16 %v1510
    %v1597 = vunpack.c.l.b16 %v1511
    %v1598 = vunpack.c.h.b16 %v1511
    %v1599 = vunpack.c.l.b16 %v1512
    %v1600 = vunpack.c.h.b16 %v1512
    %v1601 = vunpack.c.l.b16 %v1513
    %v1602 = vunpack.c.h.b16 %v1513
    %v1603 = vunpack.c.l.b16 %v1514
    %v1604 = vunpack.c.h.b16 %v1514
    %v1605 = vunpack.c.l.b16 %v1515
    %v1606 = vunpack.c.h.b16 %v1515
    %v1607 = vunpack.c.l.b16 %v1516
    %v1608 = vunpack.c.h.b16 %v1516
    %v1609 = vunpack.c.l.b16 %v1517
    %v1610 = vunpack.c.h.b16 %v1517
    %v1611 = vunpack.c.l.b16 %v1518
    %v1612 = vunpack.c.h.b16 %v1518
    %v1613 = vunpack.c.l.b16 %v1519
    %v1614 = vunpack.c.h.b16 %v1519
    %v1615 = vunpack.c.l.b16 %v1520
    %v1616 = vunpack.c.h.b16 %v1520
    %v1617 = vunpack.c.l.b16 %v1521
    %v1618 = vunpack.c.h.b16 %v1521
    %v1619 = vunpack.c.l.b16 %v1522
    %v1620 = vunpack.c.h.b16 %v1522
    %v1621 = vunpack.c.l.b16 %v1523
    %v1622 = vunpack.c.h.b16 %v1523
    %v1623 = vunpack.c.l.b16 %v1524
    %v1624 = vunpack.c.h.b16 %v1524
    %v1625 = vunpack.c.l.b16 %v1525
    %v1626 = vunpack.c.h.b16 %v1525
    %v1627 = vunpack.c.l.b16 %v1526
    %v1628 = vunpack.c.h.b16 %v1526
    %v1629 = vpack.c.b16 %v1567, %v1565
    %v1630 = vpack.c.b16 %v1568, %v1566
    %v1631 = vpack.c.b16 %v1571, %v1569
    %v1632 = vpack.c.b16 %v1572, %v1570
    %v1633 = vpack.c.b16 %v1575, %v1573
    %v1634 = vpack.c.b16 %v1576, %v1574
    %v1635 = vpack.c.b16 %v1579, %v1577
    %v1636 = vpack.c.b16 %v1580, %v1578
    %v1637 = vpack.c.b16 %v1583, %v1581
    %v1638 = vpack.c.b16 %v1584, %v1582
    %v1639 = vpack.c.b16 %v1587, %v1585
    %v1640 = vpack.c.b16 %v1588, %v1586
    %v1641 = vpack.c.b16 %v1591, %v1589
    %v1642 = vpack.c.b16 %v1592, %v1590
    %v1643 = vpack.c.b16 %v1595, %v1593
    %v1644 = vpack.c.b16 %v1596, %v1594
    %v1645 = vpack.c.b16 %v1599, %v1597
    %v1646 = vpack.c.b16 %v1600, %v1598
    %v1647 = vpack.c.b16 %v1603, %v1601
    %v1648 = vpack.c.b16 %v1604, %v1602
    %v1649 = vpack.c.b16 %v1607, %v1605
    %v1650 = vpack.c.b16 %v1608, %v1606
    %v1651 = vpack.c.b16 %v1611, %v1609
    %v1652 = vpack.c.b16 %v1612, %v1610
    %v1653 = vpack.c.b16 %v1615, %v1613
    %v1654 = vpack.c.b16 %v1616, %v1614
    %v1655 = vpack.c.b16 %v1619, %v1617
    %v1656 = vpack.c.b16 %v1620, %v1618
    %v1657 = vpack.c.b16 %v1623, %v1621
    %v1658 = vpack.c.b16 %v1624, %v1622
    %v1659 = vpack.c.b16 %v1627, %v1625
    %v1660 = vpack.c.b16 %v1628, %v1626
    %1693 = vmatpush.bf16.msra.mxu0 %v1643
    %1694 = vmatpush.bf16.msra.mxu0 %v1641
    %1695 = vmatpush.bf16.msra.mxu0 %v1639
    %1696 = vmatpush.bf16.msra.mxu0 %v1637
    %1697 = vmatpush.bf16.msra.mxu0 %v1635
    %1698 = vmatpush.bf16.msra.mxu0 %v1633
    %1699 = vmatpush.bf16.msra.mxu0 %v1631
    %1700 = vmatpush.bf16.msra.mxu0 %v1629
    %1701 = vmatmul.bf16.gmra.mxu0 %v1493
    %v1702 = vpop.f32.mrf.mxu0
    %v1703 = vadd.f32 %v1529, %v1702
    %v1704 = vpop.f32.mrf.mxu0
    %v1705 = vadd.f32 %v1529, %v1704
    %1706 = vdwg.mxu0
    %1707 = vmatpush.bf16.msra.mxu0 %v1659
    %1708 = vmatpush.bf16.msra.mxu0 %v1657
    %1709 = vmatpush.bf16.msra.mxu0 %v1655
    %1710 = vmatpush.bf16.msra.mxu0 %v1653
    %1711 = vmatpush.bf16.msra.mxu0 %v1651
    %1712 = vmatpush.bf16.msra.mxu0 %v1649
    %1713 = vmatpush.bf16.msra.mxu0 %v1647
    %1714 = vmatpush.bf16.msra.mxu0 %v1645
    %1715 = vmatmul.bf16.gmra.mxu0 %v1494
    %v1716 = vpop.f32.mrf.mxu0
    %v1717 = vadd.f32 %v1703, %v1716
    %v1718 = vpop.f32.mrf.mxu0
    %v1719 = vadd.f32 %v1705, %v1718
    %1720 = vdwg.mxu0
    %1721 = vmatpush.bf16.msra.mxu0 %v1644
    %1722 = vmatpush.bf16.msra.mxu0 %v1642
    %1723 = vmatpush.bf16.msra.mxu0 %v1640
    %1724 = vmatpush.bf16.msra.mxu0 %v1638
    %1725 = vmatpush.bf16.msra.mxu0 %v1636
    %1726 = vmatpush.bf16.msra.mxu0 %v1634
    %1727 = vmatpush.bf16.msra.mxu0 %v1632
    %1728 = vmatpush.bf16.msra.mxu0 %v1630
    %1729 = vmatmul.bf16.gmra.mxu0 %v1493
    %v1730 = vpop.f32.mrf.mxu0
    %v1731 = vadd.f32 %v1530, %v1730
    %v1732 = vpop.f32.mrf.mxu0
    %v1733 = vadd.f32 %v1530, %v1732
    %1734 = vdwg.mxu0
    %1735 = vmatpush.bf16.msra.mxu0 %v1660
    %1736 = vmatpush.bf16.msra.mxu0 %v1658
    %1737 = vmatpush.bf16.msra.mxu0 %v1656
    %1738 = vmatpush.bf16.msra.mxu0 %v1654
    %1739 = vmatpush.bf16.msra.mxu0 %v1652
    %1740 = vmatpush.bf16.msra.mxu0 %v1650
    %1741 = vmatpush.bf16.msra.mxu0 %v1648
    %1742 = vmatpush.bf16.msra.mxu0 %v1646
    %1743 = vmatmul.bf16.gmra.mxu0 %v1494
    %v1744 = vpop.f32.mrf.mxu0
    %v1745 = vadd.f32 %v1731, %v1744
    %v1746 = vpop.f32.mrf.mxu0
    %v1747 = vadd.f32 %v1733, %v1746
    %1748 = vdwg.mxu0
    %v1749 = vmax.f32 %v1717, 0.0
    %v1750 = vmax.f32 %v1745, 0.0
    %v1751 = vmax.f32 %v1719, 0.0
    %v1752 = vmax.f32 %v1747, 0.0
    %v1753 = vpack.c.bf16 %v1751, %v1749
    %v1754 = vpack.c.bf16 %v1752, %v1750
    %v1755 = vld [vmem:[#allocation16] sm:$0xff]
    %v1756 = vld [vmem:[#allocation16 + $0x8] sm:$0xff]
    %v1757 = vld [vmem:[#allocation16 + $0x10] sm:$0xff]
    %v1758 = vld [vmem:[#allocation16 + $0x18] sm:$0xff]
    %v1759 = vld [vmem:[#allocation16 + $0x20] sm:$0xff]
    %v1760 = vld [vmem:[#allocation16 + $0x28] sm:$0xff]
    %v1761 = vld [vmem:[#allocation16 + $0x30] sm:$0xff]
    %v1762 = vld [vmem:[#allocation16 + $0x38] sm:$0xff]
    %v1763 = vld [vmem:[#allocation16 + $0x40] sm:$0xff]
    %v1764 = vld [vmem:[#allocation16 + $0x48] sm:$0xff]
    %v1765 = vld [vmem:[#allocation16 + $0x50] sm:$0xff]
    %v1766 = vld [vmem:[#allocation16 + $0x58] sm:$0xff]
    %v1767 = vld [vmem:[#allocation16 + $0x60] sm:$0xff]
    %v1768 = vld [vmem:[#allocation16 + $0x68] sm:$0xff]
    %v1769 = vld [vmem:[#allocation16 + $0x70] sm:$0xff]
    %v1770 = vld [vmem:[#allocation16 + $0x78] sm:$0xff]
    %v1771 = vld [vmem:[#allocation16 + $0x80] sm:$0xff]
    %v1772 = vld [vmem:[#allocation16 + $0x88] sm:$0xff]
    %v1773 = vld [vmem:[#allocation16 + $0x90] sm:$0xff]
    %v1774 = vld [vmem:[#allocation16 + $0x98] sm:$0xff]
    %v1775 = vld [vmem:[#allocation16 + $0xa0] sm:$0xff]
    %v1776 = vld [vmem:[#allocation16 + $0xa8] sm:$0xff]
    %v1777 = vld [vmem:[#allocation16 + $0xb0] sm:$0xff]
    %v1778 = vld [vmem:[#allocation16 + $0xb8] sm:$0xff]
    %v1779 = vld [vmem:[#allocation16 + $0xc0] sm:$0xff]
    %v1780 = vld [vmem:[#allocation16 + $0xc8] sm:$0xff]
    %v1781 = vld [vmem:[#allocation16 + $0xd0] sm:$0xff]
    %v1782 = vld [vmem:[#allocation16 + $0xd8] sm:$0xff]
    %v1783 = vld [vmem:[#allocation16 + $0xe0] sm:$0xff]
    %v1784 = vld [vmem:[#allocation16 + $0xe8] sm:$0xff]
    %v1785 = vld [vmem:[#allocation16 + $0xf0] sm:$0xff]
    %v1786 = vld [vmem:[#allocation16 + $0xf8] sm:$0xff]
    %v1787 = vld [vmem:[%s10] sm:$0x3]
    %v1789 = vperm.slane %v1787, 0
    %v1790 = vperm.slane %v1787, 1
    %v1825 = vunpack.c.l.b16 %v1755
    %v1826 = vunpack.c.h.b16 %v1755
    %v1827 = vunpack.c.l.b16 %v1756
    %v1828 = vunpack.c.h.b16 %v1756
    %v1829 = vunpack.c.l.b16 %v1757
    %v1830 = vunpack.c.h.b16 %v1757
    %v1831 = vunpack.c.l.b16 %v1758
    %v1832 = vunpack.c.h.b16 %v1758
    %v1833 = vunpack.c.l.b16 %v1759
    %v1834 = vunpack.c.h.b16 %v1759
    %v1835 = vunpack.c.l.b16 %v1760
    %v1836 = vunpack.c.h.b16 %v1760
    %v1837 = vunpack.c.l.b16 %v1761
    %v1838 = vunpack.c.h.b16 %v1761
    %v1839 = vunpack.c.l.b16 %v1762
    %v1840 = vunpack.c.h.b16 %v1762
    %v1841 = vunpack.c.l.b16 %v1763
    %v1842 = vunpack.c.h.b16 %v1763
    %v1843 = vunpack.c.l.b16 %v1764
    %v1844 = vunpack.c.h.b16 %v1764
    %v1845 = vunpack.c.l.b16 %v1765
    %v1846 = vunpack.c.h.b16 %v1765
    %v1847 = vunpack.c.l.b16 %v1766
    %v1848 = vunpack.c.h.b16 %v1766
    %v1849 = vunpack.c.l.b16 %v1767
    %v1850 = vunpack.c.h.b16 %v1767
    %v1851 = vunpack.c.l.b16 %v1768
    %v1852 = vunpack.c.h.b16 %v1768
    %v1853 = vunpack.c.l.b16 %v1769
    %v1854 = vunpack.c.h.b16 %v1769
    %v1855 = vunpack.c.l.b16 %v1770
    %v1856 = vunpack.c.h.b16 %v1770
    %v1857 = vunpack.c.l.b16 %v1771
    %v1858 = vunpack.c.h.b16 %v1771
    %v1859 = vunpack.c.l.b16 %v1772
    %v1860 = vunpack.c.h.b16 %v1772
    %v1861 = vunpack.c.l.b16 %v1773
    %v1862 = vunpack.c.h.b16 %v1773
    %v1863 = vunpack.c.l.b16 %v1774
    %v1864 = vunpack.c.h.b16 %v1774
    %v1865 = vunpack.c.l.b16 %v1775
    %v1866 = vunpack.c.h.b16 %v1775
    %v1867 = vunpack.c.l.b16 %v1776
    %v1868 = vunpack.c.h.b16 %v1776
    %v1869 = vunpack.c.l.b16 %v1777
    %v1870 = vunpack.c.h.b16 %v1777
    %v1871 = vunpack.c.l.b16 %v1778
    %v1872 = vunpack.c.h.b16 %v1778
    %v1873 = vunpack.c.l.b16 %v1779
    %v1874 = vunpack.c.h.b16 %v1779
    %v1875 = vunpack.c.l.b16 %v1780
    %v1876 = vunpack.c.h.b16 %v1780
    %v1877 = vunpack.c.l.b16 %v1781
    %v1878 = vunpack.c.h.b16 %v1781
    %v1879 = vunpack.c.l.b16 %v1782
    %v1880 = vunpack.c.h.b16 %v1782
    %v1881 = vunpack.c.l.b16 %v1783
    %v1882 = vunpack.c.h.b16 %v1783
    %v1883 = vunpack.c.l.b16 %v1784
    %v1884 = vunpack.c.h.b16 %v1784
    %v1885 = vunpack.c.l.b16 %v1785
    %v1886 = vunpack.c.h.b16 %v1785
    %v1887 = vunpack.c.l.b16 %v1786
    %v1888 = vunpack.c.h.b16 %v1786
    %v1889 = vpack.c.b16 %v1827, %v1825
    %v1890 = vpack.c.b16 %v1828, %v1826
    %v1891 = vpack.c.b16 %v1831, %v1829
    %v1892 = vpack.c.b16 %v1832, %v1830
    %v1893 = vpack.c.b16 %v1835, %v1833
    %v1894 = vpack.c.b16 %v1836, %v1834
    %v1895 = vpack.c.b16 %v1839, %v1837
    %v1896 = vpack.c.b16 %v1840, %v1838
    %v1897 = vpack.c.b16 %v1843, %v1841
    %v1898 = vpack.c.b16 %v1844, %v1842
    %v1899 = vpack.c.b16 %v1847, %v1845
    %v1900 = vpack.c.b16 %v1848, %v1846
    %v1901 = vpack.c.b16 %v1851, %v1849
    %v1902 = vpack.c.b16 %v1852, %v1850
    %v1903 = vpack.c.b16 %v1855, %v1853
    %v1904 = vpack.c.b16 %v1856, %v1854
    %v1905 = vpack.c.b16 %v1859, %v1857
    %v1906 = vpack.c.b16 %v1860, %v1858
    %v1907 = vpack.c.b16 %v1863, %v1861
    %v1908 = vpack.c.b16 %v1864, %v1862
    %v1909 = vpack.c.b16 %v1867, %v1865
    %v1910 = vpack.c.b16 %v1868, %v1866
    %v1911 = vpack.c.b16 %v1871, %v1869
    %v1912 = vpack.c.b16 %v1872, %v1870
    %v1913 = vpack.c.b16 %v1875, %v1873
    %v1914 = vpack.c.b16 %v1876, %v1874
    %v1915 = vpack.c.b16 %v1879, %v1877
    %v1916 = vpack.c.b16 %v1880, %v1878
    %v1917 = vpack.c.b16 %v1883, %v1881
    %v1918 = vpack.c.b16 %v1884, %v1882
    %v1919 = vpack.c.b16 %v1887, %v1885
    %v1920 = vpack.c.b16 %v1888, %v1886
    %1953 = vmatpush.bf16.msra.mxu0 %v1903
    %1954 = vmatpush.bf16.msra.mxu0 %v1901
    %1955 = vmatpush.bf16.msra.mxu0 %v1899
    %1956 = vmatpush.bf16.msra.mxu0 %v1897
    %1957 = vmatpush.bf16.msra.mxu0 %v1895
    %1958 = vmatpush.bf16.msra.mxu0 %v1893
    %1959 = vmatpush.bf16.msra.mxu0 %v1891
    %1960 = vmatpush.bf16.msra.mxu0 %v1889
    %1961 = vmatmul.bf16.gmra.mxu0 %v1753
    %v1962 = vpop.f32.mrf.mxu0
    %v1963 = vadd.f32 %v1789, %v1962
    %v1964 = vpop.f32.mrf.mxu0
    %v1965 = vadd.f32 %v1789, %v1964
    %1966 = vdwg.mxu0
    %1967 = vmatpush.bf16.msra.mxu0 %v1919
    %1968 = vmatpush.bf16.msra.mxu0 %v1917
    %1969 = vmatpush.bf16.msra.mxu0 %v1915
    %1970 = vmatpush.bf16.msra.mxu0 %v1913
    %1971 = vmatpush.bf16.msra.mxu0 %v1911
    %1972 = vmatpush.bf16.msra.mxu0 %v1909
    %1973 = vmatpush.bf16.msra.mxu0 %v1907
    %1974 = vmatpush.bf16.msra.mxu0 %v1905
    %1975 = vmatmul.bf16.gmra.mxu0 %v1754
    %v1976 = vpop.f32.mrf.mxu0
    %v1977 = vadd.f32 %v1963, %v1976
    %v1978 = vpop.f32.mrf.mxu0
    %v1979 = vadd.f32 %v1965, %v1978
    %1980 = vdwg.mxu0
    %1981 = vmatpush.bf16.msra.mxu0 %v1904
    %1982 = vmatpush.bf16.msra.mxu0 %v1902
    %1983 = vmatpush.bf16.msra.mxu0 %v1900
    %1984 = vmatpush.bf16.msra.mxu0 %v1898
    %1985 = vmatpush.bf16.msra.mxu0 %v1896
    %1986 = vmatpush.bf16.msra.mxu0 %v1894
    %1987 = vmatpush.bf16.msra.mxu0 %v1892
    %1988 = vmatpush.bf16.msra.mxu0 %v1890
    %1989 = vmatmul.bf16.gmra.mxu0 %v1753
    %v1990 = vpop.f32.mrf.mxu0
    %v1991 = vadd.f32 %v1790, %v1990
    %v1992 = vpop.f32.mrf.mxu0
    %v1993 = vadd.f32 %v1790, %v1992
    %1994 = vdwg.mxu0
    %1995 = vmatpush.bf16.msra.mxu0 %v1920
    %1996 = vmatpush.bf16.msra.mxu0 %v1918
    %1997 = vmatpush.bf16.msra.mxu0 %v1916
    %1998 = vmatpush.bf16.msra.mxu0 %v1914
    %1999 = vmatpush.bf16.msra.mxu0 %v1912
    %2000 = vmatpush.bf16.msra.mxu0 %v1910
    %2001 = vmatpush.bf16.msra.mxu0 %v1908
    %2002 = vmatpush.bf16.msra.mxu0 %v1906
    %2003 = vmatmul.bf16.gmra.mxu0 %v1754
    %v2004 = vpop.f32.mrf.mxu0
    %v2005 = vadd.f32 %v1991, %v2004
    %v2006 = vpop.f32.mrf.mxu0
    %v2007 = vadd.f32 %v1993, %v2006
    %2008 = vdwg.mxu0
    %v2009 = vmax.f32 %v1977, 0.0
    %v2010 = vmax.f32 %v2005, 0.0
    %v2011 = vmax.f32 %v1979, 0.0
    %v2012 = vmax.f32 %v2007, 0.0
    %v2013 = vld [vmem:[%s21] sm:$0x3]
    %v2015 = vperm.slane %v2013, 0
    %v2016 = vperm.slane %v2013, 1
    %v2019 = vmul.f32 %v2009, %v2015
    %v2020 = vmul.f32 %v2010, %v2016
    %v2021 = vmul.f32 %v2011, %v2015
    %v2022 = vmul.f32 %v2012, %v2016
    %v2023 = vld [vmem:[%s22] sm:$0x3]
    %v2025 = vperm.slane %v2023, 0
    %v2026 = vperm.slane %v2023, 1
    %v2029 = vadd.f32 %v2019, %v2025
    %v2030 = vadd.f32 %v2020, %v2026
    %v2031 = vadd.f32 %v2021, %v2025
    %v2032 = vadd.f32 %v2022, %v2026
    %v2033 = vpack.c.bf16 %v2031, %v2029
    %v2034 = vpack.c.bf16 %v2032, %v2030
    %v2035 = vld [vmem:[#allocation18] sm:$0xff]
    %v2036 = vld [vmem:[#allocation18 + $0x8] sm:$0xff]
    %v2037 = vld [vmem:[#allocation18 + $0x10] sm:$0xff]
    %v2038 = vld [vmem:[#allocation18 + $0x18] sm:$0xff]
    %v2039 = vld [vmem:[#allocation18 + $0x20] sm:$0xff]
    %v2040 = vld [vmem:[#allocation18 + $0x28] sm:$0xff]
    %v2041 = vld [vmem:[#allocation18 + $0x30] sm:$0xff]
    %v2042 = vld [vmem:[#allocation18 + $0x38] sm:$0xff]
    %v2043 = vld [vmem:[#allocation18 + $0x40] sm:$0xff]
    %v2044 = vld [vmem:[#allocation18 + $0x48] sm:$0xff]
    %v2045 = vld [vmem:[#allocation18 + $0x50] sm:$0xff]
    %v2046 = vld [vmem:[#allocation18 + $0x58] sm:$0xff]
    %v2047 = vld [vmem:[#allocation18 + $0x60] sm:$0xff]
    %v2048 = vld [vmem:[#allocation18 + $0x68] sm:$0xff]
    %v2049 = vld [vmem:[#allocation18 + $0x70] sm:$0xff]
    %v2050 = vld [vmem:[#allocation18 + $0x78] sm:$0xff]
    %v2051 = vld [vmem:[#allocation18 + $0x80] sm:$0xff]
    %v2052 = vld [vmem:[#allocation18 + $0x88] sm:$0xff]
    %v2053 = vld [vmem:[#allocation18 + $0x90] sm:$0xff]
    %v2054 = vld [vmem:[#allocation18 + $0x98] sm:$0xff]
    %v2055 = vld [vmem:[#allocation18 + $0xa0] sm:$0xff]
    %v2056 = vld [vmem:[#allocation18 + $0xa8] sm:$0xff]
    %v2057 = vld [vmem:[#allocation18 + $0xb0] sm:$0xff]
    %v2058 = vld [vmem:[#allocation18 + $0xb8] sm:$0xff]
    %v2059 = vld [vmem:[#allocation18 + $0xc0] sm:$0xff]
    %v2060 = vld [vmem:[#allocation18 + $0xc8] sm:$0xff]
    %v2061 = vld [vmem:[#allocation18 + $0xd0] sm:$0xff]
    %v2062 = vld [vmem:[#allocation18 + $0xd8] sm:$0xff]
    %v2063 = vld [vmem:[#allocation18 + $0xe0] sm:$0xff]
    %v2064 = vld [vmem:[#allocation18 + $0xe8] sm:$0xff]
    %v2065 = vld [vmem:[#allocation18 + $0xf0] sm:$0xff]
    %v2066 = vld [vmem:[#allocation18 + $0xf8] sm:$0xff]
    %v2067 = vld [vmem:[%s12] sm:$0x3]
    %v2069 = vperm.slane %v2067, 0
    %v2070 = vperm.slane %v2067, 1
    %v2105 = vunpack.c.l.b16 %v2035
    %v2106 = vunpack.c.h.b16 %v2035
    %v2107 = vunpack.c.l.b16 %v2036
    %v2108 = vunpack.c.h.b16 %v2036
    %v2109 = vunpack.c.l.b16 %v2037
    %v2110 = vunpack.c.h.b16 %v2037
    %v2111 = vunpack.c.l.b16 %v2038
    %v2112 = vunpack.c.h.b16 %v2038
    %v2113 = vunpack.c.l.b16 %v2039
    %v2114 = vunpack.c.h.b16 %v2039
    %v2115 = vunpack.c.l.b16 %v2040
    %v2116 = vunpack.c.h.b16 %v2040
    %v2117 = vunpack.c.l.b16 %v2041
    %v2118 = vunpack.c.h.b16 %v2041
    %v2119 = vunpack.c.l.b16 %v2042
    %v2120 = vunpack.c.h.b16 %v2042
    %v2121 = vunpack.c.l.b16 %v2043
    %v2122 = vunpack.c.h.b16 %v2043
    %v2123 = vunpack.c.l.b16 %v2044
    %v2124 = vunpack.c.h.b16 %v2044
    %v2125 = vunpack.c.l.b16 %v2045
    %v2126 = vunpack.c.h.b16 %v2045
    %v2127 = vunpack.c.l.b16 %v2046
    %v2128 = vunpack.c.h.b16 %v2046
    %v2129 = vunpack.c.l.b16 %v2047
    %v2130 = vunpack.c.h.b16 %v2047
    %v2131 = vunpack.c.l.b16 %v2048
    %v2132 = vunpack.c.h.b16 %v2048
    %v2133 = vunpack.c.l.b16 %v2049
    %v2134 = vunpack.c.h.b16 %v2049
    %v2135 = vunpack.c.l.b16 %v2050
    %v2136 = vunpack.c.h.b16 %v2050
    %v2137 = vunpack.c.l.b16 %v2051
    %v2138 = vunpack.c.h.b16 %v2051
    %v2139 = vunpack.c.l.b16 %v2052
    %v2140 = vunpack.c.h.b16 %v2052
    %v2141 = vunpack.c.l.b16 %v2053
    %v2142 = vunpack.c.h.b16 %v2053
    %v2143 = vunpack.c.l.b16 %v2054
    %v2144 = vunpack.c.h.b16 %v2054
    %v2145 = vunpack.c.l.b16 %v2055
    %v2146 = vunpack.c.h.b16 %v2055
    %v2147 = vunpack.c.l.b16 %v2056
    %v2148 = vunpack.c.h.b16 %v2056
    %v2149 = vunpack.c.l.b16 %v2057
    %v2150 = vunpack.c.h.b16 %v2057
    %v2151 = vunpack.c.l.b16 %v2058
    %v2152 = vunpack.c.h.b16 %v2058
    %v2153 = vunpack.c.l.b16 %v2059
    %v2154 = vunpack.c.h.b16 %v2059
    %v2155 = vunpack.c.l.b16 %v2060
    %v2156 = vunpack.c.h.b16 %v2060
    %v2157 = vunpack.c.l.b16 %v2061
    %v2158 = vunpack.c.h.b16 %v2061
    %v2159 = vunpack.c.l.b16 %v2062
    %v2160 = vunpack.c.h.b16 %v2062
    %v2161 = vunpack.c.l.b16 %v2063
    %v2162 = vunpack.c.h.b16 %v2063
    %v2163 = vunpack.c.l.b16 %v2064
    %v2164 = vunpack.c.h.b16 %v2064
    %v2165 = vunpack.c.l.b16 %v2065
    %v2166 = vunpack.c.h.b16 %v2065
    %v2167 = vunpack.c.l.b16 %v2066
    %v2168 = vunpack.c.h.b16 %v2066
    %v2169 = vpack.c.b16 %v2107, %v2105
    %v2170 = vpack.c.b16 %v2108, %v2106
    %v2171 = vpack.c.b16 %v2111, %v2109
    %v2172 = vpack.c.b16 %v2112, %v2110
    %v2173 = vpack.c.b16 %v2115, %v2113
    %v2174 = vpack.c.b16 %v2116, %v2114
    %v2175 = vpack.c.b16 %v2119, %v2117
    %v2176 = vpack.c.b16 %v2120, %v2118
    %v2177 = vpack.c.b16 %v2123, %v2121
    %v2178 = vpack.c.b16 %v2124, %v2122
    %v2179 = vpack.c.b16 %v2127, %v2125
    %v2180 = vpack.c.b16 %v2128, %v2126
    %v2181 = vpack.c.b16 %v2131, %v2129
    %v2182 = vpack.c.b16 %v2132, %v2130
    %v2183 = vpack.c.b16 %v2135, %v2133
    %v2184 = vpack.c.b16 %v2136, %v2134
    %v2185 = vpack.c.b16 %v2139, %v2137
    %v2186 = vpack.c.b16 %v2140, %v2138
    %v2187 = vpack.c.b16 %v2143, %v2141
    %v2188 = vpack.c.b16 %v2144, %v2142
    %v2189 = vpack.c.b16 %v2147, %v2145
    %v2190 = vpack.c.b16 %v2148, %v2146
    %v2191 = vpack.c.b16 %v2151, %v2149
    %v2192 = vpack.c.b16 %v2152, %v2150
    %v2193 = vpack.c.b16 %v2155, %v2153
    %v2194 = vpack.c.b16 %v2156, %v2154
    %v2195 = vpack.c.b16 %v2159, %v2157
    %v2196 = vpack.c.b16 %v2160, %v2158
    %v2197 = vpack.c.b16 %v2163, %v2161
    %v2198 = vpack.c.b16 %v2164, %v2162
    %v2199 = vpack.c.b16 %v2167, %v2165
    %v2200 = vpack.c.b16 %v2168, %v2166
    %2233 = vmatpush.bf16.msra.mxu0 %v2183
    %2234 = vmatpush.bf16.msra.mxu0 %v2181
    %2235 = vmatpush.bf16.msra.mxu0 %v2179
    %2236 = vmatpush.bf16.msra.mxu0 %v2177
    %2237 = vmatpush.bf16.msra.mxu0 %v2175
    %2238 = vmatpush.bf16.msra.mxu0 %v2173
    %2239 = vmatpush.bf16.msra.mxu0 %v2171
    %2240 = vmatpush.bf16.msra.mxu0 %v2169
    %2241 = vmatmul.bf16.gmra.mxu0 %v2033
    %v2242 = vpop.f32.mrf.mxu0
    %v2243 = vadd.f32 %v2069, %v2242
    %v2244 = vpop.f32.mrf.mxu0
    %v2245 = vadd.f32 %v2069, %v2244
    %2246 = vdwg.mxu0
    %2247 = vmatpush.bf16.msra.mxu0 %v2199
    %2248 = vmatpush.bf16.msra.mxu0 %v2197
    %2249 = vmatpush.bf16.msra.mxu0 %v2195
    %2250 = vmatpush.bf16.msra.mxu0 %v2193
    %2251 = vmatpush.bf16.msra.mxu0 %v2191
    %2252 = vmatpush.bf16.msra.mxu0 %v2189
    %2253 = vmatpush.bf16.msra.mxu0 %v2187
    %2254 = vmatpush.bf16.msra.mxu0 %v2185
    %2255 = vmatmul.bf16.gmra.mxu0 %v2034
    %v2256 = vpop.f32.mrf.mxu0
    %v2257 = vadd.f32 %v2243, %v2256
    %v2258 = vpop.f32.mrf.mxu0
    %v2259 = vadd.f32 %v2245, %v2258
    %2260 = vdwg.mxu0
    %2261 = vmatpush.bf16.msra.mxu0 %v2184
    %2262 = vmatpush.bf16.msra.mxu0 %v2182
    %2263 = vmatpush.bf16.msra.mxu0 %v2180
    %2264 = vmatpush.bf16.msra.mxu0 %v2178
    %2265 = vmatpush.bf16.msra.mxu0 %v2176
    %2266 = vmatpush.bf16.msra.mxu0 %v2174
    %2267 = vmatpush.bf16.msra.mxu0 %v2172
    %2268 = vmatpush.bf16.msra.mxu0 %v2170
    %2269 = vmatmul.bf16.gmra.mxu0 %v2033
    %v2270 = vpop.f32.mrf.mxu0
    %v2271 = vadd.f32 %v2070, %v2270
    %v2272 = vpop.f32.mrf.mxu0
    %v2273 = vadd.f32 %v2070, %v2272
    %2274 = vdwg.mxu0
    %2275 = vmatpush.bf16.msra.mxu0 %v2200
    %2276 = vmatpush.bf16.msra.mxu0 %v2198
    %2277 = vmatpush.bf16.msra.mxu0 %v2196
    %2278 = vmatpush.bf16.msra.mxu0 %v2194
    %2279 = vmatpush.bf16.msra.mxu0 %v2192
    %2280 = vmatpush.bf16.msra.mxu0 %v2190
    %2281 = vmatpush.bf16.msra.mxu0 %v2188
    %2282 = vmatpush.bf16.msra.mxu0 %v2186
    %2283 = vmatmul.bf16.gmra.mxu0 %v2034
    %v2284 = vpop.f32.mrf.mxu0
    %v2285 = vadd.f32 %v2271, %v2284
    %v2286 = vpop.f32.mrf.mxu0
    %v2287 = vadd.f32 %v2273, %v2286
    %2288 = vdwg.mxu0
    %v2289 = vmax.f32 %v2257, 0.0
    %v2290 = vmax.f32 %v2285, 0.0
    %v2291 = vmax.f32 %v2259, 0.0
    %v2292 = vmax.f32 %v2287, 0.0
    %v2293 = vpack.c.bf16 %v2291, %v2289
    %v2294 = vpack.c.bf16 %v2292, %v2290
    %v2295 = vld [vmem:[#allocation19] sm:$0xff]
    %v2296 = vld [vmem:[#allocation19 + $0x8] sm:$0xff]
    %v2297 = vld [vmem:[#allocation19 + $0x10] sm:$0xff]
    %v2298 = vld [vmem:[#allocation19 + $0x18] sm:$0xff]
    %v2299 = vld [vmem:[#allocation19 + $0x20] sm:$0xff]
    %v2300 = vld [vmem:[#allocation19 + $0x28] sm:$0xff]
    %v2301 = vld [vmem:[#allocation19 + $0x30] sm:$0xff]
    %v2302 = vld [vmem:[#allocation19 + $0x38] sm:$0xff]
    %v2303 = vld [vmem:[#allocation19 + $0x40] sm:$0xff]
    %v2304 = vld [vmem:[#allocation19 + $0x48] sm:$0xff]
    %v2305 = vld [vmem:[#allocation19 + $0x50] sm:$0xff]
    %v2306 = vld [vmem:[#allocation19 + $0x58] sm:$0xff]
    %v2307 = vld [vmem:[#allocation19 + $0x60] sm:$0xff]
    %v2308 = vld [vmem:[#allocation19 + $0x68] sm:$0xff]
    %v2309 = vld [vmem:[#allocation19 + $0x70] sm:$0xff]
    %v2310 = vld [vmem:[#allocation19 + $0x78] sm:$0xff]
    %v2311 = vld [vmem:[#allocation19 + $0x80] sm:$0xff]
    %v2312 = vld [vmem:[#allocation19 + $0x88] sm:$0xff]
    %v2313 = vld [vmem:[#allocation19 + $0x90] sm:$0xff]
    %v2314 = vld [vmem:[#allocation19 + $0x98] sm:$0xff]
    %v2315 = vld [vmem:[#allocation19 + $0xa0] sm:$0xff]
    %v2316 = vld [vmem:[#allocation19 + $0xa8] sm:$0xff]
    %v2317 = vld [vmem:[#allocation19 + $0xb0] sm:$0xff]
    %v2318 = vld [vmem:[#allocation19 + $0xb8] sm:$0xff]
    %v2319 = vld [vmem:[#allocation19 + $0xc0] sm:$0xff]
    %v2320 = vld [vmem:[#allocation19 + $0xc8] sm:$0xff]
    %v2321 = vld [vmem:[#allocation19 + $0xd0] sm:$0xff]
    %v2322 = vld [vmem:[#allocation19 + $0xd8] sm:$0xff]
    %v2323 = vld [vmem:[#allocation19 + $0xe0] sm:$0xff]
    %v2324 = vld [vmem:[#allocation19 + $0xe8] sm:$0xff]
    %v2325 = vld [vmem:[#allocation19 + $0xf0] sm:$0xff]
    %v2326 = vld [vmem:[#allocation19 + $0xf8] sm:$0xff]
    %v2327 = vld [vmem:[%s14] sm:$0x3]
    %v2329 = vperm.slane %v2327, 0
    %v2330 = vperm.slane %v2327, 1
    %v2365 = vunpack.c.l.b16 %v2295
    %v2366 = vunpack.c.h.b16 %v2295
    %v2367 = vunpack.c.l.b16 %v2296
    %v2368 = vunpack.c.h.b16 %v2296
    %v2369 = vunpack.c.l.b16 %v2297
    %v2370 = vunpack.c.h.b16 %v2297
    %v2371 = vunpack.c.l.b16 %v2298
    %v2372 = vunpack.c.h.b16 %v2298
    %v2373 = vunpack.c.l.b16 %v2299
    %v2374 = vunpack.c.h.b16 %v2299
    %v2375 = vunpack.c.l.b16 %v2300
    %v2376 = vunpack.c.h.b16 %v2300
    %v2377 = vunpack.c.l.b16 %v2301
    %v2378 = vunpack.c.h.b16 %v2301
    %v2379 = vunpack.c.l.b16 %v2302
    %v2380 = vunpack.c.h.b16 %v2302
    %v2381 = vunpack.c.l.b16 %v2303
    %v2382 = vunpack.c.h.b16 %v2303
    %v2383 = vunpack.c.l.b16 %v2304
    %v2384 = vunpack.c.h.b16 %v2304
    %v2385 = vunpack.c.l.b16 %v2305
    %v2386 = vunpack.c.h.b16 %v2305
    %v2387 = vunpack.c.l.b16 %v2306
    %v2388 = vunpack.c.h.b16 %v2306
    %v2389 = vunpack.c.l.b16 %v2307
    %v2390 = vunpack.c.h.b16 %v2307
    %v2391 = vunpack.c.l.b16 %v2308
    %v2392 = vunpack.c.h.b16 %v2308
    %v2393 = vunpack.c.l.b16 %v2309
    %v2394 = vunpack.c.h.b16 %v2309
    %v2395 = vunpack.c.l.b16 %v2310
    %v2396 = vunpack.c.h.b16 %v2310
    %v2397 = vunpack.c.l.b16 %v2311
    %v2398 = vunpack.c.h.b16 %v2311
    %v2399 = vunpack.c.l.b16 %v2312
    %v2400 = vunpack.c.h.b16 %v2312
    %v2401 = vunpack.c.l.b16 %v2313
    %v2402 = vunpack.c.h.b16 %v2313
    %v2403 = vunpack.c.l.b16 %v2314
    %v2404 = vunpack.c.h.b16 %v2314
    %v2405 = vunpack.c.l.b16 %v2315
    %v2406 = vunpack.c.h.b16 %v2315
    %v2407 = vunpack.c.l.b16 %v2316
    %v2408 = vunpack.c.h.b16 %v2316
    %v2409 = vunpack.c.l.b16 %v2317
    %v2410 = vunpack.c.h.b16 %v2317
    %v2411 = vunpack.c.l.b16 %v2318
    %v2412 = vunpack.c.h.b16 %v2318
    %v2413 = vunpack.c.l.b16 %v2319
    %v2414 = vunpack.c.h.b16 %v2319
    %v2415 = vunpack.c.l.b16 %v2320
    %v2416 = vunpack.c.h.b16 %v2320
    %v2417 = vunpack.c.l.b16 %v2321
    %v2418 = vunpack.c.h.b16 %v2321
    %v2419 = vunpack.c.l.b16 %v2322
    %v2420 = vunpack.c.h.b16 %v2322
    %v2421 = vunpack.c.l.b16 %v2323
    %v2422 = vunpack.c.h.b16 %v2323
    %v2423 = vunpack.c.l.b16 %v2324
    %v2424 = vunpack.c.h.b16 %v2324
    %v2425 = vunpack.c.l.b16 %v2325
    %v2426 = vunpack.c.h.b16 %v2325
    %v2427 = vunpack.c.l.b16 %v2326
    %v2428 = vunpack.c.h.b16 %v2326
    %v2429 = vpack.c.b16 %v2367, %v2365
    %v2430 = vpack.c.b16 %v2368, %v2366
    %v2431 = vpack.c.b16 %v2371, %v2369
    %v2432 = vpack.c.b16 %v2372, %v2370
    %v2433 = vpack.c.b16 %v2375, %v2373
    %v2434 = vpack.c.b16 %v2376, %v2374
    %v2435 = vpack.c.b16 %v2379, %v2377
    %v2436 = vpack.c.b16 %v2380, %v2378
    %v2437 = vpack.c.b16 %v2383, %v2381
    %v2438 = vpack.c.b16 %v2384, %v2382
    %v2439 = vpack.c.b16 %v2387, %v2385
    %v2440 = vpack.c.b16 %v2388, %v2386
    %v2441 = vpack.c.b16 %v2391, %v2389
    %v2442 = vpack.c.b16 %v2392, %v2390
    %v2443 = vpack.c.b16 %v2395, %v2393
    %v2444 = vpack.c.b16 %v2396, %v2394
    %v2445 = vpack.c.b16 %v2399, %v2397
    %v2446 = vpack.c.b16 %v2400, %v2398
    %v2447 = vpack.c.b16 %v2403, %v2401
    %v2448 = vpack.c.b16 %v2404, %v2402
    %v2449 = vpack.c.b16 %v2407, %v2405
    %v2450 = vpack.c.b16 %v2408, %v2406
    %v2451 = vpack.c.b16 %v2411, %v2409
    %v2452 = vpack.c.b16 %v2412, %v2410
    %v2453 = vpack.c.b16 %v2415, %v2413
    %v2454 = vpack.c.b16 %v2416, %v2414
    %v2455 = vpack.c.b16 %v2419, %v2417
    %v2456 = vpack.c.b16 %v2420, %v2418
    %v2457 = vpack.c.b16 %v2423, %v2421
    %v2458 = vpack.c.b16 %v2424, %v2422
    %v2459 = vpack.c.b16 %v2427, %v2425
    %v2460 = vpack.c.b16 %v2428, %v2426
    %2493 = vmatpush.bf16.msra.mxu0 %v2443
    %2494 = vmatpush.bf16.msra.mxu0 %v2441
    %2495 = vmatpush.bf16.msra.mxu0 %v2439
    %2496 = vmatpush.bf16.msra.mxu0 %v2437
    %2497 = vmatpush.bf16.msra.mxu0 %v2435
    %2498 = vmatpush.bf16.msra.mxu0 %v2433
    %2499 = vmatpush.bf16.msra.mxu0 %v2431
    %2500 = vmatpush.bf16.msra.mxu0 %v2429
    %2501 = vmatmul.bf16.gmra.mxu0 %v2293
    %v2502 = vpop.f32.mrf.mxu0
    %v2503 = vadd.f32 %v2329, %v2502
    %v2504 = vpop.f32.mrf.mxu0
    %v2505 = vadd.f32 %v2329, %v2504
    %2506 = vdwg.mxu0
    %2507 = vmatpush.bf16.msra.mxu0 %v2459
    %2508 = vmatpush.bf16.msra.mxu0 %v2457
    %2509 = vmatpush.bf16.msra.mxu0 %v2455
    %2510 = vmatpush.bf16.msra.mxu0 %v2453
    %2511 = vmatpush.bf16.msra.mxu0 %v2451
    %2512 = vmatpush.bf16.msra.mxu0 %v2449
    %2513 = vmatpush.bf16.msra.mxu0 %v2447
    %2514 = vmatpush.bf16.msra.mxu0 %v2445
    %2515 = vmatmul.bf16.gmra.mxu0 %v2294
    %v2516 = vpop.f32.mrf.mxu0
    %v2517 = vadd.f32 %v2503, %v2516
    %v2518 = vpop.f32.mrf.mxu0
    %v2519 = vadd.f32 %v2505, %v2518
    %2520 = vdwg.mxu0
    %2521 = vmatpush.bf16.msra.mxu0 %v2444
    %2522 = vmatpush.bf16.msra.mxu0 %v2442
    %2523 = vmatpush.bf16.msra.mxu0 %v2440
    %2524 = vmatpush.bf16.msra.mxu0 %v2438
    %2525 = vmatpush.bf16.msra.mxu0 %v2436
    %2526 = vmatpush.bf16.msra.mxu0 %v2434
    %2527 = vmatpush.bf16.msra.mxu0 %v2432
    %2528 = vmatpush.bf16.msra.mxu0 %v2430
    %2529 = vmatmul.bf16.gmra.mxu0 %v2293
    %v2530 = vpop.f32.mrf.mxu0
    %v2531 = vadd.f32 %v2330, %v2530
    %v2532 = vpop.f32.mrf.mxu0
    %v2533 = vadd.f32 %v2330, %v2532
    %2534 = vdwg.mxu0
    %2535 = vmatpush.bf16.msra.mxu0 %v2460
    %2536 = vmatpush.bf16.msra.mxu0 %v2458
    %2537 = vmatpush.bf16.msra.mxu0 %v2456
    %2538 = vmatpush.bf16.msra.mxu0 %v2454
    %2539 = vmatpush.bf16.msra.mxu0 %v2452
    %2540 = vmatpush.bf16.msra.mxu0 %v2450
    %2541 = vmatpush.bf16.msra.mxu0 %v2448
    %2542 = vmatpush.bf16.msra.mxu0 %v2446
    %2543 = vmatmul.bf16.gmra.mxu0 %v2294
    %v2544 = vpop.f32.mrf.mxu0
    %v2545 = vadd.f32 %v2531, %v2544
    %v2546 = vpop.f32.mrf.mxu0
    %v2547 = vadd.f32 %v2533, %v2546
    %2548 = vdwg.mxu0
    %v2549 = vmax.f32 %v2517, 0.0
    %v2550 = vmax.f32 %v2545, 0.0
    %v2551 = vmax.f32 %v2519, 0.0
    %v2552 = vmax.f32 %v2547, 0.0
    %v2553 = vpack.c.bf16 %v2551, %v2549
    %v2554 = vpack.c.bf16 %v2552, %v2550
    %v2555 = vld [vmem:[#allocation21] sm:$0xff]
    %v2556 = vld [vmem:[#allocation21 + $0x8] sm:$0xff]
    %v2557 = vld [vmem:[#allocation21 + $0x10] sm:$0xff]
    %v2558 = vld [vmem:[#allocation21 + $0x18] sm:$0xff]
    %v2559 = vld [vmem:[#allocation21 + $0x20] sm:$0xff]
    %v2560 = vld [vmem:[#allocation21 + $0x28] sm:$0xff]
    %v2561 = vld [vmem:[#allocation21 + $0x30] sm:$0xff]
    %v2562 = vld [vmem:[#allocation21 + $0x38] sm:$0xff]
    %v2563 = vld [vmem:[#allocation21 + $0x40] sm:$0xff]
    %v2564 = vld [vmem:[#allocation21 + $0x48] sm:$0xff]
    %v2565 = vld [vmem:[#allocation21 + $0x50] sm:$0xff]
    %v2566 = vld [vmem:[#allocation21 + $0x58] sm:$0xff]
    %v2567 = vld [vmem:[#allocation21 + $0x60] sm:$0xff]
    %v2568 = vld [vmem:[#allocation21 + $0x68] sm:$0xff]
    %v2569 = vld [vmem:[#allocation21 + $0x70] sm:$0xff]
    %v2570 = vld [vmem:[#allocation21 + $0x78] sm:$0xff]
    %v2571 = vld [vmem:[#allocation21 + $0x80] sm:$0xff]
    %v2572 = vld [vmem:[#allocation21 + $0x88] sm:$0xff]
    %v2573 = vld [vmem:[#allocation21 + $0x90] sm:$0xff]
    %v2574 = vld [vmem:[#allocation21 + $0x98] sm:$0xff]
    %v2575 = vld [vmem:[#allocation21 + $0xa0] sm:$0xff]
    %v2576 = vld [vmem:[#allocation21 + $0xa8] sm:$0xff]
    %v2577 = vld [vmem:[#allocation21 + $0xb0] sm:$0xff]
    %v2578 = vld [vmem:[#allocation21 + $0xb8] sm:$0xff]
    %v2579 = vld [vmem:[#allocation21 + $0xc0] sm:$0xff]
    %v2580 = vld [vmem:[#allocation21 + $0xc8] sm:$0xff]
    %v2581 = vld [vmem:[#allocation21 + $0xd0] sm:$0xff]
    %v2582 = vld [vmem:[#allocation21 + $0xd8] sm:$0xff]
    %v2583 = vld [vmem:[#allocation21 + $0xe0] sm:$0xff]
    %v2584 = vld [vmem:[#allocation21 + $0xe8] sm:$0xff]
    %v2585 = vld [vmem:[#allocation21 + $0xf0] sm:$0xff]
    %v2586 = vld [vmem:[#allocation21 + $0xf8] sm:$0xff]
    %v2587 = vld [vmem:[%s16] sm:$0x3]
    %v2589 = vperm.slane %v2587, 0
    %v2590 = vperm.slane %v2587, 1
    %v2625 = vunpack.c.l.b16 %v2555
    %v2626 = vunpack.c.h.b16 %v2555
    %v2627 = vunpack.c.l.b16 %v2556
    %v2628 = vunpack.c.h.b16 %v2556
    %v2629 = vunpack.c.l.b16 %v2557
    %v2630 = vunpack.c.h.b16 %v2557
    %v2631 = vunpack.c.l.b16 %v2558
    %v2632 = vunpack.c.h.b16 %v2558
    %v2633 = vunpack.c.l.b16 %v2559
    %v2634 = vunpack.c.h.b16 %v2559
    %v2635 = vunpack.c.l.b16 %v2560
    %v2636 = vunpack.c.h.b16 %v2560
    %v2637 = vunpack.c.l.b16 %v2561
    %v2638 = vunpack.c.h.b16 %v2561
    %v2639 = vunpack.c.l.b16 %v2562
    %v2640 = vunpack.c.h.b16 %v2562
    %v2641 = vunpack.c.l.b16 %v2563
    %v2642 = vunpack.c.h.b16 %v2563
    %v2643 = vunpack.c.l.b16 %v2564
    %v2644 = vunpack.c.h.b16 %v2564
    %v2645 = vunpack.c.l.b16 %v2565
    %v2646 = vunpack.c.h.b16 %v2565
    %v2647 = vunpack.c.l.b16 %v2566
    %v2648 = vunpack.c.h.b16 %v2566
    %v2649 = vunpack.c.l.b16 %v2567
    %v2650 = vunpack.c.h.b16 %v2567
    %v2651 = vunpack.c.l.b16 %v2568
    %v2652 = vunpack.c.h.b16 %v2568
    %v2653 = vunpack.c.l.b16 %v2569
    %v2654 = vunpack.c.h.b16 %v2569
    %v2655 = vunpack.c.l.b16 %v2570
    %v2656 = vunpack.c.h.b16 %v2570
    %v2657 = vunpack.c.l.b16 %v2571
    %v2658 = vunpack.c.h.b16 %v2571
    %v2659 = vunpack.c.l.b16 %v2572
    %v2660 = vunpack.c.h.b16 %v2572
    %v2661 = vunpack.c.l.b16 %v2573
    %v2662 = vunpack.c.h.b16 %v2573
    %v2663 = vunpack.c.l.b16 %v2574
    %v2664 = vunpack.c.h.b16 %v2574
    %v2665 = vunpack.c.l.b16 %v2575
    %v2666 = vunpack.c.h.b16 %v2575
    %v2667 = vunpack.c.l.b16 %v2576
    %v2668 = vunpack.c.h.b16 %v2576
    %v2669 = vunpack.c.l.b16 %v2577
    %v2670 = vunpack.c.h.b16 %v2577
    %v2671 = vunpack.c.l.b16 %v2578
    %v2672 = vunpack.c.h.b16 %v2578
    %v2673 = vunpack.c.l.b16 %v2579
    %v2674 = vunpack.c.h.b16 %v2579
    %v2675 = vunpack.c.l.b16 %v2580
    %v2676 = vunpack.c.h.b16 %v2580
    %v2677 = vunpack.c.l.b16 %v2581
    %v2678 = vunpack.c.h.b16 %v2581
    %v2679 = vunpack.c.l.b16 %v2582
    %v2680 = vunpack.c.h.b16 %v2582
    %v2681 = vunpack.c.l.b16 %v2583
    %v2682 = vunpack.c.h.b16 %v2583
    %v2683 = vunpack.c.l.b16 %v2584
    %v2684 = vunpack.c.h.b16 %v2584
    %v2685 = vunpack.c.l.b16 %v2585
    %v2686 = vunpack.c.h.b16 %v2585
    %v2687 = vunpack.c.l.b16 %v2586
    %v2688 = vunpack.c.h.b16 %v2586
    %v2689 = vpack.c.b16 %v2627, %v2625
    %v2690 = vpack.c.b16 %v2628, %v2626
    %v2691 = vpack.c.b16 %v2631, %v2629
    %v2692 = vpack.c.b16 %v2632, %v2630
    %v2693 = vpack.c.b16 %v2635, %v2633
    %v2694 = vpack.c.b16 %v2636, %v2634
    %v2695 = vpack.c.b16 %v2639, %v2637
    %v2696 = vpack.c.b16 %v2640, %v2638
    %v2697 = vpack.c.b16 %v2643, %v2641
    %v2698 = vpack.c.b16 %v2644, %v2642
    %v2699 = vpack.c.b16 %v2647, %v2645
    %v2700 = vpack.c.b16 %v2648, %v2646
    %v2701 = vpack.c.b16 %v2651, %v2649
    %v2702 = vpack.c.b16 %v2652, %v2650
    %v2703 = vpack.c.b16 %v2655, %v2653
    %v2704 = vpack.c.b16 %v2656, %v2654
    %v2705 = vpack.c.b16 %v2659, %v2657
    %v2706 = vpack.c.b16 %v2660, %v2658
    %v2707 = vpack.c.b16 %v2663, %v2661
    %v2708 = vpack.c.b16 %v2664, %v2662
    %v2709 = vpack.c.b16 %v2667, %v2665
    %v2710 = vpack.c.b16 %v2668, %v2666
    %v2711 = vpack.c.b16 %v2671, %v2669
    %v2712 = vpack.c.b16 %v2672, %v2670
    %v2713 = vpack.c.b16 %v2675, %v2673
    %v2714 = vpack.c.b16 %v2676, %v2674
    %v2715 = vpack.c.b16 %v2679, %v2677
    %v2716 = vpack.c.b16 %v2680, %v2678
    %v2717 = vpack.c.b16 %v2683, %v2681
    %v2718 = vpack.c.b16 %v2684, %v2682
    %v2719 = vpack.c.b16 %v2687, %v2685
    %v2720 = vpack.c.b16 %v2688, %v2686
    %2753 = vmatpush.bf16.msra.mxu0 %v2703
    %2754 = vmatpush.bf16.msra.mxu0 %v2701
    %2755 = vmatpush.bf16.msra.mxu0 %v2699
    %2756 = vmatpush.bf16.msra.mxu0 %v2697
    %2757 = vmatpush.bf16.msra.mxu0 %v2695
    %2758 = vmatpush.bf16.msra.mxu0 %v2693
    %2759 = vmatpush.bf16.msra.mxu0 %v2691
    %2760 = vmatpush.bf16.msra.mxu0 %v2689
    %2761 = vmatmul.bf16.gmra.mxu0 %v2553
    %v2762 = vpop.f32.mrf.mxu0
    %v2763 = vadd.f32 %v2589, %v2762
    %v2764 = vpop.f32.mrf.mxu0
    %v2765 = vadd.f32 %v2589, %v2764
    %2766 = vdwg.mxu0
    %2767 = vmatpush.bf16.msra.mxu0 %v2719
    %2768 = vmatpush.bf16.msra.mxu0 %v2717
    %2769 = vmatpush.bf16.msra.mxu0 %v2715
    %2770 = vmatpush.bf16.msra.mxu0 %v2713
    %2771 = vmatpush.bf16.msra.mxu0 %v2711
    %2772 = vmatpush.bf16.msra.mxu0 %v2709
    %2773 = vmatpush.bf16.msra.mxu0 %v2707
    %2774 = vmatpush.bf16.msra.mxu0 %v2705
    %2775 = vmatmul.bf16.gmra.mxu0 %v2554
    %v2776 = vpop.f32.mrf.mxu0
    %v2777 = vadd.f32 %v2763, %v2776
    %v2778 = vpop.f32.mrf.mxu0
    %v2779 = vadd.f32 %v2765, %v2778
    %2780 = vdwg.mxu0
    %2781 = vmatpush.bf16.msra.mxu0 %v2704
    %2782 = vmatpush.bf16.msra.mxu0 %v2702
    %2783 = vmatpush.bf16.msra.mxu0 %v2700
    %2784 = vmatpush.bf16.msra.mxu0 %v2698
    %2785 = vmatpush.bf16.msra.mxu0 %v2696
    %2786 = vmatpush.bf16.msra.mxu0 %v2694
    %2787 = vmatpush.bf16.msra.mxu0 %v2692
    %2788 = vmatpush.bf16.msra.mxu0 %v2690
    %2789 = vmatmul.bf16.gmra.mxu0 %v2553
    %v2790 = vpop.f32.mrf.mxu0
    %v2791 = vadd.f32 %v2590, %v2790
    %v2792 = vpop.f32.mrf.mxu0
    %v2793 = vadd.f32 %v2590, %v2792
    %2794 = vdwg.mxu0
    %2795 = vmatpush.bf16.msra.mxu0 %v2720
    %2796 = vmatpush.bf16.msra.mxu0 %v2718
    %2797 = vmatpush.bf16.msra.mxu0 %v2716
    %2798 = vmatpush.bf16.msra.mxu0 %v2714
    %2799 = vmatpush.bf16.msra.mxu0 %v2712
    %2800 = vmatpush.bf16.msra.mxu0 %v2710
    %2801 = vmatpush.bf16.msra.mxu0 %v2708
    %2802 = vmatpush.bf16.msra.mxu0 %v2706
    %2803 = vmatmul.bf16.gmra.mxu0 %v2554
    %v2804 = vpop.f32.mrf.mxu0
    %v2805 = vadd.f32 %v2791, %v2804
    %v2806 = vpop.f32.mrf.mxu0
    %v2807 = vadd.f32 %v2793, %v2806
    %2808 = vdwg.mxu0
    %v2809 = vmax.f32 %v2777, 0.0
    %v2810 = vmax.f32 %v2805, 0.0
    %v2811 = vmax.f32 %v2779, 0.0
    %v2812 = vmax.f32 %v2807, 0.0
    %v2813 = vmul.f32 %v2809, %v2015
    %v2814 = vmul.f32 %v2810, %v2016
    %v2815 = vmul.f32 %v2811, %v2015
    %v2816 = vmul.f32 %v2812, %v2016
    %v2817 = vadd.f32 %v2813, %v2025
    %v2818 = vadd.f32 %v2814, %v2026
    %v2819 = vadd.f32 %v2815, %v2025
    %v2820 = vadd.f32 %v2816, %v2026
    %v2821 = vpack.c.bf16 %v2819, %v2817
    %v2822 = vpack.c.bf16 %v2820, %v2818
    %v2823 = vld [vmem:[#allocation22] sm:$0xff]
    %v2824 = vld [vmem:[#allocation22 + $0x8] sm:$0xff]
    %v2825 = vld [vmem:[#allocation22 + $0x10] sm:$0xff]
    %v2826 = vld [vmem:[#allocation22 + $0x18] sm:$0xff]
    %v2827 = vld [vmem:[#allocation22 + $0x20] sm:$0xff]
    %v2828 = vld [vmem:[#allocation22 + $0x28] sm:$0xff]
    %v2829 = vld [vmem:[#allocation22 + $0x30] sm:$0xff]
    %v2830 = vld [vmem:[#allocation22 + $0x38] sm:$0xff]
    %v2831 = vld [vmem:[#allocation22 + $0x40] sm:$0xff]
    %v2832 = vld [vmem:[#allocation22 + $0x48] sm:$0xff]
    %v2833 = vld [vmem:[#allocation22 + $0x50] sm:$0xff]
    %v2834 = vld [vmem:[#allocation22 + $0x58] sm:$0xff]
    %v2835 = vld [vmem:[#allocation22 + $0x60] sm:$0xff]
    %v2836 = vld [vmem:[#allocation22 + $0x68] sm:$0xff]
    %v2837 = vld [vmem:[#allocation22 + $0x70] sm:$0xff]
    %v2838 = vld [vmem:[#allocation22 + $0x78] sm:$0xff]
    %v2839 = vld [vmem:[#allocation22 + $0x80] sm:$0xff]
    %v2840 = vld [vmem:[#allocation22 + $0x88] sm:$0xff]
    %v2841 = vld [vmem:[#allocation22 + $0x90] sm:$0xff]
    %v2842 = vld [vmem:[#allocation22 + $0x98] sm:$0xff]
    %v2843 = vld [vmem:[#allocation22 + $0xa0] sm:$0xff]
    %v2844 = vld [vmem:[#allocation22 + $0xa8] sm:$0xff]
    %v2845 = vld [vmem:[#allocation22 + $0xb0] sm:$0xff]
    %v2846 = vld [vmem:[#allocation22 + $0xb8] sm:$0xff]
    %v2847 = vld [vmem:[#allocation22 + $0xc0] sm:$0xff]
    %v2848 = vld [vmem:[#allocation22 + $0xc8] sm:$0xff]
    %v2849 = vld [vmem:[#allocation22 + $0xd0] sm:$0xff]
    %v2850 = vld [vmem:[#allocation22 + $0xd8] sm:$0xff]
    %v2851 = vld [vmem:[#allocation22 + $0xe0] sm:$0xff]
    %v2852 = vld [vmem:[#allocation22 + $0xe8] sm:$0xff]
    %v2853 = vld [vmem:[#allocation22 + $0xf0] sm:$0xff]
    %v2854 = vld [vmem:[#allocation22 + $0xf8] sm:$0xff]
    %v2855 = vld [vmem:[%s18] sm:$0x3]
    %v2857 = vperm.slane %v2855, 0
    %v2858 = vperm.slane %v2855, 1
    %v2893 = vunpack.c.l.b16 %v2823
    %v2894 = vunpack.c.h.b16 %v2823
    %v2895 = vunpack.c.l.b16 %v2824
    %v2896 = vunpack.c.h.b16 %v2824
    %v2897 = vunpack.c.l.b16 %v2825
    %v2898 = vunpack.c.h.b16 %v2825
    %v2899 = vunpack.c.l.b16 %v2826
    %v2900 = vunpack.c.h.b16 %v2826
    %v2901 = vunpack.c.l.b16 %v2827
    %v2902 = vunpack.c.h.b16 %v2827
    %v2903 = vunpack.c.l.b16 %v2828
    %v2904 = vunpack.c.h.b16 %v2828
    %v2905 = vunpack.c.l.b16 %v2829
    %v2906 = vunpack.c.h.b16 %v2829
    %v2907 = vunpack.c.l.b16 %v2830
    %v2908 = vunpack.c.h.b16 %v2830
    %v2909 = vunpack.c.l.b16 %v2831
    %v2910 = vunpack.c.h.b16 %v2831
    %v2911 = vunpack.c.l.b16 %v2832
    %v2912 = vunpack.c.h.b16 %v2832
    %v2913 = vunpack.c.l.b16 %v2833
    %v2914 = vunpack.c.h.b16 %v2833
    %v2915 = vunpack.c.l.b16 %v2834
    %v2916 = vunpack.c.h.b16 %v2834
    %v2917 = vunpack.c.l.b16 %v2835
    %v2918 = vunpack.c.h.b16 %v2835
    %v2919 = vunpack.c.l.b16 %v2836
    %v2920 = vunpack.c.h.b16 %v2836
    %v2921 = vunpack.c.l.b16 %v2837
    %v2922 = vunpack.c.h.b16 %v2837
    %v2923 = vunpack.c.l.b16 %v2838
    %v2924 = vunpack.c.h.b16 %v2838
    %v2925 = vunpack.c.l.b16 %v2839
    %v2926 = vunpack.c.h.b16 %v2839
    %v2927 = vunpack.c.l.b16 %v2840
    %v2928 = vunpack.c.h.b16 %v2840
    %v2929 = vunpack.c.l.b16 %v2841
    %v2930 = vunpack.c.h.b16 %v2841
    %v2931 = vunpack.c.l.b16 %v2842
    %v2932 = vunpack.c.h.b16 %v2842
    %v2933 = vunpack.c.l.b16 %v2843
    %v2934 = vunpack.c.h.b16 %v2843
    %v2935 = vunpack.c.l.b16 %v2844
    %v2936 = vunpack.c.h.b16 %v2844
    %v2937 = vunpack.c.l.b16 %v2845
    %v2938 = vunpack.c.h.b16 %v2845
    %v2939 = vunpack.c.l.b16 %v2846
    %v2940 = vunpack.c.h.b16 %v2846
    %v2941 = vunpack.c.l.b16 %v2847
    %v2942 = vunpack.c.h.b16 %v2847
    %v2943 = vunpack.c.l.b16 %v2848
    %v2944 = vunpack.c.h.b16 %v2848
    %v2945 = vunpack.c.l.b16 %v2849
    %v2946 = vunpack.c.h.b16 %v2849
    %v2947 = vunpack.c.l.b16 %v2850
    %v2948 = vunpack.c.h.b16 %v2850
    %v2949 = vunpack.c.l.b16 %v2851
    %v2950 = vunpack.c.h.b16 %v2851
    %v2951 = vunpack.c.l.b16 %v2852
    %v2952 = vunpack.c.h.b16 %v2852
    %v2953 = vunpack.c.l.b16 %v2853
    %v2954 = vunpack.c.h.b16 %v2853
    %v2955 = vunpack.c.l.b16 %v2854
    %v2956 = vunpack.c.h.b16 %v2854
    %v2957 = vpack.c.b16 %v2895, %v2893
    %v2958 = vpack.c.b16 %v2896, %v2894
    %v2959 = vpack.c.b16 %v2899, %v2897
    %v2960 = vpack.c.b16 %v2900, %v2898
    %v2961 = vpack.c.b16 %v2903, %v2901
    %v2962 = vpack.c.b16 %v2904, %v2902
    %v2963 = vpack.c.b16 %v2907, %v2905
    %v2964 = vpack.c.b16 %v2908, %v2906
    %v2965 = vpack.c.b16 %v2911, %v2909
    %v2966 = vpack.c.b16 %v2912, %v2910
    %v2967 = vpack.c.b16 %v2915, %v2913
    %v2968 = vpack.c.b16 %v2916, %v2914
    %v2969 = vpack.c.b16 %v2919, %v2917
    %v2970 = vpack.c.b16 %v2920, %v2918
    %v2971 = vpack.c.b16 %v2923, %v2921
    %v2972 = vpack.c.b16 %v2924, %v2922
    %v2973 = vpack.c.b16 %v2927, %v2925
    %v2974 = vpack.c.b16 %v2928, %v2926
    %v2975 = vpack.c.b16 %v2931, %v2929
    %v2976 = vpack.c.b16 %v2932, %v2930
    %v2977 = vpack.c.b16 %v2935, %v2933
    %v2978 = vpack.c.b16 %v2936, %v2934
    %v2979 = vpack.c.b16 %v2939, %v2937
    %v2980 = vpack.c.b16 %v2940, %v2938
    %v2981 = vpack.c.b16 %v2943, %v2941
    %v2982 = vpack.c.b16 %v2944, %v2942
    %v2983 = vpack.c.b16 %v2947, %v2945
    %v2984 = vpack.c.b16 %v2948, %v2946
    %v2985 = vpack.c.b16 %v2951, %v2949
    %v2986 = vpack.c.b16 %v2952, %v2950
    %v2987 = vpack.c.b16 %v2955, %v2953
    %v2988 = vpack.c.b16 %v2956, %v2954
    %3021 = vmatpush.bf16.msra.mxu0 %v2971
    %3022 = vmatpush.bf16.msra.mxu0 %v2969
    %3023 = vmatpush.bf16.msra.mxu0 %v2967
    %3024 = vmatpush.bf16.msra.mxu0 %v2965
    %3025 = vmatpush.bf16.msra.mxu0 %v2963
    %3026 = vmatpush.bf16.msra.mxu0 %v2961
    %3027 = vmatpush.bf16.msra.mxu0 %v2959
    %3028 = vmatpush.bf16.msra.mxu0 %v2957
    %3029 = vmatmul.bf16.gmra.mxu0 %v2821
    %v3030 = vpop.f32.mrf.mxu0
    %v3031 = vadd.f32 %v2857, %v3030
    %v3032 = vpop.f32.mrf.mxu0
    %v3033 = vadd.f32 %v2857, %v3032
    %3034 = vdwg.mxu0
    %3035 = vmatpush.bf16.msra.mxu0 %v2987
    %3036 = vmatpush.bf16.msra.mxu0 %v2985
    %3037 = vmatpush.bf16.msra.mxu0 %v2983
    %3038 = vmatpush.bf16.msra.mxu0 %v2981
    %3039 = vmatpush.bf16.msra.mxu0 %v2979
    %3040 = vmatpush.bf16.msra.mxu0 %v2977
    %3041 = vmatpush.bf16.msra.mxu0 %v2975
    %3042 = vmatpush.bf16.msra.mxu0 %v2973
    %3043 = vmatmul.bf16.gmra.mxu0 %v2822
    %v3044 = vpop.f32.mrf.mxu0
    %v3045 = vadd.f32 %v3031, %v3044
    %v3046 = vpop.f32.mrf.mxu0
    %v3047 = vadd.f32 %v3033, %v3046
    %3048 = vdwg.mxu0
    %3049 = vmatpush.bf16.msra.mxu0 %v2972
    %3050 = vmatpush.bf16.msra.mxu0 %v2970
    %3051 = vmatpush.bf16.msra.mxu0 %v2968
    %3052 = vmatpush.bf16.msra.mxu0 %v2966
    %3053 = vmatpush.bf16.msra.mxu0 %v2964
    %3054 = vmatpush.bf16.msra.mxu0 %v2962
    %3055 = vmatpush.bf16.msra.mxu0 %v2960
    %3056 = vmatpush.bf16.msra.mxu0 %v2958
    %3057 = vmatmul.bf16.gmra.mxu0 %v2821
    %v3058 = vpop.f32.mrf.mxu0
    %v3059 = vadd.f32 %v2858, %v3058
    %v3060 = vpop.f32.mrf.mxu0
    %v3061 = vadd.f32 %v2858, %v3060
    %3062 = vdwg.mxu0
    %3063 = vmatpush.bf16.msra.mxu0 %v2988
    %3064 = vmatpush.bf16.msra.mxu0 %v2986
    %3065 = vmatpush.bf16.msra.mxu0 %v2984
    %3066 = vmatpush.bf16.msra.mxu0 %v2982
    %3067 = vmatpush.bf16.msra.mxu0 %v2980
    %3068 = vmatpush.bf16.msra.mxu0 %v2978
    %3069 = vmatpush.bf16.msra.mxu0 %v2976
    %3070 = vmatpush.bf16.msra.mxu0 %v2974
    %3071 = vmatmul.bf16.gmra.mxu0 %v2822
    %v3072 = vpop.f32.mrf.mxu0
    %v3073 = vadd.f32 %v3059, %v3072
    %v3074 = vpop.f32.mrf.mxu0
    %v3075 = vadd.f32 %v3061, %v3074
    %3076 = vdwg.mxu0
    %v3077 = vmax.f32 %v3045, 0.0
    %v3078 = vmax.f32 %v3073, 0.0
    %v3079 = vmax.f32 %v3047, 0.0
    %v3080 = vmax.f32 %v3075, 0.0
    %v3081 = vpack.c.bf16 %v3079, %v3077
    %v3082 = vpack.c.bf16 %v3080, %v3078
    %v3083 = vld [vmem:[#allocation24] sm:$0xf]
    %v3084 = vld [vmem:[#allocation24 + $0x4] sm:$0xf]
    %v3085 = vld [vmem:[#allocation24 + $0x8] sm:$0xf]
    %v3086 = vld [vmem:[#allocation24 + $0xc] sm:$0xf]
    %v3087 = vld [vmem:[#allocation24 + $0x10] sm:$0xf]
    %v3088 = vld [vmem:[#allocation24 + $0x14] sm:$0xf]
    %v3089 = vld [vmem:[#allocation24 + $0x18] sm:$0xf]
    %v3090 = vld [vmem:[#allocation24 + $0x1c] sm:$0xf]
    %v3091 = vld [vmem:[#allocation24 + $0x20] sm:$0xf]
    %v3092 = vld [vmem:[#allocation24 + $0x24] sm:$0xf]
    %v3093 = vld [vmem:[#allocation24 + $0x28] sm:$0xf]
    %v3094 = vld [vmem:[#allocation24 + $0x2c] sm:$0xf]
    %v3095 = vld [vmem:[#allocation24 + $0x30] sm:$0xf]
    %v3096 = vld [vmem:[#allocation24 + $0x34] sm:$0xf]
    %v3097 = vld [vmem:[#allocation24 + $0x38] sm:$0xf]
    %v3098 = vld [vmem:[#allocation24 + $0x3c] sm:$0xf]
    %v3099 = vld [vmem:[#allocation24 + $0x40] sm:$0xf]
    %v3100 = vld [vmem:[#allocation24 + $0x44] sm:$0xf]
    %v3101 = vld [vmem:[#allocation24 + $0x48] sm:$0xf]
    %v3102 = vld [vmem:[#allocation24 + $0x4c] sm:$0xf]
    %v3103 = vld [vmem:[#allocation24 + $0x50] sm:$0xf]
    %v3104 = vld [vmem:[#allocation24 + $0x54] sm:$0xf]
    %v3105 = vld [vmem:[#allocation24 + $0x58] sm:$0xf]
    %v3106 = vld [vmem:[#allocation24 + $0x5c] sm:$0xf]
    %v3107 = vld [vmem:[#allocation24 + $0x60] sm:$0xf]
    %v3108 = vld [vmem:[#allocation24 + $0x64] sm:$0xf]
    %v3109 = vld [vmem:[#allocation24 + $0x68] sm:$0xf]
    %v3110 = vld [vmem:[#allocation24 + $0x6c] sm:$0xf]
    %v3111 = vld [vmem:[#allocation24 + $0x70] sm:$0xf]
    %v3112 = vld [vmem:[#allocation24 + $0x74] sm:$0xf]
    %v3113 = vld [vmem:[#allocation24 + $0x78] sm:$0xf]
    %v3114 = vld [vmem:[#allocation24 + $0x7c] sm:$0xf]
    %v3115 = vld [vmem:[%s20] sm:$0x1]
    %v3117 = vperm.slane %v3115, 0
    %v3151 = vunpack.c.l.b16 %v3083
    %v3152 = vunpack.c.l.b16 %v3084
    %v3153 = vunpack.c.l.b16 %v3085
    %v3154 = vunpack.c.l.b16 %v3086
    %v3155 = vunpack.c.l.b16 %v3087
    %v3156 = vunpack.c.l.b16 %v3088
    %v3157 = vunpack.c.l.b16 %v3089
    %v3158 = vunpack.c.l.b16 %v3090
    %v3159 = vunpack.c.l.b16 %v3091
    %v3160 = vunpack.c.l.b16 %v3092
    %v3161 = vunpack.c.l.b16 %v3093
    %v3162 = vunpack.c.l.b16 %v3094
    %v3163 = vunpack.c.l.b16 %v3095
    %v3164 = vunpack.c.l.b16 %v3096
    %v3165 = vunpack.c.l.b16 %v3097
    %v3166 = vunpack.c.l.b16 %v3098
    %v3167 = vunpack.c.l.b16 %v3099
    %v3168 = vunpack.c.l.b16 %v3100
    %v3169 = vunpack.c.l.b16 %v3101
    %v3170 = vunpack.c.l.b16 %v3102
    %v3171 = vunpack.c.l.b16 %v3103
    %v3172 = vunpack.c.l.b16 %v3104
    %v3173 = vunpack.c.l.b16 %v3105
    %v3174 = vunpack.c.l.b16 %v3106
    %v3175 = vunpack.c.l.b16 %v3107
    %v3176 = vunpack.c.l.b16 %v3108
    %v3177 = vunpack.c.l.b16 %v3109
    %v3178 = vunpack.c.l.b16 %v3110
    %v3179 = vunpack.c.l.b16 %v3111
    %v3180 = vunpack.c.l.b16 %v3112
    %v3181 = vunpack.c.l.b16 %v3113
    %v3182 = vunpack.c.l.b16 %v3114
    %v3183 = vpack.c.b16 %v3152, %v3151
    %v3184 = vpack.c.b16 %v3154, %v3153
    %v3185 = vpack.c.b16 %v3156, %v3155
    %v3186 = vpack.c.b16 %v3158, %v3157
    %v3187 = vpack.c.b16 %v3160, %v3159
    %v3188 = vpack.c.b16 %v3162, %v3161
    %v3189 = vpack.c.b16 %v3164, %v3163
    %v3190 = vpack.c.b16 %v3166, %v3165
    %v3191 = vpack.c.b16 %v3168, %v3167
    %v3192 = vpack.c.b16 %v3170, %v3169
    %v3193 = vpack.c.b16 %v3172, %v3171
    %v3194 = vpack.c.b16 %v3174, %v3173
    %v3195 = vpack.c.b16 %v3176, %v3175
    %v3196 = vpack.c.b16 %v3178, %v3177
    %v3197 = vpack.c.b16 %v3180, %v3179
    %v3198 = vpack.c.b16 %v3182, %v3181
    %3215 = vmatpush.bf16.msra.mxu0 %v3190
    %3216 = vmatpush.bf16.msra.mxu0 %v3189
    %3217 = vmatpush.bf16.msra.mxu0 %v3188
    %3218 = vmatpush.bf16.msra.mxu0 %v3187
    %3219 = vmatpush.bf16.msra.mxu0 %v3186
    %3220 = vmatpush.bf16.msra.mxu0 %v3185
    %3221 = vmatpush.bf16.msra.mxu0 %v3184
    %3222 = vmatpush.bf16.msra.mxu0 %v3183
    %3223 = vmatmul.bf16.gmra.mxu0 %v3081
    %v3224 = vpop.f32.mrf.mxu0
    %v3225 = vadd.f32 %v3117, %v3224
    %v3226 = vpop.f32.mrf.mxu0
    %v3227 = vadd.f32 %v3117, %v3226
    %3228 = vdwg.mxu0
    %3229 = vmatpush.bf16.msra.mxu0 %v3198
    %3230 = vmatpush.bf16.msra.mxu0 %v3197
    %3231 = vmatpush.bf16.msra.mxu0 %v3196
    %3232 = vmatpush.bf16.msra.mxu0 %v3195
    %3233 = vmatpush.bf16.msra.mxu0 %v3194
    %3234 = vmatpush.bf16.msra.mxu0 %v3193
    %3235 = vmatpush.bf16.msra.mxu0 %v3192
    %3236 = vmatpush.bf16.msra.mxu0 %v3191
    %3237 = vmatmul.bf16.gmra.mxu0 %v3082
    %v3238 = vpop.f32.mrf.mxu0
    %v3239 = vadd.f32 %v3225, %v3238
    %v3240 = vpop.f32.mrf.mxu0
    %v3241 = vadd.f32 %v3227, %v3240
    %3242 = vdwg.mxu0
    %v3243 = vxor.u32 %v3239, 2147483648
    %v3244 = vxor.u32 %v3241, 2147483648
    %v3245 = vmul.f32 %v3243, 1.442695
    %v3246 = vpow.pop %v3245
    %v3247 = vmul.f32 %v3244, 1.442695
    %v3248 = vpow.pop %v3247
    %v3249 = vadd.f32 %v3246, 1.0
    %v3250 = vadd.f32 %v3248, 1.0
    %v3251 = vrcp.pop %v3249
    %v3252 = vmul.f32 %v3249, %v3251
    %v3253 = vsub.f32 1.0, %v3252
    %v3254 = vmul.f32 %v3251, %v3253
    %v3255 = vadd.f32 %v3251, %v3254
    %vm3256 = vweird.f32 %v3249
    %vm3257 = vweird.f32 %v3251
    %vm3258 = vmor %vm3256, %vm3257
    %v3259 = vsel %vm3258, %v3251, %v3255
    %v3260 = vand.u32 2147483647, %v3249
    %vm3261 = vcmp.eq.f32.partialorder %v3260, 8.507059e+37
    %v3262 = vand.u32 %v3249, 2147483648
    %v3263 = vor.u32 1.1754944e-38, %v3262
    %v3264 = vsel %vm3261, %v3263, %v3259
    %v3265 = vmul.f32 1.0, %v3264
    %v3266 = vrcp.pop %v3250
    %v3267 = vmul.f32 %v3250, %v3266
    %v3268 = vsub.f32 1.0, %v3267
    %v3269 = vmul.f32 %v3266, %v3268
    %v3270 = vadd.f32 %v3266, %v3269
    %vm3271 = vweird.f32 %v3250
    %vm3272 = vweird.f32 %v3266
    %vm3273 = vmor %vm3271, %vm3272
    %v3274 = vsel %vm3273, %v3266, %v3270
    %v3275 = vand.u32 2147483647, %v3250
    %vm3276 = vcmp.eq.f32.partialorder %v3275, 8.507059e+37
    %v3277 = vand.u32 %v3250, 2147483648
    %v3278 = vor.u32 1.1754944e-38, %v3277
    %v3279 = vsel %vm3276, %v3278, %v3274
    %v3280 = vmul.f32 1.0, %v3279
    %3281 = vst [vmem:[#allocation25] sm:$0xff] %v3265
    %3282 = vst [vmem:[#allocation25 + $0x8] sm:$0xff] %v3280
    // Predicated region
    $region146: #{tpu_custom_call.1} parent=1 // pred_check
      _
    $region147: #{tpu_custom_call.1} parent=1 // pred_check_branch
      %3284 = sbr.rel (0) target = $region149
    $region148: #{tpu_custom_call.1} parent=1 // pred_region
      %3286 = vsyncadd [#allocation5], 0
      %s3287 = sshll.u32 [#allocation25], 4
      %s3288 = int_to_ptr.vmem [resolvable:$true] %s3287
      %s3289 = sshll.u32 %s23, 4
      %s3290 = int_to_ptr.hbm [resolvable:$true] %s3289
      %3295 = dma.vmem_to_hbm [thread:$0]  %s3288, 256, %s3290, [#allocation5], 128, 128, 8
    $region149: #{tpu_custom_call.1} parent=1 // pred_fallthru
      _
    // Predicated region
    $region150: #{tpu_custom_call.1} parent=1 // pred_check
      _
    $region151: #{tpu_custom_call.1} parent=1 // pred_check_branch
      %3297 = sbr.rel (0) target = $region153
    $region152: #{tpu_custom_call.1} parent=1 // pred_region
      %3299 = dma.done [#allocation5], 256
    $region153: #{tpu_custom_call.1} parent=1 // pred_fallthru
      _
    %3300 = vsyncpa [#allocation4], 1
    %3301 = vsyncpa [#allocation11], 1
    %3302 = vsyncpa [#allocation14], 1
    %3303 = vsyncpa [#allocation17], 1
    %3304 = vsyncpa [#allocation20], 1
    %3305 = vsyncpa [#allocation23], 1
    %3306 = vsyncpa [#allocation5], 1
    %3307 = vsyncpa [#allocation6], 1
    %3308 = vsyncpa [#allocation9], 1

</llo_original>
